<compile_context>
chip_gen: v5e
topology: v5e:2x2
jax: 0.10.0
libtpu: 0.0.40
codegen_flags: <defaults>
</compile_context>

<pallas_src>
import functools

import jax
import jax.numpy as jnp
import numpy as np
from jax import lax
from jax.experimental import pallas as pl
from jax.experimental.pallas import tpu as pltpu


def _round_up(x, m):
    return (x + m - 1) // m * m


def _pick_batch_tile(batch, cap=32):
    """Batch tile: <= cap, multiple of 8, and small enough that the grid has >=2
    steps whenever batch > 8 (so v7x's two TensorCores both get work)."""
    half = _round_up(max(-(-batch // 2), 1), 8)
    return max(8, min(cap, half))


# ---------------------------------------------------------------------------
# Fully fused forward kernel (one batch tile per grid step)
# ---------------------------------------------------------------------------
def _cnn_fused_kernel(x_ref, w1_ref, b1_ref, w2_ref, b2_ref,
                      wf1_ref, bf1_ref, wf2_ref, bf2_ref, o_ref,
                      *, n_classes):
    """x_ref:   (TB, 4, 8, 32)   input rows decomposed mod 4, zero-padded
       w1_ref:  (5, 32, 256)     conv1 banded width-conv matrices (one per row tap)
       b1_ref:  (1, 128)  f32    conv1 bias packed at lanes jp*10 + c
       w2_ref:  (5, 128, 256)    conv2 banded matrices (rows = a1 packed lanes)
       b2_ref:  (1, 128)  f32    conv2 bias packed at lanes j2p*20 + cout
       wf1_ref: (4, 128, 128)    fc1 weight, one (128,128) slab per pooled row
       wf2_ref: (128, 128)       fc2 weight (hidden x class), zero padded
       o_ref:   (TB, 128) f32    masked log-softmax (10 real classes)"""
    tb = x_ref.shape[0]
    cdt = x_ref.dtype
    f32 = jnp.float32

    x = x_ref[...]                                           # (TB, 4, 8, 32)

    # ---- conv1 (5x5, 1->10) + 2x2/2 max-pool + bias + relu -------------------
    # Output columns of the banded matmul: lane = 128*(j%2) + (j//2)*10 + c, so the
    # width pool is max(lane-half 0, lane-half 1); the height pool is the max over
    # the two in-window row parities s.
    a1 = []                                                  # per pooled-row parity u
    for u in range(2):
        acc_u = None
        for s in range(2):                                   # row inside the 2x2 window
            part = None
            for di in range(5):
                t = 2 * u + s + di                           # input row = 4*m + t
                lhs = x[:, t % 4, t // 4:t // 4 + 6, :].reshape(tb * 6, 32)
                mm = jnp.dot(lhs, w1_ref[di], preferred_element_type=f32)
                part = mm if part is None else part + mm     # (TB*6, 256)
            acc_u = part if acc_u is None else jnp.maximum(acc_u, part)
        pooled = jnp.maximum(acc_u[:, :128], acc_u[:, 128:])  # (TB*6, 128)
        lane = lax.broadcasted_iota(jnp.int32, pooled.shape, 1)
        act = jnp.maximum(pooled + b1_ref[...], 0.0)
        act = jnp.where(lane < 120, act, 0.0).astype(cdt)    # lanes = jp*10 + c
        a1.append(act.reshape(tb, 6, 128))                   # pooled rows ip = 2m + u

    # ---- conv2 (5x5, 10->20) + 2x2/2 max-pool + bias + relu ------------------
    acc2 = []
    for s2 in range(2):                                      # output-row parity
        part = None
        for di in range(5):
            t = s2 + di                                      # a1 row = 2k + t
            lhs = a1[t % 2][:, t // 2:t // 2 + 4, :].reshape(tb * 4, 128)
            mm = jnp.dot(lhs, w2_ref[di], preferred_element_type=f32)
            part = mm if part is None else part + mm         # (TB*4, 256)
        acc2.append(part)
    c2 = jnp.maximum(acc2[0], acc2[1])                       # pool over rows
    c2 = jnp.maximum(c2[:, :128], c2[:, 128:])               # pool over width
    lane = lax.broadcasted_iota(jnp.int32, c2.shape, 1)
    a2 = jnp.maximum(c2 + b2_ref[...], 0.0)
    a2 = jnp.where(lane < 80, a2, 0.0).astype(cdt)           # lanes = j2p*20 + cout
    a2 = a2.reshape(tb, 4, 128)

    # ---- fc1 -> relu -> (dropout: identity in eval) -> fc2 -> log_softmax ----
    hacc = None
    for r in range(4):                                       # one slab per pooled row
        mm = jnp.dot(a2[:, r, :], wf1_ref[r], preferred_element_type=f32)
        hacc = mm if hacc is None else hacc + mm
    h = jnp.maximum(hacc + bf1_ref[...], 0.0).astype(cdt)    # (TB, 128), 50 real lanes
    logits = jnp.dot(h, wf2_ref[...], preferred_element_type=f32) + bf2_ref[...]
    lane = lax.broadcasted_iota(jnp.int32, logits.shape, 1)
    logits = jnp.where(lane < n_classes, logits, -1e30)      # mask padded classes (f32)
    mx = jnp.max(logits, axis=1, keepdims=True)
    sh = logits - mx
    lse = jnp.log(jnp.sum(jnp.exp(sh), axis=1, keepdims=True))
    o_ref[...] = (sh - lse).astype(o_ref.dtype)


# ---------------------------------------------------------------------------
# One-time parameter re-layout (hoisted out of the forward pass)
# ---------------------------------------------------------------------------
def prepare_params(params, compute_dtype=jnp.bfloat16):
    cw1 = np.asarray(params["conv1_w"], np.float32)          # (10, 1, 5, 5)
    cb1 = np.asarray(params["conv1_b"], np.float32)
    cw2 = np.asarray(params["conv2_w"], np.float32)          # (20, 10, 5, 5)
    cb2 = np.asarray(params["conv2_b"], np.float32)
    fw1 = np.asarray(params["fc1_w"], np.float32)            # (50, 320)
    fb1 = np.asarray(params["fc1_b"], np.float32)
    fw2 = np.asarray(params["fc2_w"], np.float32)            # (10, 50)
    fb2 = np.asarray(params["fc2_b"], np.float32)

    # conv1 banded width-conv: out lane = 128*(j%2) + (j//2)*10 + c,  j in 0..23
    w1 = np.zeros((5, 32, 256), np.float32)
    for di in range(5):
        for j in range(24):
            for dj in range(5):
                for c in range(10):
                    w1[di, j + dj, 128 * (j % 2) + (j // 2) * 10 + c] = cw1[c, 0, di, dj]
    b1 = np.zeros((1, 128), np.float32)
    for jp in range(12):
        b1[0, jp * 10:jp * 10 + 10] = cb1

    # conv2 banded: rows = a1 packed lane (jp*10 + cin); cols = 128*(j2%2) + (j2//2)*20 + cout
    w2 = np.zeros((5, 128, 256), np.float32)
    for di in range(5):
        for j2 in range(8):
            for dj in range(5):
                for cin in range(10):
                    for cout in range(20):
                        w2[di, (j2 + dj) * 10 + cin,
                           128 * (j2 % 2) + (j2 // 2) * 20 + cout] = cw2[cout, cin, di, dj]
    b2 = np.zeros((1, 128), np.float32)
    for j2p in range(4):
        b2[0, j2p * 20:j2p * 20 + 20] = cb2

    # fc1: a2 packed lane = j2p*20 + cout at pooled row r; torch flat idx = cout*16 + r*4 + j2p
    wf1 = np.zeros((4, 128, 128), np.float32)
    for r in range(4):
        for j2p in range(4):
            for cout in range(20):
                wf1[r, j2p * 20 + cout, :50] = fw1[:, cout * 16 + r * 4 + j2p]
    bf1 = np.zeros((1, 128), np.float32)
    bf1[0, :50] = fb1
    wf2 = np.zeros((128, 128), np.float32)
    wf2[:50, :10] = fw2.T
    bf2 = np.zeros((1, 128), np.float32)
    bf2[0, :10] = fb2

    cd = compute_dtype
    return dict(
        w1=jnp.asarray(w1, cd), b1=jnp.asarray(b1, jnp.float32),
        w2=jnp.asarray(w2, cd), b2=jnp.asarray(b2, jnp.float32),
        wf1=jnp.asarray(wf1, cd), bf1=jnp.asarray(bf1, jnp.float32),
        wf2=jnp.asarray(wf2, cd), bf2=jnp.asarray(bf2, jnp.float32))


def init_params(key):
    ks = jax.random.split(key, 8)

    def w(k, shape, scale):
        return (scale * jax.random.normal(k, shape)).astype(jnp.float32)

    return dict(
        conv1_w=w(ks[0], (10, 1, 5, 5), 0.2),  conv1_b=w(ks[1], (10,), 0.1),
        conv2_w=w(ks[2], (20, 10, 5, 5), 0.1), conv2_b=w(ks[3], (20,), 0.1),
        fc1_w=w(ks[4], (50, 320), 0.05),       fc1_b=w(ks[5], (50,), 0.1),
        fc2_w=w(ks[6], (10, 50), 0.1),         fc2_b=w(ks[7], (10,), 0.1),
    )


# ---------------------------------------------------------------------------
# Forward pass
# ---------------------------------------------------------------------------
@functools.partial(jax.jit, static_argnames=("compute_dtype",))
def cnn_forward(x, prepped, compute_dtype=jnp.bfloat16):
    """x: (B, 1, 28, 28) NCHW float32 (PyTorch convention). prepped: prepare_params()."""
    B = x.shape[0]
    tb = _pick_batch_tile(B)
    Bp = _round_up(B, tb)
    grid = Bp // tb

    # Decompose input rows mod 4 so every in-kernel row access is a contiguous slice.
    # (tiny one-shot XLA shuffle of the raw 28x28 image; ~2 KB/image streamed)
    x2d = x[:, 0, :, :]                                       # (B, 28, 28)
    xp = jnp.pad(x2d, ((0, Bp - B), (0, 4), (0, 4)))          # (Bp, 32, 32)
    xr4 = xp.reshape(Bp, 8, 4, 32).transpose(0, 2, 1, 3)      # (Bp, 4, 8, 32): [b, r%4, r//4, j]
    xr4 = xr4.astype(compute_dtype)

    wbytes = sum(int(np.prod(v.shape)) * v.dtype.itemsize for v in prepped.values())
    cost = pl.CostEstimate(
        flops=int(Bp) * 5_000_000,
        transcendentals=int(Bp) * 130,
        bytes_accessed=int(xr4.size) * xr4.dtype.itemsize + int(Bp) * 128 * 4 + wbytes)

    out = pl.pallas_call(
        functools.partial(_cnn_fused_kernel, n_classes=10),
        out_shape=jax.ShapeDtypeStruct((Bp, 128), jnp.float32),
        grid=(grid,),
        in_specs=[
            pl.BlockSpec((tb, 4, 8, 32), lambda i: (i, 0, 0, 0)),   # streamed image tile
            pl.BlockSpec((5, 32, 256),   lambda i: (0, 0, 0)),      # resident weights
            pl.BlockSpec((1, 128),       lambda i: (0, 0)),
            pl.BlockSpec((5, 128, 256),  lambda i: (0, 0, 0)),
            pl.BlockSpec((1, 128),       lambda i: (0, 0)),
            pl.BlockSpec((4, 128, 128),  lambda i: (0, 0, 0)),
            pl.BlockSpec((1, 128),       lambda i: (0, 0)),
            pl.BlockSpec((128, 128),     lambda i: (0, 0)),
            pl.BlockSpec((1, 128),       lambda i: (0, 0)),
        ],
        out_specs=pl.BlockSpec((tb, 128), lambda i: (i, 0)),
        compiler_params=pltpu.CompilerParams(
            dimension_semantics=("parallel",),
            vmem_limit_bytes=32 * 1024 * 1024),
        cost_estimate=cost,
    )(xr4, prepped["w1"], prepped["b1"], prepped["w2"], prepped["b2"],
      prepped["wf1"], prepped["bf1"], prepped["wf2"], prepped["bf2"])
    return out[:B, :10]


# ---------------------------------------------------------------------------
# Pure-JAX reference (mirrors the PyTorch forward in eval mode)
# ---------------------------------------------------------------------------
def cnn_reference(x, params):
    hi = lax.Precision.HIGHEST
    dn = ("NCHW", "OIHW", "NCHW")
    c1 = lax.conv_general_dilated(x, params["conv1_w"], (1, 1), "VALID",
                                  dimension_numbers=dn, precision=hi)
    c1 = c1 + params["conv1_b"][None, :, None, None]
    a1 = jnp.maximum(lax.reduce_window(c1, -jnp.inf, lax.max,
                                       (1, 1, 2, 2), (1, 1, 2, 2), "VALID"), 0.0)
    c2 = lax.conv_general_dilated(a1, params["conv2_w"], (1, 1), "VALID",
                                  dimension_numbers=dn, precision=hi)
    c2 = c2 + params["conv2_b"][None, :, None, None]
    a2 = jnp.maximum(lax.reduce_window(c2, -jnp.inf, lax.max,
                                       (1, 1, 2, 2), (1, 1, 2, 2), "VALID"), 0.0)
    flat = a2.reshape(a2.shape[0], -1)
    h = jnp.maximum(jnp.dot(flat, params["fc1_w"].T, precision=hi) + params["fc1_b"], 0.0)
    logits = jnp.dot(h, params["fc2_w"].T, precision=hi) + params["fc2_b"]
    return jax.nn.log_softmax(logits, axis=1)


if __name__ == "__main__":
    key = jax.random.PRNGKey(0)
    kx, kp = jax.random.split(key)
    x = jax.random.normal(kx, (2, 1, 28, 28), dtype=jnp.float32)
    params = init_params(kp)
    ref = cnn_reference(x, params)

    # f32 path: tight-tolerance correctness gate vs the pure-JAX reference.
    prepped_f32 = prepare_params(params, jnp.float32)
    out = cnn_forward(x, prepped_f32, compute_dtype=jnp.float32)
    jax.block_until_ready(out)
    np.testing.assert_allclose(np.asarray(out), np.asarray(ref), atol=2e-3, rtol=2e-3)

    # bf16 default perf path: exercise and sanity-check.
    prepped_bf16 = prepare_params(params, jnp.bfloat16)
    out_bf16 = cnn_forward(x, prepped_bf16, compute_dtype=jnp.bfloat16)
    jax.block_until_ready(out_bf16)
    assert out_bf16.shape == ref.shape
    assert np.all(np.isfinite(np.asarray(out_bf16)))

    print("KERNEL_OK")
</pallas_src>

<mosaic_0001>
module attributes {stable_mosaic.version = 11 : i64} {
  func.func @_cnn_fused_kernel(%arg0: i32, %arg1: memref<8x4x8x32xf32, #tpu.memory_space<vmem>>, %arg2: memref<5x32x256xf32, #tpu.memory_space<vmem>>, %arg3: memref<1x128xf32, #tpu.memory_space<vmem>>, %arg4: memref<5x128x256xf32, #tpu.memory_space<vmem>>, %arg5: memref<1x128xf32, #tpu.memory_space<vmem>>, %arg6: memref<4x128x128xf32, #tpu.memory_space<vmem>>, %arg7: memref<1x128xf32, #tpu.memory_space<vmem>>, %arg8: memref<128x128xf32, #tpu.memory_space<vmem>>, %arg9: memref<1x128xf32, #tpu.memory_space<vmem>>, %arg10: memref<8x128xf32, #tpu.memory_space<vmem>>) attributes {dimension_semantics = [#tpu.dimension_semantics<parallel>], iteration_bounds = array<i64: 1>, scalar_prefetch = 0 : i64, scratch_operands = 0 : i64, tpu.core_type = #tpu.core_type<tc>, window_params = [{transform_indices = @transform_0, window_bounds = array<i64: 8, 4, 8, 32>}, {pipeline_mode = #tpu.pipeline_mode<synchronous>, transform_indices = @transform_1, window_bounds = array<i64: 5, 32, 256>}, {pipeline_mode = #tpu.pipeline_mode<synchronous>, transform_indices = @transform_2, window_bounds = array<i64: 1, 128>}, {pipeline_mode = #tpu.pipeline_mode<synchronous>, transform_indices = @transform_3, window_bounds = array<i64: 5, 128, 256>}, {pipeline_mode = #tpu.pipeline_mode<synchronous>, transform_indices = @transform_4, window_bounds = array<i64: 1, 128>}, {pipeline_mode = #tpu.pipeline_mode<synchronous>, transform_indices = @transform_5, window_bounds = array<i64: 4, 128, 128>}, {pipeline_mode = #tpu.pipeline_mode<synchronous>, transform_indices = @transform_6, window_bounds = array<i64: 1, 128>}, {pipeline_mode = #tpu.pipeline_mode<synchronous>, transform_indices = @transform_7, window_bounds = array<i64: 128, 128>}, {pipeline_mode = #tpu.pipeline_mode<synchronous>, transform_indices = @transform_8, window_bounds = array<i64: 1, 128>}, {transform_indices = @transform_9, window_bounds = array<i64: 8, 128>}]} {
    %c0 = arith.constant 0 : index
    %c0_0 = arith.constant 0 : index
    %c0_1 = arith.constant 0 : index
    %c0_2 = arith.constant 0 : index
    %0 = vector.load %arg1[%c0, %c0_0, %c0_1, %c0_2] : memref<8x4x8x32xf32, #tpu.memory_space<vmem>>, vector<8x4x8x32xf32>
    %1 = vector.extract_strided_slice %0 {offsets = [0, 0, 0, 0], sizes = [8, 1, 6, 32], strides = [1, 1, 1, 1]} : vector<8x4x8x32xf32> to vector<8x1x6x32xf32>
    %2 = vector.shape_cast %1 : vector<8x1x6x32xf32> to vector<8x6x32xf32>
    %3 = vector.shape_cast %2 : vector<8x6x32xf32> to vector<48x32xf32>
    %c0_3 = arith.constant 0 : index
    %c0_4 = arith.constant 0 : index
    %c0_5 = arith.constant 0 : index
    %4 = vector.load %arg2[%c0_3, %c0_4, %c0_5] : memref<5x32x256xf32, #tpu.memory_space<vmem>>, vector<1x32x256xf32>
    %5 = vector.shape_cast %4 : vector<1x32x256xf32> to vector<32x256xf32>
    %cst = arith.constant dense<0.000000e+00> : vector<48x256xf32>
    %6 = tpu.matmul %3, %5, %cst {dimension_numbers = #tpu.dot_dimension_numbers<[1], [0], [0], [1], [0, 0, 1, 1], [], []>} : vector<48x32xf32>, vector<32x256xf32>, vector<48x256xf32> -> vector<48x256xf32>
    %7 = vector.extract_strided_slice %0 {offsets = [0, 1, 0, 0], sizes = [8, 1, 6, 32], strides = [1, 1, 1, 1]} : vector<8x4x8x32xf32> to vector<8x1x6x32xf32>
    %8 = vector.shape_cast %7 : vector<8x1x6x32xf32> to vector<8x6x32xf32>
    %9 = vector.shape_cast %8 : vector<8x6x32xf32> to vector<48x32xf32>
    %c1 = arith.constant 1 : index
    %c0_6 = arith.constant 0 : index
    %c0_7 = arith.constant 0 : index
    %10 = vector.load %arg2[%c1, %c0_6, %c0_7] : memref<5x32x256xf32, #tpu.memory_space<vmem>>, vector<1x32x256xf32>
    %11 = vector.shape_cast %10 : vector<1x32x256xf32> to vector<32x256xf32>
    %cst_8 = arith.constant dense<0.000000e+00> : vector<48x256xf32>
    %12 = tpu.matmul %9, %11, %cst_8 {dimension_numbers = #tpu.dot_dimension_numbers<[1], [0], [0], [1], [0, 0, 1, 1], [], []>} : vector<48x32xf32>, vector<32x256xf32>, vector<48x256xf32> -> vector<48x256xf32>
    %13 = arith.addf %6, %12 : vector<48x256xf32>
    %14 = vector.extract_strided_slice %0 {offsets = [0, 2, 0, 0], sizes = [8, 1, 6, 32], strides = [1, 1, 1, 1]} : vector<8x4x8x32xf32> to vector<8x1x6x32xf32>
    %15 = vector.shape_cast %14 : vector<8x1x6x32xf32> to vector<8x6x32xf32>
    %16 = vector.shape_cast %15 : vector<8x6x32xf32> to vector<48x32xf32>
    %c2 = arith.constant 2 : index
    %c0_9 = arith.constant 0 : index
    %c0_10 = arith.constant 0 : index
    %17 = vector.load %arg2[%c2, %c0_9, %c0_10] : memref<5x32x256xf32, #tpu.memory_space<vmem>>, vector<1x32x256xf32>
    %18 = vector.shape_cast %17 : vector<1x32x256xf32> to vector<32x256xf32>
    %cst_11 = arith.constant dense<0.000000e+00> : vector<48x256xf32>
    %19 = tpu.matmul %16, %18, %cst_11 {dimension_numbers = #tpu.dot_dimension_numbers<[1], [0], [0], [1], [0, 0, 1, 1], [], []>} : vector<48x32xf32>, vector<32x256xf32>, vector<48x256xf32> -> vector<48x256xf32>
    %20 = arith.addf %13, %19 : vector<48x256xf32>
    %21 = vector.extract_strided_slice %0 {offsets = [0, 3, 0, 0], sizes = [8, 1, 6, 32], strides = [1, 1, 1, 1]} : vector<8x4x8x32xf32> to vector<8x1x6x32xf32>
    %22 = vector.shape_cast %21 : vector<8x1x6x32xf32> to vector<8x6x32xf32>
    %23 = vector.shape_cast %22 : vector<8x6x32xf32> to vector<48x32xf32>
    %c3 = arith.constant 3 : index
    %c0_12 = arith.constant 0 : index
    %c0_13 = arith.constant 0 : index
    %24 = vector.load %arg2[%c3, %c0_12, %c0_13] : memref<5x32x256xf32, #tpu.memory_space<vmem>>, vector<1x32x256xf32>
    %25 = vector.shape_cast %24 : vector<1x32x256xf32> to vector<32x256xf32>
    %cst_14 = arith.constant dense<0.000000e+00> : vector<48x256xf32>
    %26 = tpu.matmul %23, %25, %cst_14 {dimension_numbers = #tpu.dot_dimension_numbers<[1], [0], [0], [1], [0, 0, 1, 1], [], []>} : vector<48x32xf32>, vector<32x256xf32>, vector<48x256xf32> -> vector<48x256xf32>
    %27 = arith.addf %20, %26 : vector<48x256xf32>
    %28 = vector.extract_strided_slice %0 {offsets = [0, 0, 1, 0], sizes = [8, 1, 6, 32], strides = [1, 1, 1, 1]} : vector<8x4x8x32xf32> to vector<8x1x6x32xf32>
    %29 = vector.shape_cast %28 : vector<8x1x6x32xf32> to vector<8x6x32xf32>
    %30 = vector.shape_cast %29 : vector<8x6x32xf32> to vector<48x32xf32>
    %c4 = arith.constant 4 : index
    %c0_15 = arith.constant 0 : index
    %c0_16 = arith.constant 0 : index
    %31 = vector.load %arg2[%c4, %c0_15, %c0_16] : memref<5x32x256xf32, #tpu.memory_space<vmem>>, vector<1x32x256xf32>
    %32 = vector.shape_cast %31 : vector<1x32x256xf32> to vector<32x256xf32>
    %cst_17 = arith.constant dense<0.000000e+00> : vector<48x256xf32>
    %33 = tpu.matmul %30, %32, %cst_17 {dimension_numbers = #tpu.dot_dimension_numbers<[1], [0], [0], [1], [0, 0, 1, 1], [], []>} : vector<48x32xf32>, vector<32x256xf32>, vector<48x256xf32> -> vector<48x256xf32>
    %34 = arith.addf %27, %33 : vector<48x256xf32>
    %35 = vector.extract_strided_slice %0 {offsets = [0, 1, 0, 0], sizes = [8, 1, 6, 32], strides = [1, 1, 1, 1]} : vector<8x4x8x32xf32> to vector<8x1x6x32xf32>
    %36 = vector.shape_cast %35 : vector<8x1x6x32xf32> to vector<8x6x32xf32>
    %37 = vector.shape_cast %36 : vector<8x6x32xf32> to vector<48x32xf32>
    %c0_18 = arith.constant 0 : index
    %c0_19 = arith.constant 0 : index
    %c0_20 = arith.constant 0 : index
    %38 = vector.load %arg2[%c0_18, %c0_19, %c0_20] : memref<5x32x256xf32, #tpu.memory_space<vmem>>, vector<1x32x256xf32>
    %39 = vector.shape_cast %38 : vector<1x32x256xf32> to vector<32x256xf32>
    %cst_21 = arith.constant dense<0.000000e+00> : vector<48x256xf32>
    %40 = tpu.matmul %37, %39, %cst_21 {dimension_numbers = #tpu.dot_dimension_numbers<[1], [0], [0], [1], [0, 0, 1, 1], [], []>} : vector<48x32xf32>, vector<32x256xf32>, vector<48x256xf32> -> vector<48x256xf32>
    %41 = vector.extract_strided_slice %0 {offsets = [0, 2, 0, 0], sizes = [8, 1, 6, 32], strides = [1, 1, 1, 1]} : vector<8x4x8x32xf32> to vector<8x1x6x32xf32>
    %42 = vector.shape_cast %41 : vector<8x1x6x32xf32> to vector<8x6x32xf32>
    %43 = vector.shape_cast %42 : vector<8x6x32xf32> to vector<48x32xf32>
    %c1_22 = arith.constant 1 : index
    %c0_23 = arith.constant 0 : index
    %c0_24 = arith.constant 0 : index
    %44 = vector.load %arg2[%c1_22, %c0_23, %c0_24] : memref<5x32x256xf32, #tpu.memory_space<vmem>>, vector<1x32x256xf32>
    %45 = vector.shape_cast %44 : vector<1x32x256xf32> to vector<32x256xf32>
    %cst_25 = arith.constant dense<0.000000e+00> : vector<48x256xf32>
    %46 = tpu.matmul %43, %45, %cst_25 {dimension_numbers = #tpu.dot_dimension_numbers<[1], [0], [0], [1], [0, 0, 1, 1], [], []>} : vector<48x32xf32>, vector<32x256xf32>, vector<48x256xf32> -> vector<48x256xf32>
    %47 = arith.addf %40, %46 : vector<48x256xf32>
    %48 = vector.extract_strided_slice %0 {offsets = [0, 3, 0, 0], sizes = [8, 1, 6, 32], strides = [1, 1, 1, 1]} : vector<8x4x8x32xf32> to vector<8x1x6x32xf32>
    %49 = vector.shape_cast %48 : vector<8x1x6x32xf32> to vector<8x6x32xf32>
    %50 = vector.shape_cast %49 : vector<8x6x32xf32> to vector<48x32xf32>
    %c2_26 = arith.constant 2 : index
    %c0_27 = arith.constant 0 : index
    %c0_28 = arith.constant 0 : index
    %51 = vector.load %arg2[%c2_26, %c0_27, %c0_28] : memref<5x32x256xf32, #tpu.memory_space<vmem>>, vector<1x32x256xf32>
    %52 = vector.shape_cast %51 : vector<1x32x256xf32> to vector<32x256xf32>
    %cst_29 = arith.constant dense<0.000000e+00> : vector<48x256xf32>
    %53 = tpu.matmul %50, %52, %cst_29 {dimension_numbers = #tpu.dot_dimension_numbers<[1], [0], [0], [1], [0, 0, 1, 1], [], []>} : vector<48x32xf32>, vector<32x256xf32>, vector<48x256xf32> -> vector<48x256xf32>
    %54 = arith.addf %47, %53 : vector<48x256xf32>
    %55 = vector.extract_strided_slice %0 {offsets = [0, 0, 1, 0], sizes = [8, 1, 6, 32], strides = [1, 1, 1, 1]} : vector<8x4x8x32xf32> to vector<8x1x6x32xf32>
    %56 = vector.shape_cast %55 : vector<8x1x6x32xf32> to vector<8x6x32xf32>
    %57 = vector.shape_cast %56 : vector<8x6x32xf32> to vector<48x32xf32>
    %c3_30 = arith.constant 3 : index
    %c0_31 = arith.constant 0 : index
    %c0_32 = arith.constant 0 : index
    %58 = vector.load %arg2[%c3_30, %c0_31, %c0_32] : memref<5x32x256xf32, #tpu.memory_space<vmem>>, vector<1x32x256xf32>
    %59 = vector.shape_cast %58 : vector<1x32x256xf32> to vector<32x256xf32>
    %cst_33 = arith.constant dense<0.000000e+00> : vector<48x256xf32>
    %60 = tpu.matmul %57, %59, %cst_33 {dimension_numbers = #tpu.dot_dimension_numbers<[1], [0], [0], [1], [0, 0, 1, 1], [], []>} : vector<48x32xf32>, vector<32x256xf32>, vector<48x256xf32> -> vector<48x256xf32>
    %61 = arith.addf %54, %60 : vector<48x256xf32>
    %62 = vector.extract_strided_slice %0 {offsets = [0, 1, 1, 0], sizes = [8, 1, 6, 32], strides = [1, 1, 1, 1]} : vector<8x4x8x32xf32> to vector<8x1x6x32xf32>
    %63 = vector.shape_cast %62 : vector<8x1x6x32xf32> to vector<8x6x32xf32>
    %64 = vector.shape_cast %63 : vector<8x6x32xf32> to vector<48x32xf32>
    %c4_34 = arith.constant 4 : index
    %c0_35 = arith.constant 0 : index
    %c0_36 = arith.constant 0 : index
    %65 = vector.load %arg2[%c4_34, %c0_35, %c0_36] : memref<5x32x256xf32, #tpu.memory_space<vmem>>, vector<1x32x256xf32>
    %66 = vector.shape_cast %65 : vector<1x32x256xf32> to vector<32x256xf32>
    %cst_37 = arith.constant dense<0.000000e+00> : vector<48x256xf32>
    %67 = tpu.matmul %64, %66, %cst_37 {dimension_numbers = #tpu.dot_dimension_numbers<[1], [0], [0], [1], [0, 0, 1, 1], [], []>} : vector<48x32xf32>, vector<32x256xf32>, vector<48x256xf32> -> vector<48x256xf32>
    %68 = arith.addf %61, %67 : vector<48x256xf32>
    %69 = arith.maximumf %34, %68 : vector<48x256xf32>
    %70 = vector.extract_strided_slice %69 {offsets = [0, 0], sizes = [48, 128], strides = [1, 1]} : vector<48x256xf32> to vector<48x128xf32>
    %71 = vector.extract_strided_slice %69 {offsets = [0, 128], sizes = [48, 128], strides = [1, 1]} : vector<48x256xf32> to vector<48x128xf32>
    %72 = arith.maximumf %70, %71 : vector<48x128xf32>
    %73 = tpu.iota {dimensions = array<i32: 1>} : vector<48x128xi32>
    %c0_38 = arith.constant 0 : index
    %c0_39 = arith.constant 0 : index
    %74 = vector.load %arg3[%c0_38, %c0_39] : memref<1x128xf32, #tpu.memory_space<vmem>>, vector<1x128xf32>
    %75 = vector.broadcast %74 : vector<1x128xf32> to vector<48x128xf32>
    %76 = arith.addf %72, %75 : vector<48x128xf32>
    %cst_40 = arith.constant 0.000000e+00 : f32
    %77 = vector.broadcast %cst_40 : f32 to vector<48x128xf32>
    %78 = arith.maximumf %76, %77 : vector<48x128xf32>
    %c120_i32 = arith.constant 120 : i32
    %79 = vector.broadcast %c120_i32 : i32 to vector<48x128xi32>
    %80 = arith.cmpi slt, %73, %79 : vector<48x128xi32>
    %cst_41 = arith.constant 0.000000e+00 : f32
    %81 = vector.broadcast %cst_41 : f32 to vector<48x128xf32>
    %82 = arith.select %80, %78, %81 : vector<48x128xi1>, vector<48x128xf32>
    %83 = vector.shape_cast %82 : vector<48x128xf32> to vector<8x6x128xf32>
    %84 = vector.extract_strided_slice %0 {offsets = [0, 2, 0, 0], sizes = [8, 1, 6, 32], strides = [1, 1, 1, 1]} : vector<8x4x8x32xf32> to vector<8x1x6x32xf32>
    %85 = vector.shape_cast %84 : vector<8x1x6x32xf32> to vector<8x6x32xf32>
    %86 = vector.shape_cast %85 : vector<8x6x32xf32> to vector<48x32xf32>
    %c0_42 = arith.constant 0 : index
    %c0_43 = arith.constant 0 : index
    %c0_44 = arith.constant 0 : index
    %87 = vector.load %arg2[%c0_42, %c0_43, %c0_44] : memref<5x32x256xf32, #tpu.memory_space<vmem>>, vector<1x32x256xf32>
    %88 = vector.shape_cast %87 : vector<1x32x256xf32> to vector<32x256xf32>
    %cst_45 = arith.constant dense<0.000000e+00> : vector<48x256xf32>
    %89 = tpu.matmul %86, %88, %cst_45 {dimension_numbers = #tpu.dot_dimension_numbers<[1], [0], [0], [1], [0, 0, 1, 1], [], []>} : vector<48x32xf32>, vector<32x256xf32>, vector<48x256xf32> -> vector<48x256xf32>
    %90 = vector.extract_strided_slice %0 {offsets = [0, 3, 0, 0], sizes = [8, 1, 6, 32], strides = [1, 1, 1, 1]} : vector<8x4x8x32xf32> to vector<8x1x6x32xf32>
    %91 = vector.shape_cast %90 : vector<8x1x6x32xf32> to vector<8x6x32xf32>
    %92 = vector.shape_cast %91 : vector<8x6x32xf32> to vector<48x32xf32>
    %c1_46 = arith.constant 1 : index
    %c0_47 = arith.constant 0 : index
    %c0_48 = arith.constant 0 : index
    %93 = vector.load %arg2[%c1_46, %c0_47, %c0_48] : memref<5x32x256xf32, #tpu.memory_space<vmem>>, vector<1x32x256xf32>
    %94 = vector.shape_cast %93 : vector<1x32x256xf32> to vector<32x256xf32>
    %cst_49 = arith.constant dense<0.000000e+00> : vector<48x256xf32>
    %95 = tpu.matmul %92, %94, %cst_49 {dimension_numbers = #tpu.dot_dimension_numbers<[1], [0], [0], [1], [0, 0, 1, 1], [], []>} : vector<48x32xf32>, vector<32x256xf32>, vector<48x256xf32> -> vector<48x256xf32>
    %96 = arith.addf %89, %95 : vector<48x256xf32>
    %97 = vector.extract_strided_slice %0 {offsets = [0, 0, 1, 0], sizes = [8, 1, 6, 32], strides = [1, 1, 1, 1]} : vector<8x4x8x32xf32> to vector<8x1x6x32xf32>
    %98 = vector.shape_cast %97 : vector<8x1x6x32xf32> to vector<8x6x32xf32>
    %99 = vector.shape_cast %98 : vector<8x6x32xf32> to vector<48x32xf32>
    %c2_50 = arith.constant 2 : index
    %c0_51 = arith.constant 0 : index
    %c0_52 = arith.constant 0 : index
    %100 = vector.load %arg2[%c2_50, %c0_51, %c0_52] : memref<5x32x256xf32, #tpu.memory_space<vmem>>, vector<1x32x256xf32>
    %101 = vector.shape_cast %100 : vector<1x32x256xf32> to vector<32x256xf32>
    %cst_53 = arith.constant dense<0.000000e+00> : vector<48x256xf32>
    %102 = tpu.matmul %99, %101, %cst_53 {dimension_numbers = #tpu.dot_dimension_numbers<[1], [0], [0], [1], [0, 0, 1, 1], [], []>} : vector<48x32xf32>, vector<32x256xf32>, vector<48x256xf32> -> vector<48x256xf32>
    %103 = arith.addf %96, %102 : vector<48x256xf32>
    %104 = vector.extract_strided_slice %0 {offsets = [0, 1, 1, 0], sizes = [8, 1, 6, 32], strides = [1, 1, 1, 1]} : vector<8x4x8x32xf32> to vector<8x1x6x32xf32>
    %105 = vector.shape_cast %104 : vector<8x1x6x32xf32> to vector<8x6x32xf32>
    %106 = vector.shape_cast %105 : vector<8x6x32xf32> to vector<48x32xf32>
    %c3_54 = arith.constant 3 : index
    %c0_55 = arith.constant 0 : index
    %c0_56 = arith.constant 0 : index
    %107 = vector.load %arg2[%c3_54, %c0_55, %c0_56] : memref<5x32x256xf32, #tpu.memory_space<vmem>>, vector<1x32x256xf32>
    %108 = vector.shape_cast %107 : vector<1x32x256xf32> to vector<32x256xf32>
    %cst_57 = arith.constant dense<0.000000e+00> : vector<48x256xf32>
    %109 = tpu.matmul %106, %108, %cst_57 {dimension_numbers = #tpu.dot_dimension_numbers<[1], [0], [0], [1], [0, 0, 1, 1], [], []>} : vector<48x32xf32>, vector<32x256xf32>, vector<48x256xf32> -> vector<48x256xf32>
    %110 = arith.addf %103, %109 : vector<48x256xf32>
    %111 = vector.extract_strided_slice %0 {offsets = [0, 2, 1, 0], sizes = [8, 1, 6, 32], strides = [1, 1, 1, 1]} : vector<8x4x8x32xf32> to vector<8x1x6x32xf32>
    %112 = vector.shape_cast %111 : vector<8x1x6x32xf32> to vector<8x6x32xf32>
    %113 = vector.shape_cast %112 : vector<8x6x32xf32> to vector<48x32xf32>
    %c4_58 = arith.constant 4 : index
    %c0_59 = arith.constant 0 : index
    %c0_60 = arith.constant 0 : index
    %114 = vector.load %arg2[%c4_58, %c0_59, %c0_60] : memref<5x32x256xf32, #tpu.memory_space<vmem>>, vector<1x32x256xf32>
    %115 = vector.shape_cast %114 : vector<1x32x256xf32> to vector<32x256xf32>
    %cst_61 = arith.constant dense<0.000000e+00> : vector<48x256xf32>
    %116 = tpu.matmul %113, %115, %cst_61 {dimension_numbers = #tpu.dot_dimension_numbers<[1], [0], [0], [1], [0, 0, 1, 1], [], []>} : vector<48x32xf32>, vector<32x256xf32>, vector<48x256xf32> -> vector<48x256xf32>
    %117 = arith.addf %110, %116 : vector<48x256xf32>
    %118 = vector.extract_strided_slice %0 {offsets = [0, 3, 0, 0], sizes = [8, 1, 6, 32], strides = [1, 1, 1, 1]} : vector<8x4x8x32xf32> to vector<8x1x6x32xf32>
    %119 = vector.shape_cast %118 : vector<8x1x6x32xf32> to vector<8x6x32xf32>
    %120 = vector.shape_cast %119 : vector<8x6x32xf32> to vector<48x32xf32>
    %c0_62 = arith.constant 0 : index
    %c0_63 = arith.constant 0 : index
    %c0_64 = arith.constant 0 : index
    %121 = vector.load %arg2[%c0_62, %c0_63, %c0_64] : memref<5x32x256xf32, #tpu.memory_space<vmem>>, vector<1x32x256xf32>
    %122 = vector.shape_cast %121 : vector<1x32x256xf32> to vector<32x256xf32>
    %cst_65 = arith.constant dense<0.000000e+00> : vector<48x256xf32>
    %123 = tpu.matmul %120, %122, %cst_65 {dimension_numbers = #tpu.dot_dimension_numbers<[1], [0], [0], [1], [0, 0, 1, 1], [], []>} : vector<48x32xf32>, vector<32x256xf32>, vector<48x256xf32> -> vector<48x256xf32>
    %124 = vector.extract_strided_slice %0 {offsets = [0, 0, 1, 0], sizes = [8, 1, 6, 32], strides = [1, 1, 1, 1]} : vector<8x4x8x32xf32> to vector<8x1x6x32xf32>
    %125 = vector.shape_cast %124 : vector<8x1x6x32xf32> to vector<8x6x32xf32>
    %126 = vector.shape_cast %125 : vector<8x6x32xf32> to vector<48x32xf32>
    %c1_66 = arith.constant 1 : index
    %c0_67 = arith.constant 0 : index
    %c0_68 = arith.constant 0 : index
    %127 = vector.load %arg2[%c1_66, %c0_67, %c0_68] : memref<5x32x256xf32, #tpu.memory_space<vmem>>, vector<1x32x256xf32>
    %128 = vector.shape_cast %127 : vector<1x32x256xf32> to vector<32x256xf32>
    %cst_69 = arith.constant dense<0.000000e+00> : vector<48x256xf32>
    %129 = tpu.matmul %126, %128, %cst_69 {dimension_numbers = #tpu.dot_dimension_numbers<[1], [0], [0], [1], [0, 0, 1, 1], [], []>} : vector<48x32xf32>, vector<32x256xf32>, vector<48x256xf32> -> vector<48x256xf32>
    %130 = arith.addf %123, %129 : vector<48x256xf32>
    %131 = vector.extract_strided_slice %0 {offsets = [0, 1, 1, 0], sizes = [8, 1, 6, 32], strides = [1, 1, 1, 1]} : vector<8x4x8x32xf32> to vector<8x1x6x32xf32>
    %132 = vector.shape_cast %131 : vector<8x1x6x32xf32> to vector<8x6x32xf32>
    %133 = vector.shape_cast %132 : vector<8x6x32xf32> to vector<48x32xf32>
    %c2_70 = arith.constant 2 : index
    %c0_71 = arith.constant 0 : index
    %c0_72 = arith.constant 0 : index
    %134 = vector.load %arg2[%c2_70, %c0_71, %c0_72] : memref<5x32x256xf32, #tpu.memory_space<vmem>>, vector<1x32x256xf32>
    %135 = vector.shape_cast %134 : vector<1x32x256xf32> to vector<32x256xf32>
    %cst_73 = arith.constant dense<0.000000e+00> : vector<48x256xf32>
    %136 = tpu.matmul %133, %135, %cst_73 {dimension_numbers = #tpu.dot_dimension_numbers<[1], [0], [0], [1], [0, 0, 1, 1], [], []>} : vector<48x32xf32>, vector<32x256xf32>, vector<48x256xf32> -> vector<48x256xf32>
    %137 = arith.addf %130, %136 : vector<48x256xf32>
    %138 = vector.extract_strided_slice %0 {offsets = [0, 2, 1, 0], sizes = [8, 1, 6, 32], strides = [1, 1, 1, 1]} : vector<8x4x8x32xf32> to vector<8x1x6x32xf32>
    %139 = vector.shape_cast %138 : vector<8x1x6x32xf32> to vector<8x6x32xf32>
    %140 = vector.shape_cast %139 : vector<8x6x32xf32> to vector<48x32xf32>
    %c3_74 = arith.constant 3 : index
    %c0_75 = arith.constant 0 : index
    %c0_76 = arith.constant 0 : index
    %141 = vector.load %arg2[%c3_74, %c0_75, %c0_76] : memref<5x32x256xf32, #tpu.memory_space<vmem>>, vector<1x32x256xf32>
    %142 = vector.shape_cast %141 : vector<1x32x256xf32> to vector<32x256xf32>
    %cst_77 = arith.constant dense<0.000000e+00> : vector<48x256xf32>
    %143 = tpu.matmul %140, %142, %cst_77 {dimension_numbers = #tpu.dot_dimension_numbers<[1], [0], [0], [1], [0, 0, 1, 1], [], []>} : vector<48x32xf32>, vector<32x256xf32>, vector<48x256xf32> -> vector<48x256xf32>
    %144 = arith.addf %137, %143 : vector<48x256xf32>
    %145 = vector.extract_strided_slice %0 {offsets = [0, 3, 1, 0], sizes = [8, 1, 6, 32], strides = [1, 1, 1, 1]} : vector<8x4x8x32xf32> to vector<8x1x6x32xf32>
    %146 = vector.shape_cast %145 : vector<8x1x6x32xf32> to vector<8x6x32xf32>
    %147 = vector.shape_cast %146 : vector<8x6x32xf32> to vector<48x32xf32>
    %c4_78 = arith.constant 4 : index
    %c0_79 = arith.constant 0 : index
    %c0_80 = arith.constant 0 : index
    %148 = vector.load %arg2[%c4_78, %c0_79, %c0_80] : memref<5x32x256xf32, #tpu.memory_space<vmem>>, vector<1x32x256xf32>
    %149 = vector.shape_cast %148 : vector<1x32x256xf32> to vector<32x256xf32>
    %cst_81 = arith.constant dense<0.000000e+00> : vector<48x256xf32>
    %150 = tpu.matmul %147, %149, %cst_81 {dimension_numbers = #tpu.dot_dimension_numbers<[1], [0], [0], [1], [0, 0, 1, 1], [], []>} : vector<48x32xf32>, vector<32x256xf32>, vector<48x256xf32> -> vector<48x256xf32>
    %151 = arith.addf %144, %150 : vector<48x256xf32>
    %152 = arith.maximumf %117, %151 : vector<48x256xf32>
    %153 = vector.extract_strided_slice %152 {offsets = [0, 0], sizes = [48, 128], strides = [1, 1]} : vector<48x256xf32> to vector<48x128xf32>
    %154 = vector.extract_strided_slice %152 {offsets = [0, 128], sizes = [48, 128], strides = [1, 1]} : vector<48x256xf32> to vector<48x128xf32>
    %155 = arith.maximumf %153, %154 : vector<48x128xf32>
    %156 = tpu.iota {dimensions = array<i32: 1>} : vector<48x128xi32>
    %c0_82 = arith.constant 0 : index
    %c0_83 = arith.constant 0 : index
    %157 = vector.load %arg3[%c0_82, %c0_83] : memref<1x128xf32, #tpu.memory_space<vmem>>, vector<1x128xf32>
    %158 = vector.broadcast %157 : vector<1x128xf32> to vector<48x128xf32>
    %159 = arith.addf %155, %158 : vector<48x128xf32>
    %cst_84 = arith.constant 0.000000e+00 : f32
    %160 = vector.broadcast %cst_84 : f32 to vector<48x128xf32>
    %161 = arith.maximumf %159, %160 : vector<48x128xf32>
    %c120_i32_85 = arith.constant 120 : i32
    %162 = vector.broadcast %c120_i32_85 : i32 to vector<48x128xi32>
    %163 = arith.cmpi slt, %156, %162 : vector<48x128xi32>
    %cst_86 = arith.constant 0.000000e+00 : f32
    %164 = vector.broadcast %cst_86 : f32 to vector<48x128xf32>
    %165 = arith.select %163, %161, %164 : vector<48x128xi1>, vector<48x128xf32>
    %166 = vector.shape_cast %165 : vector<48x128xf32> to vector<8x6x128xf32>
    %167 = vector.extract_strided_slice %83 {offsets = [0, 0, 0], sizes = [8, 4, 128], strides = [1, 1, 1]} : vector<8x6x128xf32> to vector<8x4x128xf32>
    %168 = vector.shape_cast %167 : vector<8x4x128xf32> to vector<32x128xf32>
    %c0_87 = arith.constant 0 : index
    %c0_88 = arith.constant 0 : index
    %c0_89 = arith.constant 0 : index
    %169 = vector.load %arg4[%c0_87, %c0_88, %c0_89] : memref<5x128x256xf32, #tpu.memory_space<vmem>>, vector<1x128x256xf32>
    %170 = vector.shape_cast %169 : vector<1x128x256xf32> to vector<128x256xf32>
    %cst_90 = arith.constant dense<0.000000e+00> : vector<32x256xf32>
    %171 = tpu.matmul %168, %170, %cst_90 {dimension_numbers = #tpu.dot_dimension_numbers<[1], [0], [0], [1], [0, 0, 1, 1], [], []>} : vector<32x128xf32>, vector<128x256xf32>, vector<32x256xf32> -> vector<32x256xf32>
    %172 = vector.extract_strided_slice %166 {offsets = [0, 0, 0], sizes = [8, 4, 128], strides = [1, 1, 1]} : vector<8x6x128xf32> to vector<8x4x128xf32>
    %173 = vector.shape_cast %172 : vector<8x4x128xf32> to vector<32x128xf32>
    %c1_91 = arith.constant 1 : index
    %c0_92 = arith.constant 0 : index
    %c0_93 = arith.constant 0 : index
    %174 = vector.load %arg4[%c1_91, %c0_92, %c0_93] : memref<5x128x256xf32, #tpu.memory_space<vmem>>, vector<1x128x256xf32>
    %175 = vector.shape_cast %174 : vector<1x128x256xf32> to vector<128x256xf32>
    %cst_94 = arith.constant dense<0.000000e+00> : vector<32x256xf32>
    %176 = tpu.matmul %173, %175, %cst_94 {dimension_numbers = #tpu.dot_dimension_numbers<[1], [0], [0], [1], [0, 0, 1, 1], [], []>} : vector<32x128xf32>, vector<128x256xf32>, vector<32x256xf32> -> vector<32x256xf32>
    %177 = arith.addf %171, %176 : vector<32x256xf32>
    %178 = vector.extract_strided_slice %83 {offsets = [0, 1, 0], sizes = [8, 4, 128], strides = [1, 1, 1]} : vector<8x6x128xf32> to vector<8x4x128xf32>
    %179 = vector.shape_cast %178 : vector<8x4x128xf32> to vector<32x128xf32>
    %c2_95 = arith.constant 2 : index
    %c0_96 = arith.constant 0 : index
    %c0_97 = arith.constant 0 : index
    %180 = vector.load %arg4[%c2_95, %c0_96, %c0_97] : memref<5x128x256xf32, #tpu.memory_space<vmem>>, vector<1x128x256xf32>
    %181 = vector.shape_cast %180 : vector<1x128x256xf32> to vector<128x256xf32>
    %cst_98 = arith.constant dense<0.000000e+00> : vector<32x256xf32>
    %182 = tpu.matmul %179, %181, %cst_98 {dimension_numbers = #tpu.dot_dimension_numbers<[1], [0], [0], [1], [0, 0, 1, 1], [], []>} : vector<32x128xf32>, vector<128x256xf32>, vector<32x256xf32> -> vector<32x256xf32>
    %183 = arith.addf %177, %182 : vector<32x256xf32>
    %184 = vector.extract_strided_slice %166 {offsets = [0, 1, 0], sizes = [8, 4, 128], strides = [1, 1, 1]} : vector<8x6x128xf32> to vector<8x4x128xf32>
    %185 = vector.shape_cast %184 : vector<8x4x128xf32> to vector<32x128xf32>
    %c3_99 = arith.constant 3 : index
    %c0_100 = arith.constant 0 : index
    %c0_101 = arith.constant 0 : index
    %186 = vector.load %arg4[%c3_99, %c0_100, %c0_101] : memref<5x128x256xf32, #tpu.memory_space<vmem>>, vector<1x128x256xf32>
    %187 = vector.shape_cast %186 : vector<1x128x256xf32> to vector<128x256xf32>
    %cst_102 = arith.constant dense<0.000000e+00> : vector<32x256xf32>
    %188 = tpu.matmul %185, %187, %cst_102 {dimension_numbers = #tpu.dot_dimension_numbers<[1], [0], [0], [1], [0, 0, 1, 1], [], []>} : vector<32x128xf32>, vector<128x256xf32>, vector<32x256xf32> -> vector<32x256xf32>
    %189 = arith.addf %183, %188 : vector<32x256xf32>
    %190 = vector.extract_strided_slice %83 {offsets = [0, 2, 0], sizes = [8, 4, 128], strides = [1, 1, 1]} : vector<8x6x128xf32> to vector<8x4x128xf32>
    %191 = vector.shape_cast %190 : vector<8x4x128xf32> to vector<32x128xf32>
    %c4_103 = arith.constant 4 : index
    %c0_104 = arith.constant 0 : index
    %c0_105 = arith.constant 0 : index
    %192 = vector.load %arg4[%c4_103, %c0_104, %c0_105] : memref<5x128x256xf32, #tpu.memory_space<vmem>>, vector<1x128x256xf32>
    %193 = vector.shape_cast %192 : vector<1x128x256xf32> to vector<128x256xf32>
    %cst_106 = arith.constant dense<0.000000e+00> : vector<32x256xf32>
    %194 = tpu.matmul %191, %193, %cst_106 {dimension_numbers = #tpu.dot_dimension_numbers<[1], [0], [0], [1], [0, 0, 1, 1], [], []>} : vector<32x128xf32>, vector<128x256xf32>, vector<32x256xf32> -> vector<32x256xf32>
    %195 = arith.addf %189, %194 : vector<32x256xf32>
    %196 = vector.extract_strided_slice %166 {offsets = [0, 0, 0], sizes = [8, 4, 128], strides = [1, 1, 1]} : vector<8x6x128xf32> to vector<8x4x128xf32>
    %197 = vector.shape_cast %196 : vector<8x4x128xf32> to vector<32x128xf32>
    %c0_107 = arith.constant 0 : index
    %c0_108 = arith.constant 0 : index
    %c0_109 = arith.constant 0 : index
    %198 = vector.load %arg4[%c0_107, %c0_108, %c0_109] : memref<5x128x256xf32, #tpu.memory_space<vmem>>, vector<1x128x256xf32>
    %199 = vector.shape_cast %198 : vector<1x128x256xf32> to vector<128x256xf32>
    %cst_110 = arith.constant dense<0.000000e+00> : vector<32x256xf32>
    %200 = tpu.matmul %197, %199, %cst_110 {dimension_numbers = #tpu.dot_dimension_numbers<[1], [0], [0], [1], [0, 0, 1, 1], [], []>} : vector<32x128xf32>, vector<128x256xf32>, vector<32x256xf32> -> vector<32x256xf32>
    %201 = vector.extract_strided_slice %83 {offsets = [0, 1, 0], sizes = [8, 4, 128], strides = [1, 1, 1]} : vector<8x6x128xf32> to vector<8x4x128xf32>
    %202 = vector.shape_cast %201 : vector<8x4x128xf32> to vector<32x128xf32>
    %c1_111 = arith.constant 1 : index
    %c0_112 = arith.constant 0 : index
    %c0_113 = arith.constant 0 : index
    %203 = vector.load %arg4[%c1_111, %c0_112, %c0_113] : memref<5x128x256xf32, #tpu.memory_space<vmem>>, vector<1x128x256xf32>
    %204 = vector.shape_cast %203 : vector<1x128x256xf32> to vector<128x256xf32>
    %cst_114 = arith.constant dense<0.000000e+00> : vector<32x256xf32>
    %205 = tpu.matmul %202, %204, %cst_114 {dimension_numbers = #tpu.dot_dimension_numbers<[1], [0], [0], [1], [0, 0, 1, 1], [], []>} : vector<32x128xf32>, vector<128x256xf32>, vector<32x256xf32> -> vector<32x256xf32>
    %206 = arith.addf %200, %205 : vector<32x256xf32>
    %207 = vector.extract_strided_slice %166 {offsets = [0, 1, 0], sizes = [8, 4, 128], strides = [1, 1, 1]} : vector<8x6x128xf32> to vector<8x4x128xf32>
    %208 = vector.shape_cast %207 : vector<8x4x128xf32> to vector<32x128xf32>
    %c2_115 = arith.constant 2 : index
    %c0_116 = arith.constant 0 : index
    %c0_117 = arith.constant 0 : index
    %209 = vector.load %arg4[%c2_115, %c0_116, %c0_117] : memref<5x128x256xf32, #tpu.memory_space<vmem>>, vector<1x128x256xf32>
    %210 = vector.shape_cast %209 : vector<1x128x256xf32> to vector<128x256xf32>
    %cst_118 = arith.constant dense<0.000000e+00> : vector<32x256xf32>
    %211 = tpu.matmul %208, %210, %cst_118 {dimension_numbers = #tpu.dot_dimension_numbers<[1], [0], [0], [1], [0, 0, 1, 1], [], []>} : vector<32x128xf32>, vector<128x256xf32>, vector<32x256xf32> -> vector<32x256xf32>
    %212 = arith.addf %206, %211 : vector<32x256xf32>
    %213 = vector.extract_strided_slice %83 {offsets = [0, 2, 0], sizes = [8, 4, 128], strides = [1, 1, 1]} : vector<8x6x128xf32> to vector<8x4x128xf32>
    %214 = vector.shape_cast %213 : vector<8x4x128xf32> to vector<32x128xf32>
    %c3_119 = arith.constant 3 : index
    %c0_120 = arith.constant 0 : index
    %c0_121 = arith.constant 0 : index
    %215 = vector.load %arg4[%c3_119, %c0_120, %c0_121] : memref<5x128x256xf32, #tpu.memory_space<vmem>>, vector<1x128x256xf32>
    %216 = vector.shape_cast %215 : vector<1x128x256xf32> to vector<128x256xf32>
    %cst_122 = arith.constant dense<0.000000e+00> : vector<32x256xf32>
    %217 = tpu.matmul %214, %216, %cst_122 {dimension_numbers = #tpu.dot_dimension_numbers<[1], [0], [0], [1], [0, 0, 1, 1], [], []>} : vector<32x128xf32>, vector<128x256xf32>, vector<32x256xf32> -> vector<32x256xf32>
    %218 = arith.addf %212, %217 : vector<32x256xf32>
    %219 = vector.extract_strided_slice %166 {offsets = [0, 2, 0], sizes = [8, 4, 128], strides = [1, 1, 1]} : vector<8x6x128xf32> to vector<8x4x128xf32>
    %220 = vector.shape_cast %219 : vector<8x4x128xf32> to vector<32x128xf32>
    %c4_123 = arith.constant 4 : index
    %c0_124 = arith.constant 0 : index
    %c0_125 = arith.constant 0 : index
    %221 = vector.load %arg4[%c4_123, %c0_124, %c0_125] : memref<5x128x256xf32, #tpu.memory_space<vmem>>, vector<1x128x256xf32>
    %222 = vector.shape_cast %221 : vector<1x128x256xf32> to vector<128x256xf32>
    %cst_126 = arith.constant dense<0.000000e+00> : vector<32x256xf32>
    %223 = tpu.matmul %220, %222, %cst_126 {dimension_numbers = #tpu.dot_dimension_numbers<[1], [0], [0], [1], [0, 0, 1, 1], [], []>} : vector<32x128xf32>, vector<128x256xf32>, vector<32x256xf32> -> vector<32x256xf32>
    %224 = arith.addf %218, %223 : vector<32x256xf32>
    %225 = arith.maximumf %195, %224 : vector<32x256xf32>
    %226 = vector.extract_strided_slice %225 {offsets = [0, 0], sizes = [32, 128], strides = [1, 1]} : vector<32x256xf32> to vector<32x128xf32>
    %227 = vector.extract_strided_slice %225 {offsets = [0, 128], sizes = [32, 128], strides = [1, 1]} : vector<32x256xf32> to vector<32x128xf32>
    %228 = arith.maximumf %226, %227 : vector<32x128xf32>
    %229 = tpu.iota {dimensions = array<i32: 1>} : vector<32x128xi32>
    %c0_127 = arith.constant 0 : index
    %c0_128 = arith.constant 0 : index
    %230 = vector.load %arg5[%c0_127, %c0_128] : memref<1x128xf32, #tpu.memory_space<vmem>>, vector<1x128xf32>
    %231 = vector.broadcast %230 : vector<1x128xf32> to vector<32x128xf32>
    %232 = arith.addf %228, %231 : vector<32x128xf32>
    %cst_129 = arith.constant 0.000000e+00 : f32
    %233 = vector.broadcast %cst_129 : f32 to vector<32x128xf32>
    %234 = arith.maximumf %232, %233 : vector<32x128xf32>
    %c80_i32 = arith.constant 80 : i32
    %235 = vector.broadcast %c80_i32 : i32 to vector<32x128xi32>
    %236 = arith.cmpi slt, %229, %235 : vector<32x128xi32>
    %cst_130 = arith.constant 0.000000e+00 : f32
    %237 = vector.broadcast %cst_130 : f32 to vector<32x128xf32>
    %238 = arith.select %236, %234, %237 : vector<32x128xi1>, vector<32x128xf32>
    %239 = vector.shape_cast %238 : vector<32x128xf32> to vector<8x4x128xf32>
    %240 = vector.extract_strided_slice %239 {offsets = [0, 0, 0], sizes = [8, 1, 128], strides = [1, 1, 1]} : vector<8x4x128xf32> to vector<8x1x128xf32>
    %241 = vector.shape_cast %240 : vector<8x1x128xf32> to vector<8x128xf32>
    %c0_131 = arith.constant 0 : index
    %c0_132 = arith.constant 0 : index
    %c0_133 = arith.constant 0 : index
    %242 = vector.load %arg6[%c0_131, %c0_132, %c0_133] : memref<4x128x128xf32, #tpu.memory_space<vmem>>, vector<1x128x128xf32>
    %243 = vector.shape_cast %242 : vector<1x128x128xf32> to vector<128x128xf32>
    %cst_134 = arith.constant dense<0.000000e+00> : vector<8x128xf32>
    %244 = tpu.matmul %241, %243, %cst_134 {dimension_numbers = #tpu.dot_dimension_numbers<[1], [0], [0], [1], [0, 0, 1, 1], [], []>} : vector<8x128xf32>, vector<128x128xf32>, vector<8x128xf32> -> vector<8x128xf32>
    %245 = vector.extract_strided_slice %239 {offsets = [0, 1, 0], sizes = [8, 1, 128], strides = [1, 1, 1]} : vector<8x4x128xf32> to vector<8x1x128xf32>
    %246 = vector.shape_cast %245 : vector<8x1x128xf32> to vector<8x128xf32>
    %c1_135 = arith.constant 1 : index
    %c0_136 = arith.constant 0 : index
    %c0_137 = arith.constant 0 : index
    %247 = vector.load %arg6[%c1_135, %c0_136, %c0_137] : memref<4x128x128xf32, #tpu.memory_space<vmem>>, vector<1x128x128xf32>
    %248 = vector.shape_cast %247 : vector<1x128x128xf32> to vector<128x128xf32>
    %cst_138 = arith.constant dense<0.000000e+00> : vector<8x128xf32>
    %249 = tpu.matmul %246, %248, %cst_138 {dimension_numbers = #tpu.dot_dimension_numbers<[1], [0], [0], [1], [0, 0, 1, 1], [], []>} : vector<8x128xf32>, vector<128x128xf32>, vector<8x128xf32> -> vector<8x128xf32>
    %250 = arith.addf %244, %249 : vector<8x128xf32>
    %251 = vector.extract_strided_slice %239 {offsets = [0, 2, 0], sizes = [8, 1, 128], strides = [1, 1, 1]} : vector<8x4x128xf32> to vector<8x1x128xf32>
    %252 = vector.shape_cast %251 : vector<8x1x128xf32> to vector<8x128xf32>
    %c2_139 = arith.constant 2 : index
    %c0_140 = arith.constant 0 : index
    %c0_141 = arith.constant 0 : index
    %253 = vector.load %arg6[%c2_139, %c0_140, %c0_141] : memref<4x128x128xf32, #tpu.memory_space<vmem>>, vector<1x128x128xf32>
    %254 = vector.shape_cast %253 : vector<1x128x128xf32> to vector<128x128xf32>
    %cst_142 = arith.constant dense<0.000000e+00> : vector<8x128xf32>
    %255 = tpu.matmul %252, %254, %cst_142 {dimension_numbers = #tpu.dot_dimension_numbers<[1], [0], [0], [1], [0, 0, 1, 1], [], []>} : vector<8x128xf32>, vector<128x128xf32>, vector<8x128xf32> -> vector<8x128xf32>
    %256 = arith.addf %250, %255 : vector<8x128xf32>
    %257 = vector.extract_strided_slice %239 {offsets = [0, 3, 0], sizes = [8, 1, 128], strides = [1, 1, 1]} : vector<8x4x128xf32> to vector<8x1x128xf32>
    %258 = vector.shape_cast %257 : vector<8x1x128xf32> to vector<8x128xf32>
    %c3_143 = arith.constant 3 : index
    %c0_144 = arith.constant 0 : index
    %c0_145 = arith.constant 0 : index
    %259 = vector.load %arg6[%c3_143, %c0_144, %c0_145] : memref<4x128x128xf32, #tpu.memory_space<vmem>>, vector<1x128x128xf32>
    %260 = vector.shape_cast %259 : vector<1x128x128xf32> to vector<128x128xf32>
    %cst_146 = arith.constant dense<0.000000e+00> : vector<8x128xf32>
    %261 = tpu.matmul %258, %260, %cst_146 {dimension_numbers = #tpu.dot_dimension_numbers<[1], [0], [0], [1], [0, 0, 1, 1], [], []>} : vector<8x128xf32>, vector<128x128xf32>, vector<8x128xf32> -> vector<8x128xf32>
    %262 = arith.addf %256, %261 : vector<8x128xf32>
    %c0_147 = arith.constant 0 : index
    %c0_148 = arith.constant 0 : index
    %263 = vector.load %arg7[%c0_147, %c0_148] : memref<1x128xf32, #tpu.memory_space<vmem>>, vector<1x128xf32>
    %264 = vector.broadcast %263 : vector<1x128xf32> to vector<8x128xf32>
    %265 = arith.addf %262, %264 : vector<8x128xf32>
    %cst_149 = arith.constant 0.000000e+00 : f32
    %266 = vector.broadcast %cst_149 : f32 to vector<8x128xf32>
    %267 = arith.maximumf %265, %266 : vector<8x128xf32>
    %c0_150 = arith.constant 0 : index
    %c0_151 = arith.constant 0 : index
    %268 = vector.load %arg8[%c0_150, %c0_151] : memref<128x128xf32, #tpu.memory_space<vmem>>, vector<128x128xf32>
    %cst_152 = arith.constant dense<0.000000e+00> : vector<8x128xf32>
    %269 = tpu.matmul %267, %268, %cst_152 {dimension_numbers = #tpu.dot_dimension_numbers<[1], [0], [0], [1], [0, 0, 1, 1], [], []>} : vector<8x128xf32>, vector<128x128xf32>, vector<8x128xf32> -> vector<8x128xf32>
    %c0_153 = arith.constant 0 : index
    %c0_154 = arith.constant 0 : index
    %270 = vector.load %arg9[%c0_153, %c0_154] : memref<1x128xf32, #tpu.memory_space<vmem>>, vector<1x128xf32>
    %271 = vector.broadcast %270 : vector<1x128xf32> to vector<8x128xf32>
    %272 = arith.addf %269, %271 : vector<8x128xf32>
    %273 = tpu.iota {dimensions = array<i32: 1>} : vector<8x128xi32>
    %c10_i32 = arith.constant 10 : i32
    %274 = vector.broadcast %c10_i32 : i32 to vector<8x128xi32>
    %275 = arith.cmpi slt, %273, %274 : vector<8x128xi32>
    %cst_155 = arith.constant -1.000000e+30 : f32
    %276 = vector.broadcast %cst_155 : f32 to vector<8x128xf32>
    %277 = arith.select %275, %272, %276 : vector<8x128xi1>, vector<8x128xf32>
    %cst_156 = arith.constant dense<0xFF800000> : vector<8xf32>
    %278 = vector.multi_reduction <maximumf>, %277, %cst_156 [1] : vector<8x128xf32> to vector<8xf32>
    %279 = vector.shape_cast %278 : vector<8xf32> to vector<8x1xf32>
    %280 = vector.broadcast %279 : vector<8x1xf32> to vector<8x128xf32>
    %281 = arith.subf %277, %280 : vector<8x128xf32>
    %282 = math.exp %281 : vector<8x128xf32>
    %cst_157 = arith.constant dense<0.000000e+00> : vector<8xf32>
    %283 = vector.multi_reduction <add>, %282, %cst_157 [1] : vector<8x128xf32> to vector<8xf32>
    %284 = vector.shape_cast %283 : vector<8xf32> to vector<8x1xf32>
    %285 = math.log %284 : vector<8x1xf32>
    %286 = vector.broadcast %285 : vector<8x1xf32> to vector<8x128xf32>
    %287 = arith.subf %281, %286 : vector<8x128xf32>
    %c0_158 = arith.constant 0 : index
    %c0_159 = arith.constant 0 : index
    %288 = vector.load %arg10[%c0_158, %c0_159] : memref<8x128xf32, #tpu.memory_space<vmem>>, vector<8x128xf32>
    tpu.vector_store %arg10[%c0_158, %c0_159], %287 {strides = array<i32>} : memref<8x128xf32, #tpu.memory_space<vmem>>, vector<8x128xf32>,
    return
  }
  func.func @transform_0(%arg0: i32) -> (i32, i32, i32, i32) {
    %c0_i32 = arith.constant 0 : i32
    %c0_i32_0 = arith.constant 0 : i32
    %c0_i32_1 = arith.constant 0 : i32
    %c0_i32_2 = arith.constant 0 : i32
    return %arg0, %c0_i32, %c0_i32_0, %c0_i32_1 : i32, i32, i32, i32
  }
  func.func @transform_1(%arg0: i32) -> (i32, i32, i32) {
    %c0_i32 = arith.constant 0 : i32
    %c0_i32_0 = arith.constant 0 : i32
    %c0_i32_1 = arith.constant 0 : i32
    %c0_i32_2 = arith.constant 0 : i32
    return %c0_i32, %c0_i32_0, %c0_i32_1 : i32, i32, i32
  }
  func.func @transform_2(%arg0: i32) -> (i32, i32) {
    %c0_i32 = arith.constant 0 : i32
    %c0_i32_0 = arith.constant 0 : i32
    %c0_i32_1 = arith.constant 0 : i32
    return %c0_i32, %c0_i32_0 : i32, i32
  }
  func.func @transform_3(%arg0: i32) -> (i32, i32, i32) {
    %c0_i32 = arith.constant 0 : i32
    %c0_i32_0 = arith.constant 0 : i32
    %c0_i32_1 = arith.constant 0 : i32
    %c0_i32_2 = arith.constant 0 : i32
    return %c0_i32, %c0_i32_0, %c0_i32_1 : i32, i32, i32
  }
  func.func @transform_4(%arg0: i32) -> (i32, i32) {
    %c0_i32 = arith.constant 0 : i32
    %c0_i32_0 = arith.constant 0 : i32
    %c0_i32_1 = arith.constant 0 : i32
    return %c0_i32, %c0_i32_0 : i32, i32
  }
  func.func @transform_5(%arg0: i32) -> (i32, i32, i32) {
    %c0_i32 = arith.constant 0 : i32
    %c0_i32_0 = arith.constant 0 : i32
    %c0_i32_1 = arith.constant 0 : i32
    %c0_i32_2 = arith.constant 0 : i32
    return %c0_i32, %c0_i32_0, %c0_i32_1 : i32, i32, i32
  }
  func.func @transform_6(%arg0: i32) -> (i32, i32) {
    %c0_i32 = arith.constant 0 : i32
    %c0_i32_0 = arith.constant 0 : i32
    %c0_i32_1 = arith.constant 0 : i32
    return %c0_i32, %c0_i32_0 : i32, i32
  }
  func.func @transform_7(%arg0: i32) -> (i32, i32) {
    %c0_i32 = arith.constant 0 : i32
    %c0_i32_0 = arith.constant 0 : i32
    %c0_i32_1 = arith.constant 0 : i32
    return %c0_i32, %c0_i32_0 : i32, i32
  }
  func.func @transform_8(%arg0: i32) -> (i32, i32) {
    %c0_i32 = arith.constant 0 : i32
    %c0_i32_0 = arith.constant 0 : i32
    %c0_i32_1 = arith.constant 0 : i32
    return %c0_i32, %c0_i32_0 : i32, i32
  }
  func.func @transform_9(%arg0: i32) -> (i32, i32) {
    %c0_i32 = arith.constant 0 : i32
    %c0_i32_0 = arith.constant 0 : i32
    return %arg0, %c0_i32 : i32, i32
  }
}

</mosaic_0001>

<llo_original>
// kernel: cnn_forward.1
$region0: #{cnn_forward.1}
  #allocation0 [shape = 'u32[]', space=smem, size = 0x4, offset = 0x4, fixed_abs, tag = 'smem constant byte address 0x4 - core index']
  #allocation1 [shape = 'u32[72,128]{1,0:T(1,128)}', space=vmem, size = 0x9000, scoped, tag = 'internal scratch']
  %s0 = inlined_call_operand.vmem [shape: f32[8,4,8,32], index: 0, kind: input, shape index: {}]
  %s1 = inlined_call_operand.vmem [shape: f32[5,32,256], index: 1, kind: input, shape index: {}]
  %s2 = inlined_call_operand.vmem [shape: f32[1,128], index: 2, kind: input, shape index: {}]
  %s3 = inlined_call_operand.hbm [shape: f32[5,128,256], index: 3, kind: input, shape index: {}]
  %s4 = inlined_call_operand.vmem [shape: f32[1,128], index: 4, kind: input, shape index: {}]
  %s5 = inlined_call_operand.vmem [shape: f32[4,128,128], index: 5, kind: input, shape index: {}]
  %s6 = inlined_call_operand.vmem [shape: f32[1,128], index: 6, kind: input, shape index: {}]
  %s7 = inlined_call_operand.hbm [shape: f32[128,128], index: 7, kind: input, shape index: {}]
  %s8 = inlined_call_operand.vmem [shape: f32[1,128], index: 8, kind: input, shape index: {}]
  %s9 = inlined_call_operand.vmem [shape: f32[8,128], index: 9, kind: output, shape index: {}]
  %s10 = sld [smem:[#allocation0]]
  $region54: #{cnn_forward.1} parent=0
    _
  %s12 = ssub.s32 1, %s10
  %s13 = scalar_select 0, %s12, %s10
  $region1: #{cnn_forward.1} parent=0
    #allocation2 [shape = 'u8[655360]{0}', space=vmem, size = 0xa0000, scoped, tag = 'input window, operand 3, single buffered']
    #allocation3 [shape = 's32[1]{0}', space=sflag, size = 0x4, scoped, tag = 'scoped memory for cnn_forward.1']
    #allocation4 [shape = 'u8[65536]{0}', space=vmem, size = 0x10000, scoped, tag = 'input window, operand 7, single buffered']
    #allocation5 [shape = 's32[1]{0}', space=sflag, size = 0x4, scoped, tag = 'scoped memory for cnn_forward.1']
    %14 = vsyncpa [#allocation3], 0
    %15 = vsyncpa [#allocation5], 0
    // Predicated region
    $region2: #{cnn_forward.1} parent=1 // pred_check
      _
    $region3: #{cnn_forward.1} parent=1 // pred_check_branch
      %17 = sbr.rel (0) target = $region5
    $region4: #{cnn_forward.1} parent=1 // pred_region
      _
    $region5: #{cnn_forward.1} parent=1 // pred_fallthru
      _
    // Predicated region
    $region6: #{cnn_forward.1} parent=1 // pred_check
      _
    $region7: #{cnn_forward.1} parent=1 // pred_check_branch
      %19 = sbr.rel (0) target = $region9
    $region8: #{cnn_forward.1} parent=1 // pred_region
      _
    $region9: #{cnn_forward.1} parent=1 // pred_fallthru
      _
    // Predicated region
    $region10: #{cnn_forward.1} parent=1 // pred_check
      _
    $region11: #{cnn_forward.1} parent=1 // pred_check_branch
      %21 = sbr.rel (0) target = $region13
    $region12: #{cnn_forward.1} parent=1 // pred_region
      _
    $region13: #{cnn_forward.1} parent=1 // pred_fallthru
      _
    // Predicated region
    $region14: #{cnn_forward.1} parent=1 // pred_check
      _
    $region15: #{cnn_forward.1} parent=1 // pred_check_branch
      %23 = sbr.rel (0) target = $region17
    $region16: #{cnn_forward.1} parent=1 // pred_region
      %25 = vsyncadd [#allocation3], 0
      %s26 = sshll.u32 %s3, 4
      %s27 = int_to_ptr.hbm [resolvable:$true] %s26
      %s28 = sshll.u32 [#allocation2], 4
      %s29 = int_to_ptr.vmem [resolvable:$true] %s28
      %34 = dma.hbm_to_vmem [thread:$0]  %s27, 20480, %s29, [#allocation3], 256, 256, 16
    $region17: #{cnn_forward.1} parent=1 // pred_fallthru
      _
    // Predicated region
    $region18: #{cnn_forward.1} parent=1 // pred_check
      _
    $region19: #{cnn_forward.1} parent=1 // pred_check_branch
      %36 = sbr.rel (0) target = $region21
    $region20: #{cnn_forward.1} parent=1 // pred_region
      _
    $region21: #{cnn_forward.1} parent=1 // pred_fallthru
      _
    // Predicated region
    $region22: #{cnn_forward.1} parent=1 // pred_check
      _
    $region23: #{cnn_forward.1} parent=1 // pred_check_branch
      %38 = sbr.rel (0) target = $region25
    $region24: #{cnn_forward.1} parent=1 // pred_region
      _
    $region25: #{cnn_forward.1} parent=1 // pred_fallthru
      _
    // Predicated region
    $region26: #{cnn_forward.1} parent=1 // pred_check
      _
    $region27: #{cnn_forward.1} parent=1 // pred_check_branch
      %40 = sbr.rel (0) target = $region29
    $region28: #{cnn_forward.1} parent=1 // pred_region
      _
    $region29: #{cnn_forward.1} parent=1 // pred_fallthru
      _
    // Predicated region
    $region30: #{cnn_forward.1} parent=1 // pred_check
      _
    $region31: #{cnn_forward.1} parent=1 // pred_check_branch
      %42 = sbr.rel (0) target = $region33
    $region32: #{cnn_forward.1} parent=1 // pred_region
      %44 = vsyncadd [#allocation5], 0
      %s45 = sshll.u32 %s7, 4
      %s46 = int_to_ptr.hbm [resolvable:$true] %s45
      %s47 = sshll.u32 [#allocation4], 4
      %s48 = int_to_ptr.vmem [resolvable:$true] %s47
      %53 = dma.hbm_to_vmem [thread:$0]  %s46, 2048, %s48, [#allocation5], 128, 128, 8
    $region33: #{cnn_forward.1} parent=1 // pred_fallthru
      _
    // Predicated region
    $region34: #{cnn_forward.1} parent=1 // pred_check
      _
    $region35: #{cnn_forward.1} parent=1 // pred_check_branch
      %55 = sbr.rel (0) target = $region37
    $region36: #{cnn_forward.1} parent=1 // pred_region
      _
    $region37: #{cnn_forward.1} parent=1 // pred_fallthru
      _
    // Predicated region
    $region38: #{cnn_forward.1} parent=1 // pred_check
      _
    $region39: #{cnn_forward.1} parent=1 // pred_check_branch
      %57 = sbr.rel (0) target = $region41
    $region40: #{cnn_forward.1} parent=1 // pred_region
      %59 = dma.done [#allocation3], 20480
    $region41: #{cnn_forward.1} parent=1 // pred_fallthru
      _
    // Predicated region
    $region42: #{cnn_forward.1} parent=1 // pred_check
      _
    $region43: #{cnn_forward.1} parent=1 // pred_check_branch
      %61 = sbr.rel (0) target = $region45
    $region44: #{cnn_forward.1} parent=1 // pred_region
      %63 = dma.done [#allocation5], 2048
    $region45: #{cnn_forward.1} parent=1 // pred_fallthru
      _
    %v64 = vld [vmem:[%s0] sm:$0xff]
    %v65 = vld [vmem:[%s0 + $0x8] sm:$0xff]
    %v66 = vld [vmem:[%s0 + $0x10] sm:$0xff]
    %v67 = vld [vmem:[%s0 + $0x18] sm:$0xff]
    %v68 = vld [vmem:[%s0 + $0x20] sm:$0xff]
    %v69 = vld [vmem:[%s0 + $0x28] sm:$0xff]
    %v70 = vld [vmem:[%s0 + $0x30] sm:$0xff]
    %v71 = vld [vmem:[%s0 + $0x38] sm:$0xff]
    %v72 = vld [vmem:[%s0 + $0x40] sm:$0xff]
    %v73 = vld [vmem:[%s0 + $0x48] sm:$0xff]
    %v74 = vld [vmem:[%s0 + $0x50] sm:$0xff]
    %v75 = vld [vmem:[%s0 + $0x58] sm:$0xff]
    %v76 = vld [vmem:[%s0 + $0x60] sm:$0xff]
    %v77 = vld [vmem:[%s0 + $0x68] sm:$0xff]
    %v78 = vld [vmem:[%s0 + $0x70] sm:$0xff]
    %v79 = vld [vmem:[%s0 + $0x78] sm:$0xff]
    %v80 = vld [vmem:[%s0 + $0x80] sm:$0xff]
    %v81 = vld [vmem:[%s0 + $0x88] sm:$0xff]
    %v82 = vld [vmem:[%s0 + $0x90] sm:$0xff]
    %v83 = vld [vmem:[%s0 + $0x98] sm:$0xff]
    %v84 = vld [vmem:[%s0 + $0xa0] sm:$0xff]
    %v85 = vld [vmem:[%s0 + $0xa8] sm:$0xff]
    %v86 = vld [vmem:[%s0 + $0xb0] sm:$0xff]
    %v87 = vld [vmem:[%s0 + $0xb8] sm:$0xff]
    %v88 = vld [vmem:[%s0 + $0xc0] sm:$0xff]
    %v89 = vld [vmem:[%s0 + $0xc8] sm:$0xff]
    %v90 = vld [vmem:[%s0 + $0xd0] sm:$0xff]
    %v91 = vld [vmem:[%s0 + $0xd8] sm:$0xff]
    %v92 = vld [vmem:[%s0 + $0xe0] sm:$0xff]
    %v93 = vld [vmem:[%s0 + $0xe8] sm:$0xff]
    %v94 = vld [vmem:[%s0 + $0xf0] sm:$0xff]
    %v95 = vld [vmem:[%s0 + $0xf8] sm:$0xff]
    %v104 = vrot.slane %v64, 2
    %v105 = vrot.slane %v64, 4
    %v106 = vrot.slane %v68, 2
    %v107 = vrot.slane %v68, 4
    %v108 = vrot.slane %v72, 2
    %v109 = vrot.slane %v72, 4
    %v110 = vrot.slane %v76, 2
    %v111 = vrot.slane %v76, 4
    %v112 = vrot.slane %v80, 2
    %v113 = vrot.slane %v80, 4
    %v114 = vrot.slane %v84, 2
    %v115 = vrot.slane %v84, 4
    %v116 = vrot.slane %v88, 2
    %v117 = vrot.slane %v88, 4
    %v118 = vrot.slane %v92, 2
    %v119 = vrot.slane %v92, 4
    %v120 = vld [vmem:[%s1] sm:$0xff]
    %v121 = vld [vmem:[%s1 + $0x8] sm:$0xff]
    %v122 = vld [vmem:[%s1 + $0x10] sm:$0xff]
    %v123 = vld [vmem:[%s1 + $0x18] sm:$0xff]
    %v124 = vld [vmem:[%s1 + $0x20] sm:$0xff]
    %v125 = vld [vmem:[%s1 + $0x28] sm:$0xff]
    %v126 = vld [vmem:[%s1 + $0x30] sm:$0xff]
    %v127 = vld [vmem:[%s1 + $0x38] sm:$0xff]
    %v136 = vrot.slane %v65, 2
    %v137 = vrot.slane %v65, 4
    %v138 = vrot.slane %v69, 2
    %v139 = vrot.slane %v69, 4
    %v140 = vrot.slane %v73, 2
    %v141 = vrot.slane %v73, 4
    %v142 = vrot.slane %v77, 2
    %v143 = vrot.slane %v77, 4
    %v144 = vrot.slane %v81, 2
    %v145 = vrot.slane %v81, 4
    %v146 = vrot.slane %v85, 2
    %v147 = vrot.slane %v85, 4
    %v148 = vrot.slane %v89, 2
    %v149 = vrot.slane %v89, 4
    %v150 = vrot.slane %v93, 2
    %v151 = vrot.slane %v93, 4
    %s152 = scalar_lea.vmem %s1, 64
    %v153 = vld [vmem:[%s152] sm:$0xff]
    %v154 = vld [vmem:[%s152 + $0x8] sm:$0xff]
    %v155 = vld [vmem:[%s152 + $0x10] sm:$0xff]
    %v156 = vld [vmem:[%s152 + $0x18] sm:$0xff]
    %v157 = vld [vmem:[%s152 + $0x20] sm:$0xff]
    %v158 = vld [vmem:[%s152 + $0x28] sm:$0xff]
    %v159 = vld [vmem:[%s152 + $0x30] sm:$0xff]
    %v160 = vld [vmem:[%s152 + $0x38] sm:$0xff]
    %161 = vst [vmem:[#allocation1] ss:$4 sm:$0xff] %v65
    %s162 = scalar_lea.vmem [#allocation1], 1
    %163 = vst [vmem:[%s162] ss:$4 sm:$0xff] %v136
    %s164 = scalar_lea.vmem [#allocation1], 2
    %165 = vst [vmem:[%s164] ss:$4 sm:$0xff] %v137
    %s166 = scalar_lea.vmem [#allocation1], 3
    %167 = vst [vmem:[%s166] ss:$4 sm:$0xff] %v69
    %s168 = scalar_lea.vmem [#allocation1], 32
    %169 = vst [vmem:[%s168] ss:$4 sm:$0xff] %v138
    %s170 = scalar_lea.vmem [#allocation1], 33
    %171 = vst [vmem:[%s170] ss:$4 sm:$0xff] %v139
    %s172 = scalar_lea.vmem [#allocation1], 34
    %173 = vst [vmem:[%s172] ss:$4 sm:$0xff] %v73
    %s174 = scalar_lea.vmem [#allocation1], 35
    %175 = vst [vmem:[%s174] ss:$4 sm:$0xff] %v140
    %v176 = vld.sshfl [vmem:[#allocation1] sm:$0xff pattern:$0x73625140]
    %v177 = vld.sshfl [vmem:[#allocation1 + $0x20] sm:$0xff pattern:$0x73625140]
    %178 = vst [vmem:[#allocation1] ss:$4 sm:$0xff] %v141
    %179 = vst [vmem:[%s162] ss:$4 sm:$0xff] %v77
    %180 = vst [vmem:[%s164] ss:$4 sm:$0xff] %v142
    %181 = vst [vmem:[%s166] ss:$4 sm:$0xff] %v143
    %182 = vst [vmem:[%s168] ss:$4 sm:$0xff] %v81
    %183 = vst [vmem:[%s170] ss:$4 sm:$0xff] %v144
    %184 = vst [vmem:[%s172] ss:$4 sm:$0xff] %v145
    %185 = vst [vmem:[%s174] ss:$4 sm:$0xff] %v85
    %v186 = vld.sshfl [vmem:[#allocation1] sm:$0xff pattern:$0x73625140]
    %v187 = vld.sshfl [vmem:[#allocation1 + $0x20] sm:$0xff pattern:$0x73625140]
    %188 = vst [vmem:[#allocation1] ss:$4 sm:$0xff] %v146
    %189 = vst [vmem:[%s162] ss:$4 sm:$0xff] %v147
    %190 = vst [vmem:[%s164] ss:$4 sm:$0xff] %v89
    %191 = vst [vmem:[%s166] ss:$4 sm:$0xff] %v148
    %192 = vst [vmem:[%s168] ss:$4 sm:$0xff] %v149
    %193 = vst [vmem:[%s170] ss:$4 sm:$0xff] %v93
    %194 = vst [vmem:[%s172] ss:$4 sm:$0xff] %v150
    %195 = vst [vmem:[%s174] ss:$4 sm:$0xff] %v151
    %v196 = vld.sshfl [vmem:[#allocation1] sm:$0xff pattern:$0x73625140]
    %v197 = vld.sshfl [vmem:[#allocation1 + $0x20] sm:$0xff pattern:$0x73625140]
    %vm198 = vcmask 261120
    %v199 = vsel %vm198, %v176, 0
    %v201 = vsel %vm198, %v177, 0
    %v203 = vsel %vm198, %v186, 0
    %v205 = vsel %vm198, %v187, 0
    %v207 = vsel %vm198, %v196, 0
    %v209 = vsel %vm198, %v197, 0
    %211 = vmatpush.msra.mxu0 0.0
    %212 = vmatpush.msra.mxu0 0.0
    %213 = vmatpush.msra.mxu0 0.0
    %214 = vmatpush.msra.mxu0 0.0
    %215 = vmatpush.msra.mxu0 0.0
    %216 = vmatpush.msra.mxu0 0.0
    %217 = vmatpush.msra.mxu0 0.0
    %218 = vmatpush.msra.mxu0 0.0
    %219 = vmatpush.msra.mxu0 0.0
    %220 = vmatpush.msra.mxu0 0.0
    %221 = vmatpush.msra.mxu0 0.0
    %222 = vmatpush.msra.mxu0 0.0
    %223 = vmatpush.msra.mxu0 %v159
    %224 = vmatpush.msra.mxu0 %v157
    %225 = vmatpush.msra.mxu0 %v155
    %226 = vmatpush.msra.mxu0 %v153
    %227 = vmatmul.f32.gmra.mxu0 %v199
    %v228 = vpop.f32.mrf.mxu0
    %v229 = vadd.f32 0.0, %v228
    %230 = vmatmul.f32.gmra.mxu0 %v201
    %v231 = vpop.f32.mrf.mxu0
    %v232 = vadd.f32 0.0, %v231
    %233 = vmatmul.f32.gmra.mxu0 %v203
    %v234 = vpop.f32.mrf.mxu0
    %v235 = vadd.f32 0.0, %v234
    %236 = vmatmul.f32.gmra.mxu0 %v205
    %v237 = vpop.f32.mrf.mxu0
    %v238 = vadd.f32 0.0, %v237
    %239 = vmatmul.f32.gmra.mxu0 %v207
    %v240 = vpop.f32.mrf.mxu0
    %v241 = vadd.f32 0.0, %v240
    %242 = vmatmul.f32.gmra.mxu0 %v209
    %v243 = vpop.f32.mrf.mxu0
    %v244 = vadd.f32 0.0, %v243
    %245 = vdwg.mxu0
    %246 = vmatpush.msra.mxu0 0.0
    %247 = vmatpush.msra.mxu0 0.0
    %248 = vmatpush.msra.mxu0 0.0
    %249 = vmatpush.msra.mxu0 0.0
    %250 = vmatpush.msra.mxu0 0.0
    %251 = vmatpush.msra.mxu0 0.0
    %252 = vmatpush.msra.mxu0 0.0
    %253 = vmatpush.msra.mxu0 0.0
    %254 = vmatpush.msra.mxu0 0.0
    %255 = vmatpush.msra.mxu0 0.0
    %256 = vmatpush.msra.mxu0 0.0
    %257 = vmatpush.msra.mxu0 0.0
    %258 = vmatpush.msra.mxu0 %v160
    %259 = vmatpush.msra.mxu0 %v158
    %260 = vmatpush.msra.mxu0 %v156
    %261 = vmatpush.msra.mxu0 %v154
    %262 = vmatmul.f32.gmra.mxu0 %v199
    %v263 = vpop.f32.mrf.mxu0
    %v264 = vadd.f32 0.0, %v263
    %265 = vmatmul.f32.gmra.mxu0 %v201
    %v266 = vpop.f32.mrf.mxu0
    %v267 = vadd.f32 0.0, %v266
    %268 = vmatmul.f32.gmra.mxu0 %v203
    %v269 = vpop.f32.mrf.mxu0
    %v270 = vadd.f32 0.0, %v269
    %271 = vmatmul.f32.gmra.mxu0 %v205
    %v272 = vpop.f32.mrf.mxu0
    %v273 = vadd.f32 0.0, %v272
    %274 = vmatmul.f32.gmra.mxu0 %v207
    %v275 = vpop.f32.mrf.mxu0
    %v276 = vadd.f32 0.0, %v275
    %277 = vmatmul.f32.gmra.mxu0 %v209
    %v278 = vpop.f32.mrf.mxu0
    %v279 = vadd.f32 0.0, %v278
    %280 = vdwg.mxu0
    %281 = vst [vmem:[#allocation1] ss:$4 sm:$0xff] %v64
    %s282 = scalar_lea.vmem [#allocation1], 1
    %283 = vst [vmem:[%s282] ss:$4 sm:$0xff] %v104
    %s284 = scalar_lea.vmem [#allocation1], 2
    %285 = vst [vmem:[%s284] ss:$4 sm:$0xff] %v105
    %s286 = scalar_lea.vmem [#allocation1], 3
    %287 = vst [vmem:[%s286] ss:$4 sm:$0xff] %v68
    %s288 = scalar_lea.vmem [#allocation1], 32
    %289 = vst [vmem:[%s288] ss:$4 sm:$0xff] %v106
    %s290 = scalar_lea.vmem [#allocation1], 33
    %291 = vst [vmem:[%s290] ss:$4 sm:$0xff] %v107
    %s292 = scalar_lea.vmem [#allocation1], 34
    %293 = vst [vmem:[%s292] ss:$4 sm:$0xff] %v72
    %s294 = scalar_lea.vmem [#allocation1], 35
    %295 = vst [vmem:[%s294] ss:$4 sm:$0xff] %v108
    %v296 = vld.sshfl [vmem:[#allocation1] sm:$0xff pattern:$0x73625140]
    %v297 = vld.sshfl [vmem:[#allocation1 + $0x20] sm:$0xff pattern:$0x73625140]
    %298 = vst [vmem:[#allocation1] ss:$4 sm:$0xff] %v109
    %299 = vst [vmem:[%s282] ss:$4 sm:$0xff] %v76
    %300 = vst [vmem:[%s284] ss:$4 sm:$0xff] %v110
    %301 = vst [vmem:[%s286] ss:$4 sm:$0xff] %v111
    %302 = vst [vmem:[%s288] ss:$4 sm:$0xff] %v80
    %303 = vst [vmem:[%s290] ss:$4 sm:$0xff] %v112
    %304 = vst [vmem:[%s292] ss:$4 sm:$0xff] %v113
    %305 = vst [vmem:[%s294] ss:$4 sm:$0xff] %v84
    %v306 = vld.sshfl [vmem:[#allocation1] sm:$0xff pattern:$0x73625140]
    %v307 = vld.sshfl [vmem:[#allocation1 + $0x20] sm:$0xff pattern:$0x73625140]
    %308 = vst [vmem:[#allocation1] ss:$4 sm:$0xff] %v114
    %309 = vst [vmem:[%s282] ss:$4 sm:$0xff] %v115
    %310 = vst [vmem:[%s284] ss:$4 sm:$0xff] %v88
    %311 = vst [vmem:[%s286] ss:$4 sm:$0xff] %v116
    %312 = vst [vmem:[%s288] ss:$4 sm:$0xff] %v117
    %313 = vst [vmem:[%s290] ss:$4 sm:$0xff] %v92
    %314 = vst [vmem:[%s292] ss:$4 sm:$0xff] %v118
    %315 = vst [vmem:[%s294] ss:$4 sm:$0xff] %v119
    %v316 = vld.sshfl [vmem:[#allocation1] sm:$0xff pattern:$0x73625140]
    %v317 = vld.sshfl [vmem:[#allocation1 + $0x20] sm:$0xff pattern:$0x73625140]
    %v318 = vsel %vm198, %v296, 0
    %v320 = vsel %vm198, %v297, 0
    %v322 = vsel %vm198, %v306, 0
    %v324 = vsel %vm198, %v307, 0
    %v326 = vsel %vm198, %v316, 0
    %v328 = vsel %vm198, %v317, 0
    %330 = vmatpush.msra.mxu0 0.0
    %331 = vmatpush.msra.mxu0 0.0
    %332 = vmatpush.msra.mxu0 0.0
    %333 = vmatpush.msra.mxu0 0.0
    %334 = vmatpush.msra.mxu0 0.0
    %335 = vmatpush.msra.mxu0 0.0
    %336 = vmatpush.msra.mxu0 0.0
    %337 = vmatpush.msra.mxu0 0.0
    %338 = vmatpush.msra.mxu0 0.0
    %339 = vmatpush.msra.mxu0 0.0
    %340 = vmatpush.msra.mxu0 0.0
    %341 = vmatpush.msra.mxu0 0.0
    %342 = vmatpush.msra.mxu0 %v126
    %343 = vmatpush.msra.mxu0 %v124
    %344 = vmatpush.msra.mxu0 %v122
    %345 = vmatpush.msra.mxu0 %v120
    %346 = vmatmul.f32.gmra.mxu0 %v318
    %v347 = vpop.f32.mrf.mxu0
    %v348 = vadd.f32 %v229, %v347
    %349 = vmatmul.f32.gmra.mxu0 %v320
    %v350 = vpop.f32.mrf.mxu0
    %v351 = vadd.f32 %v232, %v350
    %352 = vmatmul.f32.gmra.mxu0 %v322
    %v353 = vpop.f32.mrf.mxu0
    %v354 = vadd.f32 %v235, %v353
    %355 = vmatmul.f32.gmra.mxu0 %v324
    %v356 = vpop.f32.mrf.mxu0
    %v357 = vadd.f32 %v238, %v356
    %358 = vmatmul.f32.gmra.mxu0 %v326
    %v359 = vpop.f32.mrf.mxu0
    %v360 = vadd.f32 %v241, %v359
    %361 = vmatmul.f32.gmra.mxu0 %v328
    %v362 = vpop.f32.mrf.mxu0
    %v363 = vadd.f32 %v244, %v362
    %364 = vdwg.mxu0
    %365 = vmatpush.msra.mxu0 0.0
    %366 = vmatpush.msra.mxu0 0.0
    %367 = vmatpush.msra.mxu0 0.0
    %368 = vmatpush.msra.mxu0 0.0
    %369 = vmatpush.msra.mxu0 0.0
    %370 = vmatpush.msra.mxu0 0.0
    %371 = vmatpush.msra.mxu0 0.0
    %372 = vmatpush.msra.mxu0 0.0
    %373 = vmatpush.msra.mxu0 0.0
    %374 = vmatpush.msra.mxu0 0.0
    %375 = vmatpush.msra.mxu0 0.0
    %376 = vmatpush.msra.mxu0 0.0
    %377 = vmatpush.msra.mxu0 %v127
    %378 = vmatpush.msra.mxu0 %v125
    %379 = vmatpush.msra.mxu0 %v123
    %380 = vmatpush.msra.mxu0 %v121
    %381 = vmatmul.f32.gmra.mxu0 %v318
    %v382 = vpop.f32.mrf.mxu0
    %v383 = vadd.f32 %v264, %v382
    %384 = vmatmul.f32.gmra.mxu0 %v320
    %v385 = vpop.f32.mrf.mxu0
    %v386 = vadd.f32 %v267, %v385
    %387 = vmatmul.f32.gmra.mxu0 %v322
    %v388 = vpop.f32.mrf.mxu0
    %v389 = vadd.f32 %v270, %v388
    %390 = vmatmul.f32.gmra.mxu0 %v324
    %v391 = vpop.f32.mrf.mxu0
    %v392 = vadd.f32 %v273, %v391
    %393 = vmatmul.f32.gmra.mxu0 %v326
    %v394 = vpop.f32.mrf.mxu0
    %v395 = vadd.f32 %v276, %v394
    %396 = vmatmul.f32.gmra.mxu0 %v328
    %v397 = vpop.f32.mrf.mxu0
    %v398 = vadd.f32 %v279, %v397
    %399 = vdwg.mxu0
    %v408 = vrot.slane %v66, 2
    %v409 = vrot.slane %v66, 4
    %v410 = vrot.slane %v70, 2
    %v411 = vrot.slane %v70, 4
    %v412 = vrot.slane %v74, 2
    %v413 = vrot.slane %v74, 4
    %v414 = vrot.slane %v78, 2
    %v415 = vrot.slane %v78, 4
    %v416 = vrot.slane %v82, 2
    %v417 = vrot.slane %v82, 4
    %v418 = vrot.slane %v86, 2
    %v419 = vrot.slane %v86, 4
    %v420 = vrot.slane %v90, 2
    %v421 = vrot.slane %v90, 4
    %v422 = vrot.slane %v94, 2
    %v423 = vrot.slane %v94, 4
    %s424 = scalar_lea.vmem %s1, 128
    %v425 = vld [vmem:[%s424] sm:$0xff]
    %v426 = vld [vmem:[%s424 + $0x8] sm:$0xff]
    %v427 = vld [vmem:[%s424 + $0x10] sm:$0xff]
    %v428 = vld [vmem:[%s424 + $0x18] sm:$0xff]
    %v429 = vld [vmem:[%s424 + $0x20] sm:$0xff]
    %v430 = vld [vmem:[%s424 + $0x28] sm:$0xff]
    %v431 = vld [vmem:[%s424 + $0x30] sm:$0xff]
    %v432 = vld [vmem:[%s424 + $0x38] sm:$0xff]
    %433 = vst [vmem:[#allocation1] ss:$4 sm:$0xff] %v66
    %s434 = scalar_lea.vmem [#allocation1], 1
    %435 = vst [vmem:[%s434] ss:$4 sm:$0xff] %v408
    %s436 = scalar_lea.vmem [#allocation1], 2
    %437 = vst [vmem:[%s436] ss:$4 sm:$0xff] %v409
    %s438 = scalar_lea.vmem [#allocation1], 3
    %439 = vst [vmem:[%s438] ss:$4 sm:$0xff] %v70
    %s440 = scalar_lea.vmem [#allocation1], 32
    %441 = vst [vmem:[%s440] ss:$4 sm:$0xff] %v410
    %s442 = scalar_lea.vmem [#allocation1], 33
    %443 = vst [vmem:[%s442] ss:$4 sm:$0xff] %v411
    %s444 = scalar_lea.vmem [#allocation1], 34
    %445 = vst [vmem:[%s444] ss:$4 sm:$0xff] %v74
    %s446 = scalar_lea.vmem [#allocation1], 35
    %447 = vst [vmem:[%s446] ss:$4 sm:$0xff] %v412
    %v448 = vld.sshfl [vmem:[#allocation1] sm:$0xff pattern:$0x73625140]
    %v449 = vld.sshfl [vmem:[#allocation1 + $0x20] sm:$0xff pattern:$0x73625140]
    %450 = vst [vmem:[#allocation1] ss:$4 sm:$0xff] %v413
    %451 = vst [vmem:[%s434] ss:$4 sm:$0xff] %v78
    %452 = vst [vmem:[%s436] ss:$4 sm:$0xff] %v414
    %453 = vst [vmem:[%s438] ss:$4 sm:$0xff] %v415
    %454 = vst [vmem:[%s440] ss:$4 sm:$0xff] %v82
    %455 = vst [vmem:[%s442] ss:$4 sm:$0xff] %v416
    %456 = vst [vmem:[%s444] ss:$4 sm:$0xff] %v417
    %457 = vst [vmem:[%s446] ss:$4 sm:$0xff] %v86
    %v458 = vld.sshfl [vmem:[#allocation1] sm:$0xff pattern:$0x73625140]
    %v459 = vld.sshfl [vmem:[#allocation1 + $0x20] sm:$0xff pattern:$0x73625140]
    %460 = vst [vmem:[#allocation1] ss:$4 sm:$0xff] %v418
    %461 = vst [vmem:[%s434] ss:$4 sm:$0xff] %v419
    %462 = vst [vmem:[%s436] ss:$4 sm:$0xff] %v90
    %463 = vst [vmem:[%s438] ss:$4 sm:$0xff] %v420
    %464 = vst [vmem:[%s440] ss:$4 sm:$0xff] %v421
    %465 = vst [vmem:[%s442] ss:$4 sm:$0xff] %v94
    %466 = vst [vmem:[%s444] ss:$4 sm:$0xff] %v422
    %467 = vst [vmem:[%s446] ss:$4 sm:$0xff] %v423
    %v468 = vld.sshfl [vmem:[#allocation1] sm:$0xff pattern:$0x73625140]
    %v469 = vld.sshfl [vmem:[#allocation1 + $0x20] sm:$0xff pattern:$0x73625140]
    %v470 = vsel %vm198, %v448, 0
    %v472 = vsel %vm198, %v449, 0
    %v474 = vsel %vm198, %v458, 0
    %v476 = vsel %vm198, %v459, 0
    %v478 = vsel %vm198, %v468, 0
    %v480 = vsel %vm198, %v469, 0
    %482 = vmatpush.msra.mxu0 0.0
    %483 = vmatpush.msra.mxu0 0.0
    %484 = vmatpush.msra.mxu0 0.0
    %485 = vmatpush.msra.mxu0 0.0
    %486 = vmatpush.msra.mxu0 0.0
    %487 = vmatpush.msra.mxu0 0.0
    %488 = vmatpush.msra.mxu0 0.0
    %489 = vmatpush.msra.mxu0 0.0
    %490 = vmatpush.msra.mxu0 0.0
    %491 = vmatpush.msra.mxu0 0.0
    %492 = vmatpush.msra.mxu0 0.0
    %493 = vmatpush.msra.mxu0 0.0
    %494 = vmatpush.msra.mxu0 %v431
    %495 = vmatpush.msra.mxu0 %v429
    %496 = vmatpush.msra.mxu0 %v427
    %497 = vmatpush.msra.mxu0 %v425
    %498 = vmatmul.f32.gmra.mxu0 %v470
    %v499 = vpop.f32.mrf.mxu0
    %v500 = vadd.f32 0.0, %v499
    %501 = vmatmul.f32.gmra.mxu0 %v472
    %v502 = vpop.f32.mrf.mxu0
    %v503 = vadd.f32 0.0, %v502
    %504 = vmatmul.f32.gmra.mxu0 %v474
    %v505 = vpop.f32.mrf.mxu0
    %v506 = vadd.f32 0.0, %v505
    %507 = vmatmul.f32.gmra.mxu0 %v476
    %v508 = vpop.f32.mrf.mxu0
    %v509 = vadd.f32 0.0, %v508
    %510 = vmatmul.f32.gmra.mxu0 %v478
    %v511 = vpop.f32.mrf.mxu0
    %v512 = vadd.f32 0.0, %v511
    %513 = vmatmul.f32.gmra.mxu0 %v480
    %v514 = vpop.f32.mrf.mxu0
    %v515 = vadd.f32 0.0, %v514
    %516 = vdwg.mxu0
    %517 = vmatpush.msra.mxu0 0.0
    %518 = vmatpush.msra.mxu0 0.0
    %519 = vmatpush.msra.mxu0 0.0
    %520 = vmatpush.msra.mxu0 0.0
    %521 = vmatpush.msra.mxu0 0.0
    %522 = vmatpush.msra.mxu0 0.0
    %523 = vmatpush.msra.mxu0 0.0
    %524 = vmatpush.msra.mxu0 0.0
    %525 = vmatpush.msra.mxu0 0.0
    %526 = vmatpush.msra.mxu0 0.0
    %527 = vmatpush.msra.mxu0 0.0
    %528 = vmatpush.msra.mxu0 0.0
    %529 = vmatpush.msra.mxu0 %v432
    %530 = vmatpush.msra.mxu0 %v430
    %531 = vmatpush.msra.mxu0 %v428
    %532 = vmatpush.msra.mxu0 %v426
    %533 = vmatmul.f32.gmra.mxu0 %v470
    %v534 = vpop.f32.mrf.mxu0
    %v535 = vadd.f32 0.0, %v534
    %536 = vmatmul.f32.gmra.mxu0 %v472
    %v537 = vpop.f32.mrf.mxu0
    %v538 = vadd.f32 0.0, %v537
    %539 = vmatmul.f32.gmra.mxu0 %v474
    %v540 = vpop.f32.mrf.mxu0
    %v541 = vadd.f32 0.0, %v540
    %542 = vmatmul.f32.gmra.mxu0 %v476
    %v543 = vpop.f32.mrf.mxu0
    %v544 = vadd.f32 0.0, %v543
    %545 = vmatmul.f32.gmra.mxu0 %v478
    %v546 = vpop.f32.mrf.mxu0
    %v547 = vadd.f32 0.0, %v546
    %548 = vmatmul.f32.gmra.mxu0 %v480
    %v549 = vpop.f32.mrf.mxu0
    %v550 = vadd.f32 0.0, %v549
    %551 = vdwg.mxu0
    %v552 = vadd.f32 %v348, %v500
    %v553 = vadd.f32 %v383, %v535
    %v554 = vadd.f32 %v351, %v503
    %v555 = vadd.f32 %v386, %v538
    %v556 = vadd.f32 %v354, %v506
    %v557 = vadd.f32 %v389, %v541
    %v558 = vadd.f32 %v357, %v509
    %v559 = vadd.f32 %v392, %v544
    %v560 = vadd.f32 %v360, %v512
    %v561 = vadd.f32 %v395, %v547
    %v562 = vadd.f32 %v363, %v515
    %v563 = vadd.f32 %v398, %v550
    %v572 = vrot.slane %v67, 2
    %v573 = vrot.slane %v67, 4
    %v574 = vrot.slane %v71, 2
    %v575 = vrot.slane %v71, 4
    %v576 = vrot.slane %v75, 2
    %v577 = vrot.slane %v75, 4
    %v578 = vrot.slane %v79, 2
    %v579 = vrot.slane %v79, 4
    %v580 = vrot.slane %v83, 2
    %v581 = vrot.slane %v83, 4
    %v582 = vrot.slane %v87, 2
    %v583 = vrot.slane %v87, 4
    %v584 = vrot.slane %v91, 2
    %v585 = vrot.slane %v91, 4
    %v586 = vrot.slane %v95, 2
    %v587 = vrot.slane %v95, 4
    %s588 = scalar_lea.vmem %s1, 192
    %v589 = vld [vmem:[%s588] sm:$0xff]
    %v590 = vld [vmem:[%s588 + $0x8] sm:$0xff]
    %v591 = vld [vmem:[%s588 + $0x10] sm:$0xff]
    %v592 = vld [vmem:[%s588 + $0x18] sm:$0xff]
    %v593 = vld [vmem:[%s588 + $0x20] sm:$0xff]
    %v594 = vld [vmem:[%s588 + $0x28] sm:$0xff]
    %v595 = vld [vmem:[%s588 + $0x30] sm:$0xff]
    %v596 = vld [vmem:[%s588 + $0x38] sm:$0xff]
    %597 = vst [vmem:[#allocation1] ss:$4 sm:$0xff] %v67
    %s598 = scalar_lea.vmem [#allocation1], 1
    %599 = vst [vmem:[%s598] ss:$4 sm:$0xff] %v572
    %s600 = scalar_lea.vmem [#allocation1], 2
    %601 = vst [vmem:[%s600] ss:$4 sm:$0xff] %v573
    %s602 = scalar_lea.vmem [#allocation1], 3
    %603 = vst [vmem:[%s602] ss:$4 sm:$0xff] %v71
    %s604 = scalar_lea.vmem [#allocation1], 32
    %605 = vst [vmem:[%s604] ss:$4 sm:$0xff] %v574
    %s606 = scalar_lea.vmem [#allocation1], 33
    %607 = vst [vmem:[%s606] ss:$4 sm:$0xff] %v575
    %s608 = scalar_lea.vmem [#allocation1], 34
    %609 = vst [vmem:[%s608] ss:$4 sm:$0xff] %v75
    %s610 = scalar_lea.vmem [#allocation1], 35
    %611 = vst [vmem:[%s610] ss:$4 sm:$0xff] %v576
    %v612 = vld.sshfl [vmem:[#allocation1] sm:$0xff pattern:$0x73625140]
    %v613 = vld.sshfl [vmem:[#allocation1 + $0x20] sm:$0xff pattern:$0x73625140]
    %614 = vst [vmem:[#allocation1] ss:$4 sm:$0xff] %v577
    %615 = vst [vmem:[%s598] ss:$4 sm:$0xff] %v79
    %616 = vst [vmem:[%s600] ss:$4 sm:$0xff] %v578
    %617 = vst [vmem:[%s602] ss:$4 sm:$0xff] %v579
    %618 = vst [vmem:[%s604] ss:$4 sm:$0xff] %v83
    %619 = vst [vmem:[%s606] ss:$4 sm:$0xff] %v580
    %620 = vst [vmem:[%s608] ss:$4 sm:$0xff] %v581
    %621 = vst [vmem:[%s610] ss:$4 sm:$0xff] %v87
    %v622 = vld.sshfl [vmem:[#allocation1] sm:$0xff pattern:$0x73625140]
    %v623 = vld.sshfl [vmem:[#allocation1 + $0x20] sm:$0xff pattern:$0x73625140]
    %624 = vst [vmem:[#allocation1] ss:$4 sm:$0xff] %v582
    %625 = vst [vmem:[%s598] ss:$4 sm:$0xff] %v583
    %626 = vst [vmem:[%s600] ss:$4 sm:$0xff] %v91
    %627 = vst [vmem:[%s602] ss:$4 sm:$0xff] %v584
    %628 = vst [vmem:[%s604] ss:$4 sm:$0xff] %v585
    %629 = vst [vmem:[%s606] ss:$4 sm:$0xff] %v95
    %630 = vst [vmem:[%s608] ss:$4 sm:$0xff] %v586
    %631 = vst [vmem:[%s610] ss:$4 sm:$0xff] %v587
    %v632 = vld.sshfl [vmem:[#allocation1] sm:$0xff pattern:$0x73625140]
    %v633 = vld.sshfl [vmem:[#allocation1 + $0x20] sm:$0xff pattern:$0x73625140]
    %v634 = vsel %vm198, %v612, 0
    %v636 = vsel %vm198, %v613, 0
    %v638 = vsel %vm198, %v622, 0
    %v640 = vsel %vm198, %v623, 0
    %v642 = vsel %vm198, %v632, 0
    %v644 = vsel %vm198, %v633, 0
    %646 = vmatpush.msra.mxu0 0.0
    %647 = vmatpush.msra.mxu0 0.0
    %648 = vmatpush.msra.mxu0 0.0
    %649 = vmatpush.msra.mxu0 0.0
    %650 = vmatpush.msra.mxu0 0.0
    %651 = vmatpush.msra.mxu0 0.0
    %652 = vmatpush.msra.mxu0 0.0
    %653 = vmatpush.msra.mxu0 0.0
    %654 = vmatpush.msra.mxu0 0.0
    %655 = vmatpush.msra.mxu0 0.0
    %656 = vmatpush.msra.mxu0 0.0
    %657 = vmatpush.msra.mxu0 0.0
    %658 = vmatpush.msra.mxu0 %v595
    %659 = vmatpush.msra.mxu0 %v593
    %660 = vmatpush.msra.mxu0 %v591
    %661 = vmatpush.msra.mxu0 %v589
    %662 = vmatmul.f32.gmra.mxu0 %v634
    %v663 = vpop.f32.mrf.mxu0
    %v664 = vadd.f32 0.0, %v663
    %665 = vmatmul.f32.gmra.mxu0 %v636
    %v666 = vpop.f32.mrf.mxu0
    %v667 = vadd.f32 0.0, %v666
    %668 = vmatmul.f32.gmra.mxu0 %v638
    %v669 = vpop.f32.mrf.mxu0
    %v670 = vadd.f32 0.0, %v669
    %671 = vmatmul.f32.gmra.mxu0 %v640
    %v672 = vpop.f32.mrf.mxu0
    %v673 = vadd.f32 0.0, %v672
    %674 = vmatmul.f32.gmra.mxu0 %v642
    %v675 = vpop.f32.mrf.mxu0
    %v676 = vadd.f32 0.0, %v675
    %677 = vmatmul.f32.gmra.mxu0 %v644
    %v678 = vpop.f32.mrf.mxu0
    %v679 = vadd.f32 0.0, %v678
    %680 = vdwg.mxu0
    %681 = vmatpush.msra.mxu0 0.0
    %682 = vmatpush.msra.mxu0 0.0
    %683 = vmatpush.msra.mxu0 0.0
    %684 = vmatpush.msra.mxu0 0.0
    %685 = vmatpush.msra.mxu0 0.0
    %686 = vmatpush.msra.mxu0 0.0
    %687 = vmatpush.msra.mxu0 0.0
    %688 = vmatpush.msra.mxu0 0.0
    %689 = vmatpush.msra.mxu0 0.0
    %690 = vmatpush.msra.mxu0 0.0
    %691 = vmatpush.msra.mxu0 0.0
    %692 = vmatpush.msra.mxu0 0.0
    %693 = vmatpush.msra.mxu0 %v596
    %694 = vmatpush.msra.mxu0 %v594
    %695 = vmatpush.msra.mxu0 %v592
    %696 = vmatpush.msra.mxu0 %v590
    %697 = vmatmul.f32.gmra.mxu0 %v634
    %v698 = vpop.f32.mrf.mxu0
    %v699 = vadd.f32 0.0, %v698
    %700 = vmatmul.f32.gmra.mxu0 %v636
    %v701 = vpop.f32.mrf.mxu0
    %v702 = vadd.f32 0.0, %v701
    %703 = vmatmul.f32.gmra.mxu0 %v638
    %v704 = vpop.f32.mrf.mxu0
    %v705 = vadd.f32 0.0, %v704
    %706 = vmatmul.f32.gmra.mxu0 %v640
    %v707 = vpop.f32.mrf.mxu0
    %v708 = vadd.f32 0.0, %v707
    %709 = vmatmul.f32.gmra.mxu0 %v642
    %v710 = vpop.f32.mrf.mxu0
    %v711 = vadd.f32 0.0, %v710
    %712 = vmatmul.f32.gmra.mxu0 %v644
    %v713 = vpop.f32.mrf.mxu0
    %v714 = vadd.f32 0.0, %v713
    %715 = vdwg.mxu0
    %v716 = vadd.f32 %v552, %v664
    %v717 = vadd.f32 %v553, %v699
    %v718 = vadd.f32 %v554, %v667
    %v719 = vadd.f32 %v555, %v702
    %v720 = vadd.f32 %v556, %v670
    %v721 = vadd.f32 %v557, %v705
    %v722 = vadd.f32 %v558, %v673
    %v723 = vadd.f32 %v559, %v708
    %v724 = vadd.f32 %v560, %v676
    %v725 = vadd.f32 %v561, %v711
    %v726 = vadd.f32 %v562, %v679
    %v727 = vadd.f32 %v563, %v714
    %v728 = vrot.slane %v64, 6
    %v729 = vrot.slane %v68, 6
    %v730 = vrot.slane %v72, 6
    %v731 = vrot.slane %v76, 6
    %v732 = vrot.slane %v80, 6
    %v733 = vrot.slane %v84, 6
    %v734 = vrot.slane %v88, 6
    %v735 = vrot.slane %v92, 6
    %vm736 = vcmask 1040384
    %vm737 = vcmask 1042434
    %vm738 = vmor %vm736, %vm737
    %vm739 = vcmask 1044484
    %vm740 = vmor %vm738, %vm739
    %vm741 = vcmask 1046534
    %vm742 = vmor %vm740, %vm741
    %v743 = vrot.slane %v64, 7
    %v744 = vrot.slane %v743, 2
    %v745 = vrot.slane %v104, 7
    %v746 = vsel %vm742, %v744, %v745
    %v747 = vrot.slane %v745, 2
    %v748 = vrot.slane %v105, 7
    %v749 = vsel %vm742, %v747, %v748
    %v750 = vrot.slane %v748, 2
    %v751 = vrot.slane %v728, 7
    %v752 = vsel %vm742, %v750, %v751
    %v753 = vrot.slane %v68, 7
    %v754 = vrot.slane %v753, 2
    %v755 = vrot.slane %v106, 7
    %v756 = vsel %vm742, %v754, %v755
    %v757 = vrot.slane %v755, 2
    %v758 = vrot.slane %v107, 7
    %v759 = vsel %vm742, %v757, %v758
    %v760 = vrot.slane %v758, 2
    %v761 = vrot.slane %v729, 7
    %v762 = vsel %vm742, %v760, %v761
    %v763 = vrot.slane %v72, 7
    %v764 = vrot.slane %v763, 2
    %v765 = vrot.slane %v108, 7
    %v766 = vsel %vm742, %v764, %v765
    %v767 = vrot.slane %v765, 2
    %v768 = vrot.slane %v109, 7
    %v769 = vsel %vm742, %v767, %v768
    %v770 = vrot.slane %v768, 2
    %v771 = vrot.slane %v730, 7
    %v772 = vsel %vm742, %v770, %v771
    %v773 = vrot.slane %v76, 7
    %v774 = vrot.slane %v773, 2
    %v775 = vrot.slane %v110, 7
    %v776 = vsel %vm742, %v774, %v775
    %v777 = vrot.slane %v775, 2
    %v778 = vrot.slane %v111, 7
    %v779 = vsel %vm742, %v777, %v778
    %v780 = vrot.slane %v778, 2
    %v781 = vrot.slane %v731, 7
    %v782 = vsel %vm742, %v780, %v781
    %v783 = vrot.slane %v80, 7
    %v784 = vrot.slane %v783, 2
    %v785 = vrot.slane %v112, 7
    %v786 = vsel %vm742, %v784, %v785
    %v787 = vrot.slane %v785, 2
    %v788 = vrot.slane %v113, 7
    %v789 = vsel %vm742, %v787, %v788
    %v790 = vrot.slane %v788, 2
    %v791 = vrot.slane %v732, 7
    %v792 = vsel %vm742, %v790, %v791
    %v793 = vrot.slane %v84, 7
    %v794 = vrot.slane %v793, 2
    %v795 = vrot.slane %v114, 7
    %v796 = vsel %vm742, %v794, %v795
    %v797 = vrot.slane %v795, 2
    %v798 = vrot.slane %v115, 7
    %v799 = vsel %vm742, %v797, %v798
    %v800 = vrot.slane %v798, 2
    %v801 = vrot.slane %v733, 7
    %v802 = vsel %vm742, %v800, %v801
    %v803 = vrot.slane %v88, 7
    %v804 = vrot.slane %v803, 2
    %v805 = vrot.slane %v116, 7
    %v806 = vsel %vm742, %v804, %v805
    %v807 = vrot.slane %v805, 2
    %v808 = vrot.slane %v117, 7
    %v809 = vsel %vm742, %v807, %v808
    %v810 = vrot.slane %v808, 2
    %v811 = vrot.slane %v734, 7
    %v812 = vsel %vm742, %v810, %v811
    %v813 = vrot.slane %v92, 7
    %v814 = vrot.slane %v813, 2
    %v815 = vrot.slane %v118, 7
    %v816 = vsel %vm742, %v814, %v815
    %v817 = vrot.slane %v815, 2
    %v818 = vrot.slane %v119, 7
    %v819 = vsel %vm742, %v817, %v818
    %v820 = vrot.slane %v818, 2
    %v821 = vrot.slane %v735, 7
    %v822 = vsel %vm742, %v820, %v821
    %s823 = scalar_lea.vmem %s1, 256
    %v824 = vld [vmem:[%s823] sm:$0xff]
    %v825 = vld [vmem:[%s823 + $0x8] sm:$0xff]
    %v826 = vld [vmem:[%s823 + $0x10] sm:$0xff]
    %v827 = vld [vmem:[%s823 + $0x18] sm:$0xff]
    %v828 = vld [vmem:[%s823 + $0x20] sm:$0xff]
    %v829 = vld [vmem:[%s823 + $0x28] sm:$0xff]
    %v830 = vld [vmem:[%s823 + $0x30] sm:$0xff]
    %v831 = vld [vmem:[%s823 + $0x38] sm:$0xff]
    %832 = vst [vmem:[#allocation1] ss:$4 sm:$0xff] %v746
    %s833 = scalar_lea.vmem [#allocation1], 1
    %834 = vst [vmem:[%s833] ss:$4 sm:$0xff] %v749
    %s835 = scalar_lea.vmem [#allocation1], 2
    %836 = vst [vmem:[%s835] ss:$4 sm:$0xff] %v752
    %s837 = scalar_lea.vmem [#allocation1], 3
    %838 = vst [vmem:[%s837] ss:$4 sm:$0xff] %v756
    %s839 = scalar_lea.vmem [#allocation1], 32
    %840 = vst [vmem:[%s839] ss:$4 sm:$0xff] %v759
    %s841 = scalar_lea.vmem [#allocation1], 33
    %842 = vst [vmem:[%s841] ss:$4 sm:$0xff] %v762
    %s843 = scalar_lea.vmem [#allocation1], 34
    %844 = vst [vmem:[%s843] ss:$4 sm:$0xff] %v766
    %s845 = scalar_lea.vmem [#allocation1], 35
    %846 = vst [vmem:[%s845] ss:$4 sm:$0xff] %v769
    %v847 = vld.sshfl [vmem:[#allocation1] sm:$0xff pattern:$0x73625140]
    %v848 = vld.sshfl [vmem:[#allocation1 + $0x20] sm:$0xff pattern:$0x73625140]
    %849 = vst [vmem:[#allocation1] ss:$4 sm:$0xff] %v772
    %850 = vst [vmem:[%s833] ss:$4 sm:$0xff] %v776
    %851 = vst [vmem:[%s835] ss:$4 sm:$0xff] %v779
    %852 = vst [vmem:[%s837] ss:$4 sm:$0xff] %v782
    %853 = vst [vmem:[%s839] ss:$4 sm:$0xff] %v786
    %854 = vst [vmem:[%s841] ss:$4 sm:$0xff] %v789
    %855 = vst [vmem:[%s843] ss:$4 sm:$0xff] %v792
    %856 = vst [vmem:[%s845] ss:$4 sm:$0xff] %v796
    %v857 = vld.sshfl [vmem:[#allocation1] sm:$0xff pattern:$0x73625140]
    %v858 = vld.sshfl [vmem:[#allocation1 + $0x20] sm:$0xff pattern:$0x73625140]
    %859 = vst [vmem:[#allocation1] ss:$4 sm:$0xff] %v799
    %860 = vst [vmem:[%s833] ss:$4 sm:$0xff] %v802
    %861 = vst [vmem:[%s835] ss:$4 sm:$0xff] %v806
    %862 = vst [vmem:[%s837] ss:$4 sm:$0xff] %v809
    %863 = vst [vmem:[%s839] ss:$4 sm:$0xff] %v812
    %864 = vst [vmem:[%s841] ss:$4 sm:$0xff] %v816
    %865 = vst [vmem:[%s843] ss:$4 sm:$0xff] %v819
    %866 = vst [vmem:[%s845] ss:$4 sm:$0xff] %v822
    %v867 = vld.sshfl [vmem:[#allocation1] sm:$0xff pattern:$0x73625140]
    %v868 = vld.sshfl [vmem:[#allocation1 + $0x20] sm:$0xff pattern:$0x73625140]
    %v869 = vsel %vm198, %v847, 0
    %v871 = vsel %vm198, %v848, 0
    %v873 = vsel %vm198, %v857, 0
    %v875 = vsel %vm198, %v858, 0
    %v877 = vsel %vm198, %v867, 0
    %v879 = vsel %vm198, %v868, 0
    %881 = vmatpush.msra.mxu0 0.0
    %882 = vmatpush.msra.mxu0 0.0
    %883 = vmatpush.msra.mxu0 0.0
    %884 = vmatpush.msra.mxu0 0.0
    %885 = vmatpush.msra.mxu0 0.0
    %886 = vmatpush.msra.mxu0 0.0
    %887 = vmatpush.msra.mxu0 0.0
    %888 = vmatpush.msra.mxu0 0.0
    %889 = vmatpush.msra.mxu0 0.0
    %890 = vmatpush.msra.mxu0 0.0
    %891 = vmatpush.msra.mxu0 0.0
    %892 = vmatpush.msra.mxu0 0.0
    %893 = vmatpush.msra.mxu0 %v830
    %894 = vmatpush.msra.mxu0 %v828
    %895 = vmatpush.msra.mxu0 %v826
    %896 = vmatpush.msra.mxu0 %v824
    %897 = vmatmul.f32.gmra.mxu0 %v869
    %v898 = vpop.f32.mrf.mxu0
    %v899 = vadd.f32 0.0, %v898
    %900 = vmatmul.f32.gmra.mxu0 %v871
    %v901 = vpop.f32.mrf.mxu0
    %v902 = vadd.f32 0.0, %v901
    %903 = vmatmul.f32.gmra.mxu0 %v873
    %v904 = vpop.f32.mrf.mxu0
    %v905 = vadd.f32 0.0, %v904
    %906 = vmatmul.f32.gmra.mxu0 %v875
    %v907 = vpop.f32.mrf.mxu0
    %v908 = vadd.f32 0.0, %v907
    %909 = vmatmul.f32.gmra.mxu0 %v877
    %v910 = vpop.f32.mrf.mxu0
    %v911 = vadd.f32 0.0, %v910
    %912 = vmatmul.f32.gmra.mxu0 %v879
    %v913 = vpop.f32.mrf.mxu0
    %v914 = vadd.f32 0.0, %v913
    %915 = vdwg.mxu0
    %916 = vmatpush.msra.mxu0 0.0
    %917 = vmatpush.msra.mxu0 0.0
    %918 = vmatpush.msra.mxu0 0.0
    %919 = vmatpush.msra.mxu0 0.0
    %920 = vmatpush.msra.mxu0 0.0
    %921 = vmatpush.msra.mxu0 0.0
    %922 = vmatpush.msra.mxu0 0.0
    %923 = vmatpush.msra.mxu0 0.0
    %924 = vmatpush.msra.mxu0 0.0
    %925 = vmatpush.msra.mxu0 0.0
    %926 = vmatpush.msra.mxu0 0.0
    %927 = vmatpush.msra.mxu0 0.0
    %928 = vmatpush.msra.mxu0 %v831
    %929 = vmatpush.msra.mxu0 %v829
    %930 = vmatpush.msra.mxu0 %v827
    %931 = vmatpush.msra.mxu0 %v825
    %932 = vmatmul.f32.gmra.mxu0 %v869
    %v933 = vpop.f32.mrf.mxu0
    %v934 = vadd.f32 0.0, %v933
    %935 = vmatmul.f32.gmra.mxu0 %v871
    %v936 = vpop.f32.mrf.mxu0
    %v937 = vadd.f32 0.0, %v936
    %938 = vmatmul.f32.gmra.mxu0 %v873
    %v939 = vpop.f32.mrf.mxu0
    %v940 = vadd.f32 0.0, %v939
    %941 = vmatmul.f32.gmra.mxu0 %v875
    %v942 = vpop.f32.mrf.mxu0
    %v943 = vadd.f32 0.0, %v942
    %944 = vmatmul.f32.gmra.mxu0 %v877
    %v945 = vpop.f32.mrf.mxu0
    %v946 = vadd.f32 0.0, %v945
    %947 = vmatmul.f32.gmra.mxu0 %v879
    %v948 = vpop.f32.mrf.mxu0
    %v949 = vadd.f32 0.0, %v948
    %950 = vdwg.mxu0
    %v951 = vadd.f32 %v716, %v899
    %v952 = vadd.f32 %v717, %v934
    %v953 = vadd.f32 %v718, %v902
    %v954 = vadd.f32 %v719, %v937
    %v955 = vadd.f32 %v720, %v905
    %v956 = vadd.f32 %v721, %v940
    %v957 = vadd.f32 %v722, %v908
    %v958 = vadd.f32 %v723, %v943
    %v959 = vadd.f32 %v724, %v911
    %v960 = vadd.f32 %v725, %v946
    %v961 = vadd.f32 %v726, %v914
    %v962 = vadd.f32 %v727, %v949
    %963 = vst [vmem:[#allocation1] ss:$4 sm:$0xff] %v66
    %s964 = scalar_lea.vmem [#allocation1], 1
    %965 = vst [vmem:[%s964] ss:$4 sm:$0xff] %v408
    %s966 = scalar_lea.vmem [#allocation1], 2
    %967 = vst [vmem:[%s966] ss:$4 sm:$0xff] %v409
    %s968 = scalar_lea.vmem [#allocation1], 3
    %969 = vst [vmem:[%s968] ss:$4 sm:$0xff] %v70
    %s970 = scalar_lea.vmem [#allocation1], 32
    %971 = vst [vmem:[%s970] ss:$4 sm:$0xff] %v410
    %s972 = scalar_lea.vmem [#allocation1], 33
    %973 = vst [vmem:[%s972] ss:$4 sm:$0xff] %v411
    %s974 = scalar_lea.vmem [#allocation1], 34
    %975 = vst [vmem:[%s974] ss:$4 sm:$0xff] %v74
    %s976 = scalar_lea.vmem [#allocation1], 35
    %977 = vst [vmem:[%s976] ss:$4 sm:$0xff] %v412
    %v978 = vld.sshfl [vmem:[#allocation1] sm:$0xff pattern:$0x73625140]
    %v979 = vld.sshfl [vmem:[#allocation1 + $0x20] sm:$0xff pattern:$0x73625140]
    %980 = vst [vmem:[#allocation1] ss:$4 sm:$0xff] %v413
    %981 = vst [vmem:[%s964] ss:$4 sm:$0xff] %v78
    %982 = vst [vmem:[%s966] ss:$4 sm:$0xff] %v414
    %983 = vst [vmem:[%s968] ss:$4 sm:$0xff] %v415
    %984 = vst [vmem:[%s970] ss:$4 sm:$0xff] %v82
    %985 = vst [vmem:[%s972] ss:$4 sm:$0xff] %v416
    %986 = vst [vmem:[%s974] ss:$4 sm:$0xff] %v417
    %987 = vst [vmem:[%s976] ss:$4 sm:$0xff] %v86
    %v988 = vld.sshfl [vmem:[#allocation1] sm:$0xff pattern:$0x73625140]
    %v989 = vld.sshfl [vmem:[#allocation1 + $0x20] sm:$0xff pattern:$0x73625140]
    %990 = vst [vmem:[#allocation1] ss:$4 sm:$0xff] %v418
    %991 = vst [vmem:[%s964] ss:$4 sm:$0xff] %v419
    %992 = vst [vmem:[%s966] ss:$4 sm:$0xff] %v90
    %993 = vst [vmem:[%s968] ss:$4 sm:$0xff] %v420
    %994 = vst [vmem:[%s970] ss:$4 sm:$0xff] %v421
    %995 = vst [vmem:[%s972] ss:$4 sm:$0xff] %v94
    %996 = vst [vmem:[%s974] ss:$4 sm:$0xff] %v422
    %997 = vst [vmem:[%s976] ss:$4 sm:$0xff] %v423
    %v998 = vld.sshfl [vmem:[#allocation1] sm:$0xff pattern:$0x73625140]
    %v999 = vld.sshfl [vmem:[#allocation1 + $0x20] sm:$0xff pattern:$0x73625140]
    %v1000 = vsel %vm198, %v978, 0
    %v1002 = vsel %vm198, %v979, 0
    %v1004 = vsel %vm198, %v988, 0
    %v1006 = vsel %vm198, %v989, 0
    %v1008 = vsel %vm198, %v998, 0
    %v1010 = vsel %vm198, %v999, 0
    %1012 = vmatpush.msra.mxu0 0.0
    %1013 = vmatpush.msra.mxu0 0.0
    %1014 = vmatpush.msra.mxu0 0.0
    %1015 = vmatpush.msra.mxu0 0.0
    %1016 = vmatpush.msra.mxu0 0.0
    %1017 = vmatpush.msra.mxu0 0.0
    %1018 = vmatpush.msra.mxu0 0.0
    %1019 = vmatpush.msra.mxu0 0.0
    %1020 = vmatpush.msra.mxu0 0.0
    %1021 = vmatpush.msra.mxu0 0.0
    %1022 = vmatpush.msra.mxu0 0.0
    %1023 = vmatpush.msra.mxu0 0.0
    %1024 = vmatpush.msra.mxu0 %v159
    %1025 = vmatpush.msra.mxu0 %v157
    %1026 = vmatpush.msra.mxu0 %v155
    %1027 = vmatpush.msra.mxu0 %v153
    %1028 = vmatmul.f32.gmra.mxu0 %v1000
    %v1029 = vpop.f32.mrf.mxu0
    %v1030 = vadd.f32 0.0, %v1029
    %1031 = vmatmul.f32.gmra.mxu0 %v1002
    %v1032 = vpop.f32.mrf.mxu0
    %v1033 = vadd.f32 0.0, %v1032
    %1034 = vmatmul.f32.gmra.mxu0 %v1004
    %v1035 = vpop.f32.mrf.mxu0
    %v1036 = vadd.f32 0.0, %v1035
    %1037 = vmatmul.f32.gmra.mxu0 %v1006
    %v1038 = vpop.f32.mrf.mxu0
    %v1039 = vadd.f32 0.0, %v1038
    %1040 = vmatmul.f32.gmra.mxu0 %v1008
    %v1041 = vpop.f32.mrf.mxu0
    %v1042 = vadd.f32 0.0, %v1041
    %1043 = vmatmul.f32.gmra.mxu0 %v1010
    %v1044 = vpop.f32.mrf.mxu0
    %v1045 = vadd.f32 0.0, %v1044
    %1046 = vdwg.mxu0
    %1047 = vmatpush.msra.mxu0 0.0
    %1048 = vmatpush.msra.mxu0 0.0
    %1049 = vmatpush.msra.mxu0 0.0
    %1050 = vmatpush.msra.mxu0 0.0
    %1051 = vmatpush.msra.mxu0 0.0
    %1052 = vmatpush.msra.mxu0 0.0
    %1053 = vmatpush.msra.mxu0 0.0
    %1054 = vmatpush.msra.mxu0 0.0
    %1055 = vmatpush.msra.mxu0 0.0
    %1056 = vmatpush.msra.mxu0 0.0
    %1057 = vmatpush.msra.mxu0 0.0
    %1058 = vmatpush.msra.mxu0 0.0
    %1059 = vmatpush.msra.mxu0 %v160
    %1060 = vmatpush.msra.mxu0 %v158
    %1061 = vmatpush.msra.mxu0 %v156
    %1062 = vmatpush.msra.mxu0 %v154
    %1063 = vmatmul.f32.gmra.mxu0 %v1000
    %v1064 = vpop.f32.mrf.mxu0
    %v1065 = vadd.f32 0.0, %v1064
    %1066 = vmatmul.f32.gmra.mxu0 %v1002
    %v1067 = vpop.f32.mrf.mxu0
    %v1068 = vadd.f32 0.0, %v1067
    %1069 = vmatmul.f32.gmra.mxu0 %v1004
    %v1070 = vpop.f32.mrf.mxu0
    %v1071 = vadd.f32 0.0, %v1070
    %1072 = vmatmul.f32.gmra.mxu0 %v1006
    %v1073 = vpop.f32.mrf.mxu0
    %v1074 = vadd.f32 0.0, %v1073
    %1075 = vmatmul.f32.gmra.mxu0 %v1008
    %v1076 = vpop.f32.mrf.mxu0
    %v1077 = vadd.f32 0.0, %v1076
    %1078 = vmatmul.f32.gmra.mxu0 %v1010
    %v1079 = vpop.f32.mrf.mxu0
    %v1080 = vadd.f32 0.0, %v1079
    %1081 = vdwg.mxu0
    %1082 = vst [vmem:[#allocation1] ss:$4 sm:$0xff] %v65
    %s1083 = scalar_lea.vmem [#allocation1], 1
    %1084 = vst [vmem:[%s1083] ss:$4 sm:$0xff] %v136
    %s1085 = scalar_lea.vmem [#allocation1], 2
    %1086 = vst [vmem:[%s1085] ss:$4 sm:$0xff] %v137
    %s1087 = scalar_lea.vmem [#allocation1], 3
    %1088 = vst [vmem:[%s1087] ss:$4 sm:$0xff] %v69
    %s1089 = scalar_lea.vmem [#allocation1], 32
    %1090 = vst [vmem:[%s1089] ss:$4 sm:$0xff] %v138
    %s1091 = scalar_lea.vmem [#allocation1], 33
    %1092 = vst [vmem:[%s1091] ss:$4 sm:$0xff] %v139
    %s1093 = scalar_lea.vmem [#allocation1], 34
    %1094 = vst [vmem:[%s1093] ss:$4 sm:$0xff] %v73
    %s1095 = scalar_lea.vmem [#allocation1], 35
    %1096 = vst [vmem:[%s1095] ss:$4 sm:$0xff] %v140
    %v1097 = vld.sshfl [vmem:[#allocation1] sm:$0xff pattern:$0x73625140]
    %v1098 = vld.sshfl [vmem:[#allocation1 + $0x20] sm:$0xff pattern:$0x73625140]
    %1099 = vst [vmem:[#allocation1] ss:$4 sm:$0xff] %v141
    %1100 = vst [vmem:[%s1083] ss:$4 sm:$0xff] %v77
    %1101 = vst [vmem:[%s1085] ss:$4 sm:$0xff] %v142
    %1102 = vst [vmem:[%s1087] ss:$4 sm:$0xff] %v143
    %1103 = vst [vmem:[%s1089] ss:$4 sm:$0xff] %v81
    %1104 = vst [vmem:[%s1091] ss:$4 sm:$0xff] %v144
    %1105 = vst [vmem:[%s1093] ss:$4 sm:$0xff] %v145
    %1106 = vst [vmem:[%s1095] ss:$4 sm:$0xff] %v85
    %v1107 = vld.sshfl [vmem:[#allocation1] sm:$0xff pattern:$0x73625140]
    %v1108 = vld.sshfl [vmem:[#allocation1 + $0x20] sm:$0xff pattern:$0x73625140]
    %1109 = vst [vmem:[#allocation1] ss:$4 sm:$0xff] %v146
    %1110 = vst [vmem:[%s1083] ss:$4 sm:$0xff] %v147
    %1111 = vst [vmem:[%s1085] ss:$4 sm:$0xff] %v89
    %1112 = vst [vmem:[%s1087] ss:$4 sm:$0xff] %v148
    %1113 = vst [vmem:[%s1089] ss:$4 sm:$0xff] %v149
    %1114 = vst [vmem:[%s1091] ss:$4 sm:$0xff] %v93
    %1115 = vst [vmem:[%s1093] ss:$4 sm:$0xff] %v150
    %1116 = vst [vmem:[%s1095] ss:$4 sm:$0xff] %v151
    %v1117 = vld.sshfl [vmem:[#allocation1] sm:$0xff pattern:$0x73625140]
    %v1118 = vld.sshfl [vmem:[#allocation1 + $0x20] sm:$0xff pattern:$0x73625140]
    %v1119 = vsel %vm198, %v1097, 0
    %v1121 = vsel %vm198, %v1098, 0
    %v1123 = vsel %vm198, %v1107, 0
    %v1125 = vsel %vm198, %v1108, 0
    %v1127 = vsel %vm198, %v1117, 0
    %v1129 = vsel %vm198, %v1118, 0
    %1131 = vmatpush.msra.mxu0 0.0
    %1132 = vmatpush.msra.mxu0 0.0
    %1133 = vmatpush.msra.mxu0 0.0
    %1134 = vmatpush.msra.mxu0 0.0
    %1135 = vmatpush.msra.mxu0 0.0
    %1136 = vmatpush.msra.mxu0 0.0
    %1137 = vmatpush.msra.mxu0 0.0
    %1138 = vmatpush.msra.mxu0 0.0
    %1139 = vmatpush.msra.mxu0 0.0
    %1140 = vmatpush.msra.mxu0 0.0
    %1141 = vmatpush.msra.mxu0 0.0
    %1142 = vmatpush.msra.mxu0 0.0
    %1143 = vmatpush.msra.mxu0 %v126
    %1144 = vmatpush.msra.mxu0 %v124
    %1145 = vmatpush.msra.mxu0 %v122
    %1146 = vmatpush.msra.mxu0 %v120
    %1147 = vmatmul.f32.gmra.mxu0 %v1119
    %v1148 = vpop.f32.mrf.mxu0
    %v1149 = vadd.f32 %v1030, %v1148
    %1150 = vmatmul.f32.gmra.mxu0 %v1121
    %v1151 = vpop.f32.mrf.mxu0
    %v1152 = vadd.f32 %v1033, %v1151
    %1153 = vmatmul.f32.gmra.mxu0 %v1123
    %v1154 = vpop.f32.mrf.mxu0
    %v1155 = vadd.f32 %v1036, %v1154
    %1156 = vmatmul.f32.gmra.mxu0 %v1125
    %v1157 = vpop.f32.mrf.mxu0
    %v1158 = vadd.f32 %v1039, %v1157
    %1159 = vmatmul.f32.gmra.mxu0 %v1127
    %v1160 = vpop.f32.mrf.mxu0
    %v1161 = vadd.f32 %v1042, %v1160
    %1162 = vmatmul.f32.gmra.mxu0 %v1129
    %v1163 = vpop.f32.mrf.mxu0
    %v1164 = vadd.f32 %v1045, %v1163
    %1165 = vdwg.mxu0
    %1166 = vmatpush.msra.mxu0 0.0
    %1167 = vmatpush.msra.mxu0 0.0
    %1168 = vmatpush.msra.mxu0 0.0
    %1169 = vmatpush.msra.mxu0 0.0
    %1170 = vmatpush.msra.mxu0 0.0
    %1171 = vmatpush.msra.mxu0 0.0
    %1172 = vmatpush.msra.mxu0 0.0
    %1173 = vmatpush.msra.mxu0 0.0
    %1174 = vmatpush.msra.mxu0 0.0
    %1175 = vmatpush.msra.mxu0 0.0
    %1176 = vmatpush.msra.mxu0 0.0
    %1177 = vmatpush.msra.mxu0 0.0
    %1178 = vmatpush.msra.mxu0 %v127
    %1179 = vmatpush.msra.mxu0 %v125
    %1180 = vmatpush.msra.mxu0 %v123
    %1181 = vmatpush.msra.mxu0 %v121
    %1182 = vmatmul.f32.gmra.mxu0 %v1119
    %v1183 = vpop.f32.mrf.mxu0
    %v1184 = vadd.f32 %v1065, %v1183
    %1185 = vmatmul.f32.gmra.mxu0 %v1121
    %v1186 = vpop.f32.mrf.mxu0
    %v1187 = vadd.f32 %v1068, %v1186
    %1188 = vmatmul.f32.gmra.mxu0 %v1123
    %v1189 = vpop.f32.mrf.mxu0
    %v1190 = vadd.f32 %v1071, %v1189
    %1191 = vmatmul.f32.gmra.mxu0 %v1125
    %v1192 = vpop.f32.mrf.mxu0
    %v1193 = vadd.f32 %v1074, %v1192
    %1194 = vmatmul.f32.gmra.mxu0 %v1127
    %v1195 = vpop.f32.mrf.mxu0
    %v1196 = vadd.f32 %v1077, %v1195
    %1197 = vmatmul.f32.gmra.mxu0 %v1129
    %v1198 = vpop.f32.mrf.mxu0
    %v1199 = vadd.f32 %v1080, %v1198
    %1200 = vdwg.mxu0
    %1201 = vst [vmem:[#allocation1] ss:$4 sm:$0xff] %v67
    %s1202 = scalar_lea.vmem [#allocation1], 1
    %1203 = vst [vmem:[%s1202] ss:$4 sm:$0xff] %v572
    %s1204 = scalar_lea.vmem [#allocation1], 2
    %1205 = vst [vmem:[%s1204] ss:$4 sm:$0xff] %v573
    %s1206 = scalar_lea.vmem [#allocation1], 3
    %1207 = vst [vmem:[%s1206] ss:$4 sm:$0xff] %v71
    %s1208 = scalar_lea.vmem [#allocation1], 32
    %1209 = vst [vmem:[%s1208] ss:$4 sm:$0xff] %v574
    %s1210 = scalar_lea.vmem [#allocation1], 33
    %1211 = vst [vmem:[%s1210] ss:$4 sm:$0xff] %v575
    %s1212 = scalar_lea.vmem [#allocation1], 34
    %1213 = vst [vmem:[%s1212] ss:$4 sm:$0xff] %v75
    %s1214 = scalar_lea.vmem [#allocation1], 35
    %1215 = vst [vmem:[%s1214] ss:$4 sm:$0xff] %v576
    %v1216 = vld.sshfl [vmem:[#allocation1] sm:$0xff pattern:$0x73625140]
    %v1217 = vld.sshfl [vmem:[#allocation1 + $0x20] sm:$0xff pattern:$0x73625140]
    %1218 = vst [vmem:[#allocation1] ss:$4 sm:$0xff] %v577
    %1219 = vst [vmem:[%s1202] ss:$4 sm:$0xff] %v79
    %1220 = vst [vmem:[%s1204] ss:$4 sm:$0xff] %v578
    %1221 = vst [vmem:[%s1206] ss:$4 sm:$0xff] %v579
    %1222 = vst [vmem:[%s1208] ss:$4 sm:$0xff] %v83
    %1223 = vst [vmem:[%s1210] ss:$4 sm:$0xff] %v580
    %1224 = vst [vmem:[%s1212] ss:$4 sm:$0xff] %v581
    %1225 = vst [vmem:[%s1214] ss:$4 sm:$0xff] %v87
    %v1226 = vld.sshfl [vmem:[#allocation1] sm:$0xff pattern:$0x73625140]
    %v1227 = vld.sshfl [vmem:[#allocation1 + $0x20] sm:$0xff pattern:$0x73625140]
    %1228 = vst [vmem:[#allocation1] ss:$4 sm:$0xff] %v582
    %1229 = vst [vmem:[%s1202] ss:$4 sm:$0xff] %v583
    %1230 = vst [vmem:[%s1204] ss:$4 sm:$0xff] %v91
    %1231 = vst [vmem:[%s1206] ss:$4 sm:$0xff] %v584
    %1232 = vst [vmem:[%s1208] ss:$4 sm:$0xff] %v585
    %1233 = vst [vmem:[%s1210] ss:$4 sm:$0xff] %v95
    %1234 = vst [vmem:[%s1212] ss:$4 sm:$0xff] %v586
    %1235 = vst [vmem:[%s1214] ss:$4 sm:$0xff] %v587
    %v1236 = vld.sshfl [vmem:[#allocation1] sm:$0xff pattern:$0x73625140]
    %v1237 = vld.sshfl [vmem:[#allocation1 + $0x20] sm:$0xff pattern:$0x73625140]
    %v1238 = vsel %vm198, %v1216, 0
    %v1240 = vsel %vm198, %v1217, 0
    %v1242 = vsel %vm198, %v1226, 0
    %v1244 = vsel %vm198, %v1227, 0
    %v1246 = vsel %vm198, %v1236, 0
    %v1248 = vsel %vm198, %v1237, 0
    %1250 = vmatpush.msra.mxu0 0.0
    %1251 = vmatpush.msra.mxu0 0.0
    %1252 = vmatpush.msra.mxu0 0.0
    %1253 = vmatpush.msra.mxu0 0.0
    %1254 = vmatpush.msra.mxu0 0.0
    %1255 = vmatpush.msra.mxu0 0.0
    %1256 = vmatpush.msra.mxu0 0.0
    %1257 = vmatpush.msra.mxu0 0.0
    %1258 = vmatpush.msra.mxu0 0.0
    %1259 = vmatpush.msra.mxu0 0.0
    %1260 = vmatpush.msra.mxu0 0.0
    %1261 = vmatpush.msra.mxu0 0.0
    %1262 = vmatpush.msra.mxu0 %v431
    %1263 = vmatpush.msra.mxu0 %v429
    %1264 = vmatpush.msra.mxu0 %v427
    %1265 = vmatpush.msra.mxu0 %v425
    %1266 = vmatmul.f32.gmra.mxu0 %v1238
    %v1267 = vpop.f32.mrf.mxu0
    %v1268 = vadd.f32 0.0, %v1267
    %1269 = vmatmul.f32.gmra.mxu0 %v1240
    %v1270 = vpop.f32.mrf.mxu0
    %v1271 = vadd.f32 0.0, %v1270
    %1272 = vmatmul.f32.gmra.mxu0 %v1242
    %v1273 = vpop.f32.mrf.mxu0
    %v1274 = vadd.f32 0.0, %v1273
    %1275 = vmatmul.f32.gmra.mxu0 %v1244
    %v1276 = vpop.f32.mrf.mxu0
    %v1277 = vadd.f32 0.0, %v1276
    %1278 = vmatmul.f32.gmra.mxu0 %v1246
    %v1279 = vpop.f32.mrf.mxu0
    %v1280 = vadd.f32 0.0, %v1279
    %1281 = vmatmul.f32.gmra.mxu0 %v1248
    %v1282 = vpop.f32.mrf.mxu0
    %v1283 = vadd.f32 0.0, %v1282
    %1284 = vdwg.mxu0
    %1285 = vmatpush.msra.mxu0 0.0
    %1286 = vmatpush.msra.mxu0 0.0
    %1287 = vmatpush.msra.mxu0 0.0
    %1288 = vmatpush.msra.mxu0 0.0
    %1289 = vmatpush.msra.mxu0 0.0
    %1290 = vmatpush.msra.mxu0 0.0
    %1291 = vmatpush.msra.mxu0 0.0
    %1292 = vmatpush.msra.mxu0 0.0
    %1293 = vmatpush.msra.mxu0 0.0
    %1294 = vmatpush.msra.mxu0 0.0
    %1295 = vmatpush.msra.mxu0 0.0
    %1296 = vmatpush.msra.mxu0 0.0
    %1297 = vmatpush.msra.mxu0 %v432
    %1298 = vmatpush.msra.mxu0 %v430
    %1299 = vmatpush.msra.mxu0 %v428
    %1300 = vmatpush.msra.mxu0 %v426
    %1301 = vmatmul.f32.gmra.mxu0 %v1238
    %v1302 = vpop.f32.mrf.mxu0
    %v1303 = vadd.f32 0.0, %v1302
    %1304 = vmatmul.f32.gmra.mxu0 %v1240
    %v1305 = vpop.f32.mrf.mxu0
    %v1306 = vadd.f32 0.0, %v1305
    %1307 = vmatmul.f32.gmra.mxu0 %v1242
    %v1308 = vpop.f32.mrf.mxu0
    %v1309 = vadd.f32 0.0, %v1308
    %1310 = vmatmul.f32.gmra.mxu0 %v1244
    %v1311 = vpop.f32.mrf.mxu0
    %v1312 = vadd.f32 0.0, %v1311
    %1313 = vmatmul.f32.gmra.mxu0 %v1246
    %v1314 = vpop.f32.mrf.mxu0
    %v1315 = vadd.f32 0.0, %v1314
    %1316 = vmatmul.f32.gmra.mxu0 %v1248
    %v1317 = vpop.f32.mrf.mxu0
    %v1318 = vadd.f32 0.0, %v1317
    %1319 = vdwg.mxu0
    %v1320 = vadd.f32 %v1149, %v1268
    %v1321 = vadd.f32 %v1184, %v1303
    %v1322 = vadd.f32 %v1152, %v1271
    %v1323 = vadd.f32 %v1187, %v1306
    %v1324 = vadd.f32 %v1155, %v1274
    %v1325 = vadd.f32 %v1190, %v1309
    %v1326 = vadd.f32 %v1158, %v1277
    %v1327 = vadd.f32 %v1193, %v1312
    %v1328 = vadd.f32 %v1161, %v1280
    %v1329 = vadd.f32 %v1196, %v1315
    %v1330 = vadd.f32 %v1164, %v1283
    %v1331 = vadd.f32 %v1199, %v1318
    %1332 = vst [vmem:[#allocation1] ss:$4 sm:$0xff] %v746
    %s1333 = scalar_lea.vmem [#allocation1], 1
    %1334 = vst [vmem:[%s1333] ss:$4 sm:$0xff] %v749
    %s1335 = scalar_lea.vmem [#allocation1], 2
    %1336 = vst [vmem:[%s1335] ss:$4 sm:$0xff] %v752
    %s1337 = scalar_lea.vmem [#allocation1], 3
    %1338 = vst [vmem:[%s1337] ss:$4 sm:$0xff] %v756
    %s1339 = scalar_lea.vmem [#allocation1], 32
    %1340 = vst [vmem:[%s1339] ss:$4 sm:$0xff] %v759
    %s1341 = scalar_lea.vmem [#allocation1], 33
    %1342 = vst [vmem:[%s1341] ss:$4 sm:$0xff] %v762
    %s1343 = scalar_lea.vmem [#allocation1], 34
    %1344 = vst [vmem:[%s1343] ss:$4 sm:$0xff] %v766
    %s1345 = scalar_lea.vmem [#allocation1], 35
    %1346 = vst [vmem:[%s1345] ss:$4 sm:$0xff] %v769
    %v1347 = vld.sshfl [vmem:[#allocation1] sm:$0xff pattern:$0x73625140]
    %v1348 = vld.sshfl [vmem:[#allocation1 + $0x20] sm:$0xff pattern:$0x73625140]
    %1349 = vst [vmem:[#allocation1] ss:$4 sm:$0xff] %v772
    %1350 = vst [vmem:[%s1333] ss:$4 sm:$0xff] %v776
    %1351 = vst [vmem:[%s1335] ss:$4 sm:$0xff] %v779
    %1352 = vst [vmem:[%s1337] ss:$4 sm:$0xff] %v782
    %1353 = vst [vmem:[%s1339] ss:$4 sm:$0xff] %v786
    %1354 = vst [vmem:[%s1341] ss:$4 sm:$0xff] %v789
    %1355 = vst [vmem:[%s1343] ss:$4 sm:$0xff] %v792
    %1356 = vst [vmem:[%s1345] ss:$4 sm:$0xff] %v796
    %v1357 = vld.sshfl [vmem:[#allocation1] sm:$0xff pattern:$0x73625140]
    %v1358 = vld.sshfl [vmem:[#allocation1 + $0x20] sm:$0xff pattern:$0x73625140]
    %1359 = vst [vmem:[#allocation1] ss:$4 sm:$0xff] %v799
    %1360 = vst [vmem:[%s1333] ss:$4 sm:$0xff] %v802
    %1361 = vst [vmem:[%s1335] ss:$4 sm:$0xff] %v806
    %1362 = vst [vmem:[%s1337] ss:$4 sm:$0xff] %v809
    %1363 = vst [vmem:[%s1339] ss:$4 sm:$0xff] %v812
    %1364 = vst [vmem:[%s1341] ss:$4 sm:$0xff] %v816
    %1365 = vst [vmem:[%s1343] ss:$4 sm:$0xff] %v819
    %1366 = vst [vmem:[%s1345] ss:$4 sm:$0xff] %v822
    %v1367 = vld.sshfl [vmem:[#allocation1] sm:$0xff pattern:$0x73625140]
    %v1368 = vld.sshfl [vmem:[#allocation1 + $0x20] sm:$0xff pattern:$0x73625140]
    %v1369 = vsel %vm198, %v1347, 0
    %v1371 = vsel %vm198, %v1348, 0
    %v1373 = vsel %vm198, %v1357, 0
    %v1375 = vsel %vm198, %v1358, 0
    %v1377 = vsel %vm198, %v1367, 0
    %v1379 = vsel %vm198, %v1368, 0
    %1381 = vmatpush.msra.mxu0 0.0
    %1382 = vmatpush.msra.mxu0 0.0
    %1383 = vmatpush.msra.mxu0 0.0
    %1384 = vmatpush.msra.mxu0 0.0
    %1385 = vmatpush.msra.mxu0 0.0
    %1386 = vmatpush.msra.mxu0 0.0
    %1387 = vmatpush.msra.mxu0 0.0
    %1388 = vmatpush.msra.mxu0 0.0
    %1389 = vmatpush.msra.mxu0 0.0
    %1390 = vmatpush.msra.mxu0 0.0
    %1391 = vmatpush.msra.mxu0 0.0
    %1392 = vmatpush.msra.mxu0 0.0
    %1393 = vmatpush.msra.mxu0 %v595
    %1394 = vmatpush.msra.mxu0 %v593
    %1395 = vmatpush.msra.mxu0 %v591
    %1396 = vmatpush.msra.mxu0 %v589
    %1397 = vmatmul.f32.gmra.mxu0 %v1369
    %v1398 = vpop.f32.mrf.mxu0
    %v1399 = vadd.f32 0.0, %v1398
    %1400 = vmatmul.f32.gmra.mxu0 %v1371
    %v1401 = vpop.f32.mrf.mxu0
    %v1402 = vadd.f32 0.0, %v1401
    %1403 = vmatmul.f32.gmra.mxu0 %v1373
    %v1404 = vpop.f32.mrf.mxu0
    %v1405 = vadd.f32 0.0, %v1404
    %1406 = vmatmul.f32.gmra.mxu0 %v1375
    %v1407 = vpop.f32.mrf.mxu0
    %v1408 = vadd.f32 0.0, %v1407
    %1409 = vmatmul.f32.gmra.mxu0 %v1377
    %v1410 = vpop.f32.mrf.mxu0
    %v1411 = vadd.f32 0.0, %v1410
    %1412 = vmatmul.f32.gmra.mxu0 %v1379
    %v1413 = vpop.f32.mrf.mxu0
    %v1414 = vadd.f32 0.0, %v1413
    %1415 = vdwg.mxu0
    %1416 = vmatpush.msra.mxu0 0.0
    %1417 = vmatpush.msra.mxu0 0.0
    %1418 = vmatpush.msra.mxu0 0.0
    %1419 = vmatpush.msra.mxu0 0.0
    %1420 = vmatpush.msra.mxu0 0.0
    %1421 = vmatpush.msra.mxu0 0.0
    %1422 = vmatpush.msra.mxu0 0.0
    %1423 = vmatpush.msra.mxu0 0.0
    %1424 = vmatpush.msra.mxu0 0.0
    %1425 = vmatpush.msra.mxu0 0.0
    %1426 = vmatpush.msra.mxu0 0.0
    %1427 = vmatpush.msra.mxu0 0.0
    %1428 = vmatpush.msra.mxu0 %v596
    %1429 = vmatpush.msra.mxu0 %v594
    %1430 = vmatpush.msra.mxu0 %v592
    %1431 = vmatpush.msra.mxu0 %v590
    %1432 = vmatmul.f32.gmra.mxu0 %v1369
    %v1433 = vpop.f32.mrf.mxu0
    %v1434 = vadd.f32 0.0, %v1433
    %1435 = vmatmul.f32.gmra.mxu0 %v1371
    %v1436 = vpop.f32.mrf.mxu0
    %v1437 = vadd.f32 0.0, %v1436
    %1438 = vmatmul.f32.gmra.mxu0 %v1373
    %v1439 = vpop.f32.mrf.mxu0
    %v1440 = vadd.f32 0.0, %v1439
    %1441 = vmatmul.f32.gmra.mxu0 %v1375
    %v1442 = vpop.f32.mrf.mxu0
    %v1443 = vadd.f32 0.0, %v1442
    %1444 = vmatmul.f32.gmra.mxu0 %v1377
    %v1445 = vpop.f32.mrf.mxu0
    %v1446 = vadd.f32 0.0, %v1445
    %1447 = vmatmul.f32.gmra.mxu0 %v1379
    %v1448 = vpop.f32.mrf.mxu0
    %v1449 = vadd.f32 0.0, %v1448
    %1450 = vdwg.mxu0
    %v1451 = vadd.f32 %v1320, %v1399
    %v1452 = vadd.f32 %v1321, %v1434
    %v1453 = vadd.f32 %v1322, %v1402
    %v1454 = vadd.f32 %v1323, %v1437
    %v1455 = vadd.f32 %v1324, %v1405
    %v1456 = vadd.f32 %v1325, %v1440
    %v1457 = vadd.f32 %v1326, %v1408
    %v1458 = vadd.f32 %v1327, %v1443
    %v1459 = vadd.f32 %v1328, %v1411
    %v1460 = vadd.f32 %v1329, %v1446
    %v1461 = vadd.f32 %v1330, %v1414
    %v1462 = vadd.f32 %v1331, %v1449
    %v1463 = vrot.slane %v65, 6
    %v1464 = vrot.slane %v69, 6
    %v1465 = vrot.slane %v73, 6
    %v1466 = vrot.slane %v77, 6
    %v1467 = vrot.slane %v81, 6
    %v1468 = vrot.slane %v85, 6
    %v1469 = vrot.slane %v89, 6
    %v1470 = vrot.slane %v93, 6
    %v1471 = vrot.slane %v65, 7
    %v1472 = vrot.slane %v1471, 2
    %v1473 = vrot.slane %v136, 7
    %v1474 = vsel %vm742, %v1472, %v1473
    %v1475 = vrot.slane %v1473, 2
    %v1476 = vrot.slane %v137, 7
    %v1477 = vsel %vm742, %v1475, %v1476
    %v1478 = vrot.slane %v1476, 2
    %v1479 = vrot.slane %v1463, 7
    %v1480 = vsel %vm742, %v1478, %v1479
    %v1481 = vrot.slane %v69, 7
    %v1482 = vrot.slane %v1481, 2
    %v1483 = vrot.slane %v138, 7
    %v1484 = vsel %vm742, %v1482, %v1483
    %v1485 = vrot.slane %v1483, 2
    %v1486 = vrot.slane %v139, 7
    %v1487 = vsel %vm742, %v1485, %v1486
    %v1488 = vrot.slane %v1486, 2
    %v1489 = vrot.slane %v1464, 7
    %v1490 = vsel %vm742, %v1488, %v1489
    %v1491 = vrot.slane %v73, 7
    %v1492 = vrot.slane %v1491, 2
    %v1493 = vrot.slane %v140, 7
    %v1494 = vsel %vm742, %v1492, %v1493
    %v1495 = vrot.slane %v1493, 2
    %v1496 = vrot.slane %v141, 7
    %v1497 = vsel %vm742, %v1495, %v1496
    %v1498 = vrot.slane %v1496, 2
    %v1499 = vrot.slane %v1465, 7
    %v1500 = vsel %vm742, %v1498, %v1499
    %v1501 = vrot.slane %v77, 7
    %v1502 = vrot.slane %v1501, 2
    %v1503 = vrot.slane %v142, 7
    %v1504 = vsel %vm742, %v1502, %v1503
    %v1505 = vrot.slane %v1503, 2
    %v1506 = vrot.slane %v143, 7
    %v1507 = vsel %vm742, %v1505, %v1506
    %v1508 = vrot.slane %v1506, 2
    %v1509 = vrot.slane %v1466, 7
    %v1510 = vsel %vm742, %v1508, %v1509
    %v1511 = vrot.slane %v81, 7
    %v1512 = vrot.slane %v1511, 2
    %v1513 = vrot.slane %v144, 7
    %v1514 = vsel %vm742, %v1512, %v1513
    %v1515 = vrot.slane %v1513, 2
    %v1516 = vrot.slane %v145, 7
    %v1517 = vsel %vm742, %v1515, %v1516
    %v1518 = vrot.slane %v1516, 2
    %v1519 = vrot.slane %v1467, 7
    %v1520 = vsel %vm742, %v1518, %v1519
    %v1521 = vrot.slane %v85, 7
    %v1522 = vrot.slane %v1521, 2
    %v1523 = vrot.slane %v146, 7
    %v1524 = vsel %vm742, %v1522, %v1523
    %v1525 = vrot.slane %v1523, 2
    %v1526 = vrot.slane %v147, 7
    %v1527 = vsel %vm742, %v1525, %v1526
    %v1528 = vrot.slane %v1526, 2
    %v1529 = vrot.slane %v1468, 7
    %v1530 = vsel %vm742, %v1528, %v1529
    %v1531 = vrot.slane %v89, 7
    %v1532 = vrot.slane %v1531, 2
    %v1533 = vrot.slane %v148, 7
    %v1534 = vsel %vm742, %v1532, %v1533
    %v1535 = vrot.slane %v1533, 2
    %v1536 = vrot.slane %v149, 7
    %v1537 = vsel %vm742, %v1535, %v1536
    %v1538 = vrot.slane %v1536, 2
    %v1539 = vrot.slane %v1469, 7
    %v1540 = vsel %vm742, %v1538, %v1539
    %v1541 = vrot.slane %v93, 7
    %v1542 = vrot.slane %v1541, 2
    %v1543 = vrot.slane %v150, 7
    %v1544 = vsel %vm742, %v1542, %v1543
    %v1545 = vrot.slane %v1543, 2
    %v1546 = vrot.slane %v151, 7
    %v1547 = vsel %vm742, %v1545, %v1546
    %v1548 = vrot.slane %v1546, 2
    %v1549 = vrot.slane %v1470, 7
    %v1550 = vsel %vm742, %v1548, %v1549
    %1551 = vst [vmem:[#allocation1] ss:$4 sm:$0xff] %v1474
    %s1552 = scalar_lea.vmem [#allocation1], 1
    %1553 = vst [vmem:[%s1552] ss:$4 sm:$0xff] %v1477
    %s1554 = scalar_lea.vmem [#allocation1], 2
    %1555 = vst [vmem:[%s1554] ss:$4 sm:$0xff] %v1480
    %s1556 = scalar_lea.vmem [#allocation1], 3
    %1557 = vst [vmem:[%s1556] ss:$4 sm:$0xff] %v1484
    %s1558 = scalar_lea.vmem [#allocation1], 32
    %1559 = vst [vmem:[%s1558] ss:$4 sm:$0xff] %v1487
    %s1560 = scalar_lea.vmem [#allocation1], 33
    %1561 = vst [vmem:[%s1560] ss:$4 sm:$0xff] %v1490
    %s1562 = scalar_lea.vmem [#allocation1], 34
    %1563 = vst [vmem:[%s1562] ss:$4 sm:$0xff] %v1494
    %s1564 = scalar_lea.vmem [#allocation1], 35
    %1565 = vst [vmem:[%s1564] ss:$4 sm:$0xff] %v1497
    %v1566 = vld.sshfl [vmem:[#allocation1] sm:$0xff pattern:$0x73625140]
    %v1567 = vld.sshfl [vmem:[#allocation1 + $0x20] sm:$0xff pattern:$0x73625140]
    %1568 = vst [vmem:[#allocation1] ss:$4 sm:$0xff] %v1500
    %1569 = vst [vmem:[%s1552] ss:$4 sm:$0xff] %v1504
    %1570 = vst [vmem:[%s1554] ss:$4 sm:$0xff] %v1507
    %1571 = vst [vmem:[%s1556] ss:$4 sm:$0xff] %v1510
    %1572 = vst [vmem:[%s1558] ss:$4 sm:$0xff] %v1514
    %1573 = vst [vmem:[%s1560] ss:$4 sm:$0xff] %v1517
    %1574 = vst [vmem:[%s1562] ss:$4 sm:$0xff] %v1520
    %1575 = vst [vmem:[%s1564] ss:$4 sm:$0xff] %v1524
    %v1576 = vld.sshfl [vmem:[#allocation1] sm:$0xff pattern:$0x73625140]
    %v1577 = vld.sshfl [vmem:[#allocation1 + $0x20] sm:$0xff pattern:$0x73625140]
    %1578 = vst [vmem:[#allocation1] ss:$4 sm:$0xff] %v1527
    %1579 = vst [vmem:[%s1552] ss:$4 sm:$0xff] %v1530
    %1580 = vst [vmem:[%s1554] ss:$4 sm:$0xff] %v1534
    %1581 = vst [vmem:[%s1556] ss:$4 sm:$0xff] %v1537
    %1582 = vst [vmem:[%s1558] ss:$4 sm:$0xff] %v1540
    %1583 = vst [vmem:[%s1560] ss:$4 sm:$0xff] %v1544
    %1584 = vst [vmem:[%s1562] ss:$4 sm:$0xff] %v1547
    %1585 = vst [vmem:[%s1564] ss:$4 sm:$0xff] %v1550
    %v1586 = vld.sshfl [vmem:[#allocation1] sm:$0xff pattern:$0x73625140]
    %v1587 = vld.sshfl [vmem:[#allocation1 + $0x20] sm:$0xff pattern:$0x73625140]
    %v1588 = vsel %vm198, %v1566, 0
    %v1590 = vsel %vm198, %v1567, 0
    %v1592 = vsel %vm198, %v1576, 0
    %v1594 = vsel %vm198, %v1577, 0
    %v1596 = vsel %vm198, %v1586, 0
    %v1598 = vsel %vm198, %v1587, 0
    %1600 = vmatpush.msra.mxu0 0.0
    %1601 = vmatpush.msra.mxu0 0.0
    %1602 = vmatpush.msra.mxu0 0.0
    %1603 = vmatpush.msra.mxu0 0.0
    %1604 = vmatpush.msra.mxu0 0.0
    %1605 = vmatpush.msra.mxu0 0.0
    %1606 = vmatpush.msra.mxu0 0.0
    %1607 = vmatpush.msra.mxu0 0.0
    %1608 = vmatpush.msra.mxu0 0.0
    %1609 = vmatpush.msra.mxu0 0.0
    %1610 = vmatpush.msra.mxu0 0.0
    %1611 = vmatpush.msra.mxu0 0.0
    %1612 = vmatpush.msra.mxu0 %v830
    %1613 = vmatpush.msra.mxu0 %v828
    %1614 = vmatpush.msra.mxu0 %v826
    %1615 = vmatpush.msra.mxu0 %v824
    %1616 = vmatmul.f32.gmra.mxu0 %v1588
    %v1617 = vpop.f32.mrf.mxu0
    %v1618 = vadd.f32 0.0, %v1617
    %1619 = vmatmul.f32.gmra.mxu0 %v1590
    %v1620 = vpop.f32.mrf.mxu0
    %v1621 = vadd.f32 0.0, %v1620
    %1622 = vmatmul.f32.gmra.mxu0 %v1592
    %v1623 = vpop.f32.mrf.mxu0
    %v1624 = vadd.f32 0.0, %v1623
    %1625 = vmatmul.f32.gmra.mxu0 %v1594
    %v1626 = vpop.f32.mrf.mxu0
    %v1627 = vadd.f32 0.0, %v1626
    %1628 = vmatmul.f32.gmra.mxu0 %v1596
    %v1629 = vpop.f32.mrf.mxu0
    %v1630 = vadd.f32 0.0, %v1629
    %1631 = vmatmul.f32.gmra.mxu0 %v1598
    %v1632 = vpop.f32.mrf.mxu0
    %v1633 = vadd.f32 0.0, %v1632
    %1634 = vdwg.mxu0
    %1635 = vmatpush.msra.mxu0 0.0
    %1636 = vmatpush.msra.mxu0 0.0
    %1637 = vmatpush.msra.mxu0 0.0
    %1638 = vmatpush.msra.mxu0 0.0
    %1639 = vmatpush.msra.mxu0 0.0
    %1640 = vmatpush.msra.mxu0 0.0
    %1641 = vmatpush.msra.mxu0 0.0
    %1642 = vmatpush.msra.mxu0 0.0
    %1643 = vmatpush.msra.mxu0 0.0
    %1644 = vmatpush.msra.mxu0 0.0
    %1645 = vmatpush.msra.mxu0 0.0
    %1646 = vmatpush.msra.mxu0 0.0
    %1647 = vmatpush.msra.mxu0 %v831
    %1648 = vmatpush.msra.mxu0 %v829
    %1649 = vmatpush.msra.mxu0 %v827
    %1650 = vmatpush.msra.mxu0 %v825
    %1651 = vmatmul.f32.gmra.mxu0 %v1588
    %v1652 = vpop.f32.mrf.mxu0
    %v1653 = vadd.f32 0.0, %v1652
    %1654 = vmatmul.f32.gmra.mxu0 %v1590
    %v1655 = vpop.f32.mrf.mxu0
    %v1656 = vadd.f32 0.0, %v1655
    %1657 = vmatmul.f32.gmra.mxu0 %v1592
    %v1658 = vpop.f32.mrf.mxu0
    %v1659 = vadd.f32 0.0, %v1658
    %1660 = vmatmul.f32.gmra.mxu0 %v1594
    %v1661 = vpop.f32.mrf.mxu0
    %v1662 = vadd.f32 0.0, %v1661
    %1663 = vmatmul.f32.gmra.mxu0 %v1596
    %v1664 = vpop.f32.mrf.mxu0
    %v1665 = vadd.f32 0.0, %v1664
    %1666 = vmatmul.f32.gmra.mxu0 %v1598
    %v1667 = vpop.f32.mrf.mxu0
    %v1668 = vadd.f32 0.0, %v1667
    %1669 = vdwg.mxu0
    %v1670 = vadd.f32 %v1451, %v1618
    %v1671 = vadd.f32 %v1452, %v1653
    %v1672 = vadd.f32 %v1453, %v1621
    %v1673 = vadd.f32 %v1454, %v1656
    %v1674 = vadd.f32 %v1455, %v1624
    %v1675 = vadd.f32 %v1456, %v1659
    %v1676 = vadd.f32 %v1457, %v1627
    %v1677 = vadd.f32 %v1458, %v1662
    %v1678 = vadd.f32 %v1459, %v1630
    %v1679 = vadd.f32 %v1460, %v1665
    %v1680 = vadd.f32 %v1461, %v1633
    %v1681 = vadd.f32 %v1462, %v1668
    %v1682 = vmax.f32 %v951, %v1670
    %v1683 = vmax.f32 %v952, %v1671
    %v1684 = vmax.f32 %v953, %v1672
    %v1685 = vmax.f32 %v954, %v1673
    %v1686 = vmax.f32 %v955, %v1674
    %v1687 = vmax.f32 %v956, %v1675
    %v1688 = vmax.f32 %v957, %v1676
    %v1689 = vmax.f32 %v958, %v1677
    %v1690 = vmax.f32 %v959, %v1678
    %v1691 = vmax.f32 %v960, %v1679
    %v1692 = vmax.f32 %v961, %v1680
    %v1693 = vmax.f32 %v962, %v1681
    %v1694 = vmax.f32 %v1682, %v1683
    %v1695 = vmax.f32 %v1684, %v1685
    %v1696 = vmax.f32 %v1686, %v1687
    %v1697 = vmax.f32 %v1688, %v1689
    %v1698 = vmax.f32 %v1690, %v1691
    %v1699 = vmax.f32 %v1692, %v1693
    %v1700 = vlaneseq
    %v1701 = vand.u32 %v1700, 127
    %v1702 = vld [vmem:[%s2] sm:$0x1]
    %v1704 = vperm.slane %v1702, 0
    %v1706 = vadd.f32 %v1694, %v1704
    %v1707 = vadd.f32 %v1695, %v1704
    %v1708 = vadd.f32 %v1696, %v1704
    %v1709 = vadd.f32 %v1697, %v1704
    %v1710 = vadd.f32 %v1698, %v1704
    %v1711 = vadd.f32 %v1699, %v1704
    %v1712 = vmax.f32 %v1706, 0.0
    %v1713 = vmax.f32 %v1707, 0.0
    %v1714 = vmax.f32 %v1708, 0.0
    %v1715 = vmax.f32 %v1709, 0.0
    %v1716 = vmax.f32 %v1710, 0.0
    %v1717 = vmax.f32 %v1711, 0.0
    %vm1718 = vcmp.lt.s32.totalorder %v1701, 120
    %v1719 = vsel %vm1718, %v1712, 0.0
    %v1720 = vsel %vm1718, %v1713, 0.0
    %v1721 = vsel %vm1718, %v1714, 0.0
    %v1722 = vsel %vm1718, %v1715, 0.0
    %v1723 = vsel %vm1718, %v1716, 0.0
    %v1724 = vsel %vm1718, %v1717, 0.0
    %v1731 = vrot.slane %v1719, 2
    %v1732 = vrot.slane %v1719, 4
    %v1733 = vrot.slane %v1719, 6
    %v1734 = vrot.slane %v1720, 2
    %v1735 = vrot.slane %v1720, 4
    %v1736 = vrot.slane %v1720, 6
    %v1737 = vrot.slane %v1721, 2
    %v1738 = vrot.slane %v1721, 4
    %v1739 = vrot.slane %v1721, 6
    %v1740 = vrot.slane %v1722, 2
    %v1741 = vrot.slane %v1722, 4
    %v1742 = vrot.slane %v1722, 6
    %v1743 = vrot.slane %v1723, 2
    %v1744 = vrot.slane %v1723, 4
    %v1745 = vrot.slane %v1723, 6
    %v1746 = vrot.slane %v1724, 2
    %v1747 = vrot.slane %v1724, 4
    %v1748 = vrot.slane %v1724, 6
    %1749 = vst [vmem:[#allocation1] ss:$4 sm:$0xff] %v67
    %s1750 = scalar_lea.vmem [#allocation1], 1
    %1751 = vst [vmem:[%s1750] ss:$4 sm:$0xff] %v572
    %s1752 = scalar_lea.vmem [#allocation1], 2
    %1753 = vst [vmem:[%s1752] ss:$4 sm:$0xff] %v573
    %s1754 = scalar_lea.vmem [#allocation1], 3
    %1755 = vst [vmem:[%s1754] ss:$4 sm:$0xff] %v71
    %s1756 = scalar_lea.vmem [#allocation1], 32
    %1757 = vst [vmem:[%s1756] ss:$4 sm:$0xff] %v574
    %s1758 = scalar_lea.vmem [#allocation1], 33
    %1759 = vst [vmem:[%s1758] ss:$4 sm:$0xff] %v575
    %s1760 = scalar_lea.vmem [#allocation1], 34
    %1761 = vst [vmem:[%s1760] ss:$4 sm:$0xff] %v75
    %s1762 = scalar_lea.vmem [#allocation1], 35
    %1763 = vst [vmem:[%s1762] ss:$4 sm:$0xff] %v576
    %v1764 = vld.sshfl [vmem:[#allocation1] sm:$0xff pattern:$0x73625140]
    %v1765 = vld.sshfl [vmem:[#allocation1 + $0x20] sm:$0xff pattern:$0x73625140]
    %1766 = vst [vmem:[#allocation1] ss:$4 sm:$0xff] %v577
    %1767 = vst [vmem:[%s1750] ss:$4 sm:$0xff] %v79
    %1768 = vst [vmem:[%s1752] ss:$4 sm:$0xff] %v578
    %1769 = vst [vmem:[%s1754] ss:$4 sm:$0xff] %v579
    %1770 = vst [vmem:[%s1756] ss:$4 sm:$0xff] %v83
    %1771 = vst [vmem:[%s1758] ss:$4 sm:$0xff] %v580
    %1772 = vst [vmem:[%s1760] ss:$4 sm:$0xff] %v581
    %1773 = vst [vmem:[%s1762] ss:$4 sm:$0xff] %v87
    %v1774 = vld.sshfl [vmem:[#allocation1] sm:$0xff pattern:$0x73625140]
    %v1775 = vld.sshfl [vmem:[#allocation1 + $0x20] sm:$0xff pattern:$0x73625140]
    %1776 = vst [vmem:[#allocation1] ss:$4 sm:$0xff] %v582
    %1777 = vst [vmem:[%s1750] ss:$4 sm:$0xff] %v583
    %1778 = vst [vmem:[%s1752] ss:$4 sm:$0xff] %v91
    %1779 = vst [vmem:[%s1754] ss:$4 sm:$0xff] %v584
    %1780 = vst [vmem:[%s1756] ss:$4 sm:$0xff] %v585
    %1781 = vst [vmem:[%s1758] ss:$4 sm:$0xff] %v95
    %1782 = vst [vmem:[%s1760] ss:$4 sm:$0xff] %v586
    %1783 = vst [vmem:[%s1762] ss:$4 sm:$0xff] %v587
    %v1784 = vld.sshfl [vmem:[#allocation1] sm:$0xff pattern:$0x73625140]
    %v1785 = vld.sshfl [vmem:[#allocation1 + $0x20] sm:$0xff pattern:$0x73625140]
    %v1786 = vsel %vm198, %v1764, 0
    %v1788 = vsel %vm198, %v1765, 0
    %v1790 = vsel %vm198, %v1774, 0
    %v1792 = vsel %vm198, %v1775, 0
    %v1794 = vsel %vm198, %v1784, 0
    %v1796 = vsel %vm198, %v1785, 0
    %1798 = vmatpush.msra.mxu0 0.0
    %1799 = vmatpush.msra.mxu0 0.0
    %1800 = vmatpush.msra.mxu0 0.0
    %1801 = vmatpush.msra.mxu0 0.0
    %1802 = vmatpush.msra.mxu0 0.0
    %1803 = vmatpush.msra.mxu0 0.0
    %1804 = vmatpush.msra.mxu0 0.0
    %1805 = vmatpush.msra.mxu0 0.0
    %1806 = vmatpush.msra.mxu0 0.0
    %1807 = vmatpush.msra.mxu0 0.0
    %1808 = vmatpush.msra.mxu0 0.0
    %1809 = vmatpush.msra.mxu0 0.0
    %1810 = vmatpush.msra.mxu0 %v159
    %1811 = vmatpush.msra.mxu0 %v157
    %1812 = vmatpush.msra.mxu0 %v155
    %1813 = vmatpush.msra.mxu0 %v153
    %1814 = vmatmul.f32.gmra.mxu0 %v1786
    %v1815 = vpop.f32.mrf.mxu0
    %v1816 = vadd.f32 0.0, %v1815
    %1817 = vmatmul.f32.gmra.mxu0 %v1788
    %v1818 = vpop.f32.mrf.mxu0
    %v1819 = vadd.f32 0.0, %v1818
    %1820 = vmatmul.f32.gmra.mxu0 %v1790
    %v1821 = vpop.f32.mrf.mxu0
    %v1822 = vadd.f32 0.0, %v1821
    %1823 = vmatmul.f32.gmra.mxu0 %v1792
    %v1824 = vpop.f32.mrf.mxu0
    %v1825 = vadd.f32 0.0, %v1824
    %1826 = vmatmul.f32.gmra.mxu0 %v1794
    %v1827 = vpop.f32.mrf.mxu0
    %v1828 = vadd.f32 0.0, %v1827
    %1829 = vmatmul.f32.gmra.mxu0 %v1796
    %v1830 = vpop.f32.mrf.mxu0
    %v1831 = vadd.f32 0.0, %v1830
    %1832 = vdwg.mxu0
    %1833 = vmatpush.msra.mxu0 0.0
    %1834 = vmatpush.msra.mxu0 0.0
    %1835 = vmatpush.msra.mxu0 0.0
    %1836 = vmatpush.msra.mxu0 0.0
    %1837 = vmatpush.msra.mxu0 0.0
    %1838 = vmatpush.msra.mxu0 0.0
    %1839 = vmatpush.msra.mxu0 0.0
    %1840 = vmatpush.msra.mxu0 0.0
    %1841 = vmatpush.msra.mxu0 0.0
    %1842 = vmatpush.msra.mxu0 0.0
    %1843 = vmatpush.msra.mxu0 0.0
    %1844 = vmatpush.msra.mxu0 0.0
    %1845 = vmatpush.msra.mxu0 %v160
    %1846 = vmatpush.msra.mxu0 %v158
    %1847 = vmatpush.msra.mxu0 %v156
    %1848 = vmatpush.msra.mxu0 %v154
    %1849 = vmatmul.f32.gmra.mxu0 %v1786
    %v1850 = vpop.f32.mrf.mxu0
    %v1851 = vadd.f32 0.0, %v1850
    %1852 = vmatmul.f32.gmra.mxu0 %v1788
    %v1853 = vpop.f32.mrf.mxu0
    %v1854 = vadd.f32 0.0, %v1853
    %1855 = vmatmul.f32.gmra.mxu0 %v1790
    %v1856 = vpop.f32.mrf.mxu0
    %v1857 = vadd.f32 0.0, %v1856
    %1858 = vmatmul.f32.gmra.mxu0 %v1792
    %v1859 = vpop.f32.mrf.mxu0
    %v1860 = vadd.f32 0.0, %v1859
    %1861 = vmatmul.f32.gmra.mxu0 %v1794
    %v1862 = vpop.f32.mrf.mxu0
    %v1863 = vadd.f32 0.0, %v1862
    %1864 = vmatmul.f32.gmra.mxu0 %v1796
    %v1865 = vpop.f32.mrf.mxu0
    %v1866 = vadd.f32 0.0, %v1865
    %1867 = vdwg.mxu0
    %1868 = vst [vmem:[#allocation1] ss:$4 sm:$0xff] %v66
    %s1869 = scalar_lea.vmem [#allocation1], 1
    %1870 = vst [vmem:[%s1869] ss:$4 sm:$0xff] %v408
    %s1871 = scalar_lea.vmem [#allocation1], 2
    %1872 = vst [vmem:[%s1871] ss:$4 sm:$0xff] %v409
    %s1873 = scalar_lea.vmem [#allocation1], 3
    %1874 = vst [vmem:[%s1873] ss:$4 sm:$0xff] %v70
    %s1875 = scalar_lea.vmem [#allocation1], 32
    %1876 = vst [vmem:[%s1875] ss:$4 sm:$0xff] %v410
    %s1877 = scalar_lea.vmem [#allocation1], 33
    %1878 = vst [vmem:[%s1877] ss:$4 sm:$0xff] %v411
    %s1879 = scalar_lea.vmem [#allocation1], 34
    %1880 = vst [vmem:[%s1879] ss:$4 sm:$0xff] %v74
    %s1881 = scalar_lea.vmem [#allocation1], 35
    %1882 = vst [vmem:[%s1881] ss:$4 sm:$0xff] %v412
    %v1883 = vld.sshfl [vmem:[#allocation1] sm:$0xff pattern:$0x73625140]
    %v1884 = vld.sshfl [vmem:[#allocation1 + $0x20] sm:$0xff pattern:$0x73625140]
    %1885 = vst [vmem:[#allocation1] ss:$4 sm:$0xff] %v413
    %1886 = vst [vmem:[%s1869] ss:$4 sm:$0xff] %v78
    %1887 = vst [vmem:[%s1871] ss:$4 sm:$0xff] %v414
    %1888 = vst [vmem:[%s1873] ss:$4 sm:$0xff] %v415
    %1889 = vst [vmem:[%s1875] ss:$4 sm:$0xff] %v82
    %1890 = vst [vmem:[%s1877] ss:$4 sm:$0xff] %v416
    %1891 = vst [vmem:[%s1879] ss:$4 sm:$0xff] %v417
    %1892 = vst [vmem:[%s1881] ss:$4 sm:$0xff] %v86
    %v1893 = vld.sshfl [vmem:[#allocation1] sm:$0xff pattern:$0x73625140]
    %v1894 = vld.sshfl [vmem:[#allocation1 + $0x20] sm:$0xff pattern:$0x73625140]
    %1895 = vst [vmem:[#allocation1] ss:$4 sm:$0xff] %v418
    %1896 = vst [vmem:[%s1869] ss:$4 sm:$0xff] %v419
    %1897 = vst [vmem:[%s1871] ss:$4 sm:$0xff] %v90
    %1898 = vst [vmem:[%s1873] ss:$4 sm:$0xff] %v420
    %1899 = vst [vmem:[%s1875] ss:$4 sm:$0xff] %v421
    %1900 = vst [vmem:[%s1877] ss:$4 sm:$0xff] %v94
    %1901 = vst [vmem:[%s1879] ss:$4 sm:$0xff] %v422
    %1902 = vst [vmem:[%s1881] ss:$4 sm:$0xff] %v423
    %v1903 = vld.sshfl [vmem:[#allocation1] sm:$0xff pattern:$0x73625140]
    %v1904 = vld.sshfl [vmem:[#allocation1 + $0x20] sm:$0xff pattern:$0x73625140]
    %v1905 = vsel %vm198, %v1883, 0
    %v1907 = vsel %vm198, %v1884, 0
    %v1909 = vsel %vm198, %v1893, 0
    %v1911 = vsel %vm198, %v1894, 0
    %v1913 = vsel %vm198, %v1903, 0
    %v1915 = vsel %vm198, %v1904, 0
    %1917 = vmatpush.msra.mxu0 0.0
    %1918 = vmatpush.msra.mxu0 0.0
    %1919 = vmatpush.msra.mxu0 0.0
    %1920 = vmatpush.msra.mxu0 0.0
    %1921 = vmatpush.msra.mxu0 0.0
    %1922 = vmatpush.msra.mxu0 0.0
    %1923 = vmatpush.msra.mxu0 0.0
    %1924 = vmatpush.msra.mxu0 0.0
    %1925 = vmatpush.msra.mxu0 0.0
    %1926 = vmatpush.msra.mxu0 0.0
    %1927 = vmatpush.msra.mxu0 0.0
    %1928 = vmatpush.msra.mxu0 0.0
    %1929 = vmatpush.msra.mxu0 %v126
    %1930 = vmatpush.msra.mxu0 %v124
    %1931 = vmatpush.msra.mxu0 %v122
    %1932 = vmatpush.msra.mxu0 %v120
    %1933 = vmatmul.f32.gmra.mxu0 %v1905
    %v1934 = vpop.f32.mrf.mxu0
    %v1935 = vadd.f32 %v1816, %v1934
    %1936 = vmatmul.f32.gmra.mxu0 %v1907
    %v1937 = vpop.f32.mrf.mxu0
    %v1938 = vadd.f32 %v1819, %v1937
    %1939 = vmatmul.f32.gmra.mxu0 %v1909
    %v1940 = vpop.f32.mrf.mxu0
    %v1941 = vadd.f32 %v1822, %v1940
    %1942 = vmatmul.f32.gmra.mxu0 %v1911
    %v1943 = vpop.f32.mrf.mxu0
    %v1944 = vadd.f32 %v1825, %v1943
    %1945 = vmatmul.f32.gmra.mxu0 %v1913
    %v1946 = vpop.f32.mrf.mxu0
    %v1947 = vadd.f32 %v1828, %v1946
    %1948 = vmatmul.f32.gmra.mxu0 %v1915
    %v1949 = vpop.f32.mrf.mxu0
    %v1950 = vadd.f32 %v1831, %v1949
    %1951 = vdwg.mxu0
    %1952 = vmatpush.msra.mxu0 0.0
    %1953 = vmatpush.msra.mxu0 0.0
    %1954 = vmatpush.msra.mxu0 0.0
    %1955 = vmatpush.msra.mxu0 0.0
    %1956 = vmatpush.msra.mxu0 0.0
    %1957 = vmatpush.msra.mxu0 0.0
    %1958 = vmatpush.msra.mxu0 0.0
    %1959 = vmatpush.msra.mxu0 0.0
    %1960 = vmatpush.msra.mxu0 0.0
    %1961 = vmatpush.msra.mxu0 0.0
    %1962 = vmatpush.msra.mxu0 0.0
    %1963 = vmatpush.msra.mxu0 0.0
    %1964 = vmatpush.msra.mxu0 %v127
    %1965 = vmatpush.msra.mxu0 %v125
    %1966 = vmatpush.msra.mxu0 %v123
    %1967 = vmatpush.msra.mxu0 %v121
    %1968 = vmatmul.f32.gmra.mxu0 %v1905
    %v1969 = vpop.f32.mrf.mxu0
    %v1970 = vadd.f32 %v1851, %v1969
    %1971 = vmatmul.f32.gmra.mxu0 %v1907
    %v1972 = vpop.f32.mrf.mxu0
    %v1973 = vadd.f32 %v1854, %v1972
    %1974 = vmatmul.f32.gmra.mxu0 %v1909
    %v1975 = vpop.f32.mrf.mxu0
    %v1976 = vadd.f32 %v1857, %v1975
    %1977 = vmatmul.f32.gmra.mxu0 %v1911
    %v1978 = vpop.f32.mrf.mxu0
    %v1979 = vadd.f32 %v1860, %v1978
    %1980 = vmatmul.f32.gmra.mxu0 %v1913
    %v1981 = vpop.f32.mrf.mxu0
    %v1982 = vadd.f32 %v1863, %v1981
    %1983 = vmatmul.f32.gmra.mxu0 %v1915
    %v1984 = vpop.f32.mrf.mxu0
    %v1985 = vadd.f32 %v1866, %v1984
    %1986 = vdwg.mxu0
    %1987 = vst [vmem:[#allocation1] ss:$4 sm:$0xff] %v746
    %s1988 = scalar_lea.vmem [#allocation1], 1
    %1989 = vst [vmem:[%s1988] ss:$4 sm:$0xff] %v749
    %s1990 = scalar_lea.vmem [#allocation1], 2
    %1991 = vst [vmem:[%s1990] ss:$4 sm:$0xff] %v752
    %s1992 = scalar_lea.vmem [#allocation1], 3
    %1993 = vst [vmem:[%s1992] ss:$4 sm:$0xff] %v756
    %s1994 = scalar_lea.vmem [#allocation1], 32
    %1995 = vst [vmem:[%s1994] ss:$4 sm:$0xff] %v759
    %s1996 = scalar_lea.vmem [#allocation1], 33
    %1997 = vst [vmem:[%s1996] ss:$4 sm:$0xff] %v762
    %s1998 = scalar_lea.vmem [#allocation1], 34
    %1999 = vst [vmem:[%s1998] ss:$4 sm:$0xff] %v766
    %s2000 = scalar_lea.vmem [#allocation1], 35
    %2001 = vst [vmem:[%s2000] ss:$4 sm:$0xff] %v769
    %v2002 = vld.sshfl [vmem:[#allocation1] sm:$0xff pattern:$0x73625140]
    %v2003 = vld.sshfl [vmem:[#allocation1 + $0x20] sm:$0xff pattern:$0x73625140]
    %2004 = vst [vmem:[#allocation1] ss:$4 sm:$0xff] %v772
    %2005 = vst [vmem:[%s1988] ss:$4 sm:$0xff] %v776
    %2006 = vst [vmem:[%s1990] ss:$4 sm:$0xff] %v779
    %2007 = vst [vmem:[%s1992] ss:$4 sm:$0xff] %v782
    %2008 = vst [vmem:[%s1994] ss:$4 sm:$0xff] %v786
    %2009 = vst [vmem:[%s1996] ss:$4 sm:$0xff] %v789
    %2010 = vst [vmem:[%s1998] ss:$4 sm:$0xff] %v792
    %2011 = vst [vmem:[%s2000] ss:$4 sm:$0xff] %v796
    %v2012 = vld.sshfl [vmem:[#allocation1] sm:$0xff pattern:$0x73625140]
    %v2013 = vld.sshfl [vmem:[#allocation1 + $0x20] sm:$0xff pattern:$0x73625140]
    %2014 = vst [vmem:[#allocation1] ss:$4 sm:$0xff] %v799
    %2015 = vst [vmem:[%s1988] ss:$4 sm:$0xff] %v802
    %2016 = vst [vmem:[%s1990] ss:$4 sm:$0xff] %v806
    %2017 = vst [vmem:[%s1992] ss:$4 sm:$0xff] %v809
    %2018 = vst [vmem:[%s1994] ss:$4 sm:$0xff] %v812
    %2019 = vst [vmem:[%s1996] ss:$4 sm:$0xff] %v816
    %2020 = vst [vmem:[%s1998] ss:$4 sm:$0xff] %v819
    %2021 = vst [vmem:[%s2000] ss:$4 sm:$0xff] %v822
    %v2022 = vld.sshfl [vmem:[#allocation1] sm:$0xff pattern:$0x73625140]
    %v2023 = vld.sshfl [vmem:[#allocation1 + $0x20] sm:$0xff pattern:$0x73625140]
    %v2024 = vsel %vm198, %v2002, 0
    %v2026 = vsel %vm198, %v2003, 0
    %v2028 = vsel %vm198, %v2012, 0
    %v2030 = vsel %vm198, %v2013, 0
    %v2032 = vsel %vm198, %v2022, 0
    %v2034 = vsel %vm198, %v2023, 0
    %2036 = vmatpush.msra.mxu0 0.0
    %2037 = vmatpush.msra.mxu0 0.0
    %2038 = vmatpush.msra.mxu0 0.0
    %2039 = vmatpush.msra.mxu0 0.0
    %2040 = vmatpush.msra.mxu0 0.0
    %2041 = vmatpush.msra.mxu0 0.0
    %2042 = vmatpush.msra.mxu0 0.0
    %2043 = vmatpush.msra.mxu0 0.0
    %2044 = vmatpush.msra.mxu0 0.0
    %2045 = vmatpush.msra.mxu0 0.0
    %2046 = vmatpush.msra.mxu0 0.0
    %2047 = vmatpush.msra.mxu0 0.0
    %2048 = vmatpush.msra.mxu0 %v431
    %2049 = vmatpush.msra.mxu0 %v429
    %2050 = vmatpush.msra.mxu0 %v427
    %2051 = vmatpush.msra.mxu0 %v425
    %2052 = vmatmul.f32.gmra.mxu0 %v2024
    %v2053 = vpop.f32.mrf.mxu0
    %v2054 = vadd.f32 0.0, %v2053
    %2055 = vmatmul.f32.gmra.mxu0 %v2026
    %v2056 = vpop.f32.mrf.mxu0
    %v2057 = vadd.f32 0.0, %v2056
    %2058 = vmatmul.f32.gmra.mxu0 %v2028
    %v2059 = vpop.f32.mrf.mxu0
    %v2060 = vadd.f32 0.0, %v2059
    %2061 = vmatmul.f32.gmra.mxu0 %v2030
    %v2062 = vpop.f32.mrf.mxu0
    %v2063 = vadd.f32 0.0, %v2062
    %2064 = vmatmul.f32.gmra.mxu0 %v2032
    %v2065 = vpop.f32.mrf.mxu0
    %v2066 = vadd.f32 0.0, %v2065
    %2067 = vmatmul.f32.gmra.mxu0 %v2034
    %v2068 = vpop.f32.mrf.mxu0
    %v2069 = vadd.f32 0.0, %v2068
    %2070 = vdwg.mxu0
    %2071 = vmatpush.msra.mxu0 0.0
    %2072 = vmatpush.msra.mxu0 0.0
    %2073 = vmatpush.msra.mxu0 0.0
    %2074 = vmatpush.msra.mxu0 0.0
    %2075 = vmatpush.msra.mxu0 0.0
    %2076 = vmatpush.msra.mxu0 0.0
    %2077 = vmatpush.msra.mxu0 0.0
    %2078 = vmatpush.msra.mxu0 0.0
    %2079 = vmatpush.msra.mxu0 0.0
    %2080 = vmatpush.msra.mxu0 0.0
    %2081 = vmatpush.msra.mxu0 0.0
    %2082 = vmatpush.msra.mxu0 0.0
    %2083 = vmatpush.msra.mxu0 %v432
    %2084 = vmatpush.msra.mxu0 %v430
    %2085 = vmatpush.msra.mxu0 %v428
    %2086 = vmatpush.msra.mxu0 %v426
    %2087 = vmatmul.f32.gmra.mxu0 %v2024
    %v2088 = vpop.f32.mrf.mxu0
    %v2089 = vadd.f32 0.0, %v2088
    %2090 = vmatmul.f32.gmra.mxu0 %v2026
    %v2091 = vpop.f32.mrf.mxu0
    %v2092 = vadd.f32 0.0, %v2091
    %2093 = vmatmul.f32.gmra.mxu0 %v2028
    %v2094 = vpop.f32.mrf.mxu0
    %v2095 = vadd.f32 0.0, %v2094
    %2096 = vmatmul.f32.gmra.mxu0 %v2030
    %v2097 = vpop.f32.mrf.mxu0
    %v2098 = vadd.f32 0.0, %v2097
    %2099 = vmatmul.f32.gmra.mxu0 %v2032
    %v2100 = vpop.f32.mrf.mxu0
    %v2101 = vadd.f32 0.0, %v2100
    %2102 = vmatmul.f32.gmra.mxu0 %v2034
    %v2103 = vpop.f32.mrf.mxu0
    %v2104 = vadd.f32 0.0, %v2103
    %2105 = vdwg.mxu0
    %v2106 = vadd.f32 %v1935, %v2054
    %v2107 = vadd.f32 %v1970, %v2089
    %v2108 = vadd.f32 %v1938, %v2057
    %v2109 = vadd.f32 %v1973, %v2092
    %v2110 = vadd.f32 %v1941, %v2060
    %v2111 = vadd.f32 %v1976, %v2095
    %v2112 = vadd.f32 %v1944, %v2063
    %v2113 = vadd.f32 %v1979, %v2098
    %v2114 = vadd.f32 %v1947, %v2066
    %v2115 = vadd.f32 %v1982, %v2101
    %v2116 = vadd.f32 %v1950, %v2069
    %v2117 = vadd.f32 %v1985, %v2104
    %2118 = vst [vmem:[#allocation1] ss:$4 sm:$0xff] %v1474
    %s2119 = scalar_lea.vmem [#allocation1], 1
    %2120 = vst [vmem:[%s2119] ss:$4 sm:$0xff] %v1477
    %s2121 = scalar_lea.vmem [#allocation1], 2
    %2122 = vst [vmem:[%s2121] ss:$4 sm:$0xff] %v1480
    %s2123 = scalar_lea.vmem [#allocation1], 3
    %2124 = vst [vmem:[%s2123] ss:$4 sm:$0xff] %v1484
    %s2125 = scalar_lea.vmem [#allocation1], 32
    %2126 = vst [vmem:[%s2125] ss:$4 sm:$0xff] %v1487
    %s2127 = scalar_lea.vmem [#allocation1], 33
    %2128 = vst [vmem:[%s2127] ss:$4 sm:$0xff] %v1490
    %s2129 = scalar_lea.vmem [#allocation1], 34
    %2130 = vst [vmem:[%s2129] ss:$4 sm:$0xff] %v1494
    %s2131 = scalar_lea.vmem [#allocation1], 35
    %2132 = vst [vmem:[%s2131] ss:$4 sm:$0xff] %v1497
    %v2133 = vld.sshfl [vmem:[#allocation1] sm:$0xff pattern:$0x73625140]
    %v2134 = vld.sshfl [vmem:[#allocation1 + $0x20] sm:$0xff pattern:$0x73625140]
    %2135 = vst [vmem:[#allocation1] ss:$4 sm:$0xff] %v1500
    %2136 = vst [vmem:[%s2119] ss:$4 sm:$0xff] %v1504
    %2137 = vst [vmem:[%s2121] ss:$4 sm:$0xff] %v1507
    %2138 = vst [vmem:[%s2123] ss:$4 sm:$0xff] %v1510
    %2139 = vst [vmem:[%s2125] ss:$4 sm:$0xff] %v1514
    %2140 = vst [vmem:[%s2127] ss:$4 sm:$0xff] %v1517
    %2141 = vst [vmem:[%s2129] ss:$4 sm:$0xff] %v1520
    %2142 = vst [vmem:[%s2131] ss:$4 sm:$0xff] %v1524
    %v2143 = vld.sshfl [vmem:[#allocation1] sm:$0xff pattern:$0x73625140]
    %v2144 = vld.sshfl [vmem:[#allocation1 + $0x20] sm:$0xff pattern:$0x73625140]
    %2145 = vst [vmem:[#allocation1] ss:$4 sm:$0xff] %v1527
    %2146 = vst [vmem:[%s2119] ss:$4 sm:$0xff] %v1530
    %2147 = vst [vmem:[%s2121] ss:$4 sm:$0xff] %v1534
    %2148 = vst [vmem:[%s2123] ss:$4 sm:$0xff] %v1537
    %2149 = vst [vmem:[%s2125] ss:$4 sm:$0xff] %v1540
    %2150 = vst [vmem:[%s2127] ss:$4 sm:$0xff] %v1544
    %2151 = vst [vmem:[%s2129] ss:$4 sm:$0xff] %v1547
    %2152 = vst [vmem:[%s2131] ss:$4 sm:$0xff] %v1550
    %v2153 = vld.sshfl [vmem:[#allocation1] sm:$0xff pattern:$0x73625140]
    %v2154 = vld.sshfl [vmem:[#allocation1 + $0x20] sm:$0xff pattern:$0x73625140]
    %v2155 = vsel %vm198, %v2133, 0
    %v2157 = vsel %vm198, %v2134, 0
    %v2159 = vsel %vm198, %v2143, 0
    %v2161 = vsel %vm198, %v2144, 0
    %v2163 = vsel %vm198, %v2153, 0
    %v2165 = vsel %vm198, %v2154, 0
    %2167 = vmatpush.msra.mxu0 0.0
    %2168 = vmatpush.msra.mxu0 0.0
    %2169 = vmatpush.msra.mxu0 0.0
    %2170 = vmatpush.msra.mxu0 0.0
    %2171 = vmatpush.msra.mxu0 0.0
    %2172 = vmatpush.msra.mxu0 0.0
    %2173 = vmatpush.msra.mxu0 0.0
    %2174 = vmatpush.msra.mxu0 0.0
    %2175 = vmatpush.msra.mxu0 0.0
    %2176 = vmatpush.msra.mxu0 0.0
    %2177 = vmatpush.msra.mxu0 0.0
    %2178 = vmatpush.msra.mxu0 0.0
    %2179 = vmatpush.msra.mxu0 %v595
    %2180 = vmatpush.msra.mxu0 %v593
    %2181 = vmatpush.msra.mxu0 %v591
    %2182 = vmatpush.msra.mxu0 %v589
    %2183 = vmatmul.f32.gmra.mxu0 %v2155
    %v2184 = vpop.f32.mrf.mxu0
    %v2185 = vadd.f32 0.0, %v2184
    %2186 = vmatmul.f32.gmra.mxu0 %v2157
    %v2187 = vpop.f32.mrf.mxu0
    %v2188 = vadd.f32 0.0, %v2187
    %2189 = vmatmul.f32.gmra.mxu0 %v2159
    %v2190 = vpop.f32.mrf.mxu0
    %v2191 = vadd.f32 0.0, %v2190
    %2192 = vmatmul.f32.gmra.mxu0 %v2161
    %v2193 = vpop.f32.mrf.mxu0
    %v2194 = vadd.f32 0.0, %v2193
    %2195 = vmatmul.f32.gmra.mxu0 %v2163
    %v2196 = vpop.f32.mrf.mxu0
    %v2197 = vadd.f32 0.0, %v2196
    %2198 = vmatmul.f32.gmra.mxu0 %v2165
    %v2199 = vpop.f32.mrf.mxu0
    %v2200 = vadd.f32 0.0, %v2199
    %2201 = vdwg.mxu0
    %2202 = vmatpush.msra.mxu0 0.0
    %2203 = vmatpush.msra.mxu0 0.0
    %2204 = vmatpush.msra.mxu0 0.0
    %2205 = vmatpush.msra.mxu0 0.0
    %2206 = vmatpush.msra.mxu0 0.0
    %2207 = vmatpush.msra.mxu0 0.0
    %2208 = vmatpush.msra.mxu0 0.0
    %2209 = vmatpush.msra.mxu0 0.0
    %2210 = vmatpush.msra.mxu0 0.0
    %2211 = vmatpush.msra.mxu0 0.0
    %2212 = vmatpush.msra.mxu0 0.0
    %2213 = vmatpush.msra.mxu0 0.0
    %2214 = vmatpush.msra.mxu0 %v596
    %2215 = vmatpush.msra.mxu0 %v594
    %2216 = vmatpush.msra.mxu0 %v592
    %2217 = vmatpush.msra.mxu0 %v590
    %2218 = vmatmul.f32.gmra.mxu0 %v2155
    %v2219 = vpop.f32.mrf.mxu0
    %v2220 = vadd.f32 0.0, %v2219
    %2221 = vmatmul.f32.gmra.mxu0 %v2157
    %v2222 = vpop.f32.mrf.mxu0
    %v2223 = vadd.f32 0.0, %v2222
    %2224 = vmatmul.f32.gmra.mxu0 %v2159
    %v2225 = vpop.f32.mrf.mxu0
    %v2226 = vadd.f32 0.0, %v2225
    %2227 = vmatmul.f32.gmra.mxu0 %v2161
    %v2228 = vpop.f32.mrf.mxu0
    %v2229 = vadd.f32 0.0, %v2228
    %2230 = vmatmul.f32.gmra.mxu0 %v2163
    %v2231 = vpop.f32.mrf.mxu0
    %v2232 = vadd.f32 0.0, %v2231
    %2233 = vmatmul.f32.gmra.mxu0 %v2165
    %v2234 = vpop.f32.mrf.mxu0
    %v2235 = vadd.f32 0.0, %v2234
    %2236 = vdwg.mxu0
    %v2237 = vadd.f32 %v2106, %v2185
    %v2238 = vadd.f32 %v2107, %v2220
    %v2239 = vadd.f32 %v2108, %v2188
    %v2240 = vadd.f32 %v2109, %v2223
    %v2241 = vadd.f32 %v2110, %v2191
    %v2242 = vadd.f32 %v2111, %v2226
    %v2243 = vadd.f32 %v2112, %v2194
    %v2244 = vadd.f32 %v2113, %v2229
    %v2245 = vadd.f32 %v2114, %v2197
    %v2246 = vadd.f32 %v2115, %v2232
    %v2247 = vadd.f32 %v2116, %v2200
    %v2248 = vadd.f32 %v2117, %v2235
    %v2249 = vrot.slane %v66, 6
    %v2250 = vrot.slane %v70, 6
    %v2251 = vrot.slane %v74, 6
    %v2252 = vrot.slane %v78, 6
    %v2253 = vrot.slane %v82, 6
    %v2254 = vrot.slane %v86, 6
    %v2255 = vrot.slane %v90, 6
    %v2256 = vrot.slane %v94, 6
    %v2257 = vrot.slane %v66, 7
    %v2258 = vrot.slane %v2257, 2
    %v2259 = vrot.slane %v408, 7
    %v2260 = vsel %vm742, %v2258, %v2259
    %v2261 = vrot.slane %v2259, 2
    %v2262 = vrot.slane %v409, 7
    %v2263 = vsel %vm742, %v2261, %v2262
    %v2264 = vrot.slane %v2262, 2
    %v2265 = vrot.slane %v2249, 7
    %v2266 = vsel %vm742, %v2264, %v2265
    %v2267 = vrot.slane %v70, 7
    %v2268 = vrot.slane %v2267, 2
    %v2269 = vrot.slane %v410, 7
    %v2270 = vsel %vm742, %v2268, %v2269
    %v2271 = vrot.slane %v2269, 2
    %v2272 = vrot.slane %v411, 7
    %v2273 = vsel %vm742, %v2271, %v2272
    %v2274 = vrot.slane %v2272, 2
    %v2275 = vrot.slane %v2250, 7
    %v2276 = vsel %vm742, %v2274, %v2275
    %v2277 = vrot.slane %v74, 7
    %v2278 = vrot.slane %v2277, 2
    %v2279 = vrot.slane %v412, 7
    %v2280 = vsel %vm742, %v2278, %v2279
    %v2281 = vrot.slane %v2279, 2
    %v2282 = vrot.slane %v413, 7
    %v2283 = vsel %vm742, %v2281, %v2282
    %v2284 = vrot.slane %v2282, 2
    %v2285 = vrot.slane %v2251, 7
    %v2286 = vsel %vm742, %v2284, %v2285
    %v2287 = vrot.slane %v78, 7
    %v2288 = vrot.slane %v2287, 2
    %v2289 = vrot.slane %v414, 7
    %v2290 = vsel %vm742, %v2288, %v2289
    %v2291 = vrot.slane %v2289, 2
    %v2292 = vrot.slane %v415, 7
    %v2293 = vsel %vm742, %v2291, %v2292
    %v2294 = vrot.slane %v2292, 2
    %v2295 = vrot.slane %v2252, 7
    %v2296 = vsel %vm742, %v2294, %v2295
    %v2297 = vrot.slane %v82, 7
    %v2298 = vrot.slane %v2297, 2
    %v2299 = vrot.slane %v416, 7
    %v2300 = vsel %vm742, %v2298, %v2299
    %v2301 = vrot.slane %v2299, 2
    %v2302 = vrot.slane %v417, 7
    %v2303 = vsel %vm742, %v2301, %v2302
    %v2304 = vrot.slane %v2302, 2
    %v2305 = vrot.slane %v2253, 7
    %v2306 = vsel %vm742, %v2304, %v2305
    %v2307 = vrot.slane %v86, 7
    %v2308 = vrot.slane %v2307, 2
    %v2309 = vrot.slane %v418, 7
    %v2310 = vsel %vm742, %v2308, %v2309
    %v2311 = vrot.slane %v2309, 2
    %v2312 = vrot.slane %v419, 7
    %v2313 = vsel %vm742, %v2311, %v2312
    %v2314 = vrot.slane %v2312, 2
    %v2315 = vrot.slane %v2254, 7
    %v2316 = vsel %vm742, %v2314, %v2315
    %v2317 = vrot.slane %v90, 7
    %v2318 = vrot.slane %v2317, 2
    %v2319 = vrot.slane %v420, 7
    %v2320 = vsel %vm742, %v2318, %v2319
    %v2321 = vrot.slane %v2319, 2
    %v2322 = vrot.slane %v421, 7
    %v2323 = vsel %vm742, %v2321, %v2322
    %v2324 = vrot.slane %v2322, 2
    %v2325 = vrot.slane %v2255, 7
    %v2326 = vsel %vm742, %v2324, %v2325
    %v2327 = vrot.slane %v94, 7
    %v2328 = vrot.slane %v2327, 2
    %v2329 = vrot.slane %v422, 7
    %v2330 = vsel %vm742, %v2328, %v2329
    %v2331 = vrot.slane %v2329, 2
    %v2332 = vrot.slane %v423, 7
    %v2333 = vsel %vm742, %v2331, %v2332
    %v2334 = vrot.slane %v2332, 2
    %v2335 = vrot.slane %v2256, 7
    %v2336 = vsel %vm742, %v2334, %v2335
    %2337 = vst [vmem:[#allocation1] ss:$4 sm:$0xff] %v2260
    %s2338 = scalar_lea.vmem [#allocation1], 1
    %2339 = vst [vmem:[%s2338] ss:$4 sm:$0xff] %v2263
    %s2340 = scalar_lea.vmem [#allocation1], 2
    %2341 = vst [vmem:[%s2340] ss:$4 sm:$0xff] %v2266
    %s2342 = scalar_lea.vmem [#allocation1], 3
    %2343 = vst [vmem:[%s2342] ss:$4 sm:$0xff] %v2270
    %s2344 = scalar_lea.vmem [#allocation1], 32
    %2345 = vst [vmem:[%s2344] ss:$4 sm:$0xff] %v2273
    %s2346 = scalar_lea.vmem [#allocation1], 33
    %2347 = vst [vmem:[%s2346] ss:$4 sm:$0xff] %v2276
    %s2348 = scalar_lea.vmem [#allocation1], 34
    %2349 = vst [vmem:[%s2348] ss:$4 sm:$0xff] %v2280
    %s2350 = scalar_lea.vmem [#allocation1], 35
    %2351 = vst [vmem:[%s2350] ss:$4 sm:$0xff] %v2283
    %v2352 = vld.sshfl [vmem:[#allocation1] sm:$0xff pattern:$0x73625140]
    %v2353 = vld.sshfl [vmem:[#allocation1 + $0x20] sm:$0xff pattern:$0x73625140]
    %2354 = vst [vmem:[#allocation1] ss:$4 sm:$0xff] %v2286
    %2355 = vst [vmem:[%s2338] ss:$4 sm:$0xff] %v2290
    %2356 = vst [vmem:[%s2340] ss:$4 sm:$0xff] %v2293
    %2357 = vst [vmem:[%s2342] ss:$4 sm:$0xff] %v2296
    %2358 = vst [vmem:[%s2344] ss:$4 sm:$0xff] %v2300
    %2359 = vst [vmem:[%s2346] ss:$4 sm:$0xff] %v2303
    %2360 = vst [vmem:[%s2348] ss:$4 sm:$0xff] %v2306
    %2361 = vst [vmem:[%s2350] ss:$4 sm:$0xff] %v2310
    %v2362 = vld.sshfl [vmem:[#allocation1] sm:$0xff pattern:$0x73625140]
    %v2363 = vld.sshfl [vmem:[#allocation1 + $0x20] sm:$0xff pattern:$0x73625140]
    %2364 = vst [vmem:[#allocation1] ss:$4 sm:$0xff] %v2313
    %2365 = vst [vmem:[%s2338] ss:$4 sm:$0xff] %v2316
    %2366 = vst [vmem:[%s2340] ss:$4 sm:$0xff] %v2320
    %2367 = vst [vmem:[%s2342] ss:$4 sm:$0xff] %v2323
    %2368 = vst [vmem:[%s2344] ss:$4 sm:$0xff] %v2326
    %2369 = vst [vmem:[%s2346] ss:$4 sm:$0xff] %v2330
    %2370 = vst [vmem:[%s2348] ss:$4 sm:$0xff] %v2333
    %2371 = vst [vmem:[%s2350] ss:$4 sm:$0xff] %v2336
    %v2372 = vld.sshfl [vmem:[#allocation1] sm:$0xff pattern:$0x73625140]
    %v2373 = vld.sshfl [vmem:[#allocation1 + $0x20] sm:$0xff pattern:$0x73625140]
    %v2374 = vsel %vm198, %v2352, 0
    %v2376 = vsel %vm198, %v2353, 0
    %v2378 = vsel %vm198, %v2362, 0
    %v2380 = vsel %vm198, %v2363, 0
    %v2382 = vsel %vm198, %v2372, 0
    %v2384 = vsel %vm198, %v2373, 0
    %2386 = vmatpush.msra.mxu0 0.0
    %2387 = vmatpush.msra.mxu0 0.0
    %2388 = vmatpush.msra.mxu0 0.0
    %2389 = vmatpush.msra.mxu0 0.0
    %2390 = vmatpush.msra.mxu0 0.0
    %2391 = vmatpush.msra.mxu0 0.0
    %2392 = vmatpush.msra.mxu0 0.0
    %2393 = vmatpush.msra.mxu0 0.0
    %2394 = vmatpush.msra.mxu0 0.0
    %2395 = vmatpush.msra.mxu0 0.0
    %2396 = vmatpush.msra.mxu0 0.0
    %2397 = vmatpush.msra.mxu0 0.0
    %2398 = vmatpush.msra.mxu0 %v830
    %2399 = vmatpush.msra.mxu0 %v828
    %2400 = vmatpush.msra.mxu0 %v826
    %2401 = vmatpush.msra.mxu0 %v824
    %2402 = vmatmul.f32.gmra.mxu0 %v2374
    %v2403 = vpop.f32.mrf.mxu0
    %v2404 = vadd.f32 0.0, %v2403
    %2405 = vmatmul.f32.gmra.mxu0 %v2376
    %v2406 = vpop.f32.mrf.mxu0
    %v2407 = vadd.f32 0.0, %v2406
    %2408 = vmatmul.f32.gmra.mxu0 %v2378
    %v2409 = vpop.f32.mrf.mxu0
    %v2410 = vadd.f32 0.0, %v2409
    %2411 = vmatmul.f32.gmra.mxu0 %v2380
    %v2412 = vpop.f32.mrf.mxu0
    %v2413 = vadd.f32 0.0, %v2412
    %2414 = vmatmul.f32.gmra.mxu0 %v2382
    %v2415 = vpop.f32.mrf.mxu0
    %v2416 = vadd.f32 0.0, %v2415
    %2417 = vmatmul.f32.gmra.mxu0 %v2384
    %v2418 = vpop.f32.mrf.mxu0
    %v2419 = vadd.f32 0.0, %v2418
    %2420 = vdwg.mxu0
    %2421 = vmatpush.msra.mxu0 0.0
    %2422 = vmatpush.msra.mxu0 0.0
    %2423 = vmatpush.msra.mxu0 0.0
    %2424 = vmatpush.msra.mxu0 0.0
    %2425 = vmatpush.msra.mxu0 0.0
    %2426 = vmatpush.msra.mxu0 0.0
    %2427 = vmatpush.msra.mxu0 0.0
    %2428 = vmatpush.msra.mxu0 0.0
    %2429 = vmatpush.msra.mxu0 0.0
    %2430 = vmatpush.msra.mxu0 0.0
    %2431 = vmatpush.msra.mxu0 0.0
    %2432 = vmatpush.msra.mxu0 0.0
    %2433 = vmatpush.msra.mxu0 %v831
    %2434 = vmatpush.msra.mxu0 %v829
    %2435 = vmatpush.msra.mxu0 %v827
    %2436 = vmatpush.msra.mxu0 %v825
    %2437 = vmatmul.f32.gmra.mxu0 %v2374
    %v2438 = vpop.f32.mrf.mxu0
    %v2439 = vadd.f32 0.0, %v2438
    %2440 = vmatmul.f32.gmra.mxu0 %v2376
    %v2441 = vpop.f32.mrf.mxu0
    %v2442 = vadd.f32 0.0, %v2441
    %2443 = vmatmul.f32.gmra.mxu0 %v2378
    %v2444 = vpop.f32.mrf.mxu0
    %v2445 = vadd.f32 0.0, %v2444
    %2446 = vmatmul.f32.gmra.mxu0 %v2380
    %v2447 = vpop.f32.mrf.mxu0
    %v2448 = vadd.f32 0.0, %v2447
    %2449 = vmatmul.f32.gmra.mxu0 %v2382
    %v2450 = vpop.f32.mrf.mxu0
    %v2451 = vadd.f32 0.0, %v2450
    %2452 = vmatmul.f32.gmra.mxu0 %v2384
    %v2453 = vpop.f32.mrf.mxu0
    %v2454 = vadd.f32 0.0, %v2453
    %2455 = vdwg.mxu0
    %v2456 = vadd.f32 %v2237, %v2404
    %v2457 = vadd.f32 %v2238, %v2439
    %v2458 = vadd.f32 %v2239, %v2407
    %v2459 = vadd.f32 %v2240, %v2442
    %v2460 = vadd.f32 %v2241, %v2410
    %v2461 = vadd.f32 %v2242, %v2445
    %v2462 = vadd.f32 %v2243, %v2413
    %v2463 = vadd.f32 %v2244, %v2448
    %v2464 = vadd.f32 %v2245, %v2416
    %v2465 = vadd.f32 %v2246, %v2451
    %v2466 = vadd.f32 %v2247, %v2419
    %v2467 = vadd.f32 %v2248, %v2454
    %2468 = vst [vmem:[#allocation1] ss:$4 sm:$0xff] %v746
    %s2469 = scalar_lea.vmem [#allocation1], 1
    %2470 = vst [vmem:[%s2469] ss:$4 sm:$0xff] %v749
    %s2471 = scalar_lea.vmem [#allocation1], 2
    %2472 = vst [vmem:[%s2471] ss:$4 sm:$0xff] %v752
    %s2473 = scalar_lea.vmem [#allocation1], 3
    %2474 = vst [vmem:[%s2473] ss:$4 sm:$0xff] %v756
    %s2475 = scalar_lea.vmem [#allocation1], 32
    %2476 = vst [vmem:[%s2475] ss:$4 sm:$0xff] %v759
    %s2477 = scalar_lea.vmem [#allocation1], 33
    %2478 = vst [vmem:[%s2477] ss:$4 sm:$0xff] %v762
    %s2479 = scalar_lea.vmem [#allocation1], 34
    %2480 = vst [vmem:[%s2479] ss:$4 sm:$0xff] %v766
    %s2481 = scalar_lea.vmem [#allocation1], 35
    %2482 = vst [vmem:[%s2481] ss:$4 sm:$0xff] %v769
    %v2483 = vld.sshfl [vmem:[#allocation1] sm:$0xff pattern:$0x73625140]
    %v2484 = vld.sshfl [vmem:[#allocation1 + $0x20] sm:$0xff pattern:$0x73625140]
    %2485 = vst [vmem:[#allocation1] ss:$4 sm:$0xff] %v772
    %2486 = vst [vmem:[%s2469] ss:$4 sm:$0xff] %v776
    %2487 = vst [vmem:[%s2471] ss:$4 sm:$0xff] %v779
    %2488 = vst [vmem:[%s2473] ss:$4 sm:$0xff] %v782
    %2489 = vst [vmem:[%s2475] ss:$4 sm:$0xff] %v786
    %2490 = vst [vmem:[%s2477] ss:$4 sm:$0xff] %v789
    %2491 = vst [vmem:[%s2479] ss:$4 sm:$0xff] %v792
    %2492 = vst [vmem:[%s2481] ss:$4 sm:$0xff] %v796
    %v2493 = vld.sshfl [vmem:[#allocation1] sm:$0xff pattern:$0x73625140]
    %v2494 = vld.sshfl [vmem:[#allocation1 + $0x20] sm:$0xff pattern:$0x73625140]
    %2495 = vst [vmem:[#allocation1] ss:$4 sm:$0xff] %v799
    %2496 = vst [vmem:[%s2469] ss:$4 sm:$0xff] %v802
    %2497 = vst [vmem:[%s2471] ss:$4 sm:$0xff] %v806
    %2498 = vst [vmem:[%s2473] ss:$4 sm:$0xff] %v809
    %2499 = vst [vmem:[%s2475] ss:$4 sm:$0xff] %v812
    %2500 = vst [vmem:[%s2477] ss:$4 sm:$0xff] %v816
    %2501 = vst [vmem:[%s2479] ss:$4 sm:$0xff] %v819
    %2502 = vst [vmem:[%s2481] ss:$4 sm:$0xff] %v822
    %v2503 = vld.sshfl [vmem:[#allocation1] sm:$0xff pattern:$0x73625140]
    %v2504 = vld.sshfl [vmem:[#allocation1 + $0x20] sm:$0xff pattern:$0x73625140]
    %v2505 = vsel %vm198, %v2483, 0
    %v2507 = vsel %vm198, %v2484, 0
    %v2509 = vsel %vm198, %v2493, 0
    %v2511 = vsel %vm198, %v2494, 0
    %v2513 = vsel %vm198, %v2503, 0
    %v2515 = vsel %vm198, %v2504, 0
    %2517 = vmatpush.msra.mxu0 0.0
    %2518 = vmatpush.msra.mxu0 0.0
    %2519 = vmatpush.msra.mxu0 0.0
    %2520 = vmatpush.msra.mxu0 0.0
    %2521 = vmatpush.msra.mxu0 0.0
    %2522 = vmatpush.msra.mxu0 0.0
    %2523 = vmatpush.msra.mxu0 0.0
    %2524 = vmatpush.msra.mxu0 0.0
    %2525 = vmatpush.msra.mxu0 0.0
    %2526 = vmatpush.msra.mxu0 0.0
    %2527 = vmatpush.msra.mxu0 0.0
    %2528 = vmatpush.msra.mxu0 0.0
    %2529 = vmatpush.msra.mxu0 %v159
    %2530 = vmatpush.msra.mxu0 %v157
    %2531 = vmatpush.msra.mxu0 %v155
    %2532 = vmatpush.msra.mxu0 %v153
    %2533 = vmatmul.f32.gmra.mxu0 %v2505
    %v2534 = vpop.f32.mrf.mxu0
    %v2535 = vadd.f32 0.0, %v2534
    %2536 = vmatmul.f32.gmra.mxu0 %v2507
    %v2537 = vpop.f32.mrf.mxu0
    %v2538 = vadd.f32 0.0, %v2537
    %2539 = vmatmul.f32.gmra.mxu0 %v2509
    %v2540 = vpop.f32.mrf.mxu0
    %v2541 = vadd.f32 0.0, %v2540
    %2542 = vmatmul.f32.gmra.mxu0 %v2511
    %v2543 = vpop.f32.mrf.mxu0
    %v2544 = vadd.f32 0.0, %v2543
    %2545 = vmatmul.f32.gmra.mxu0 %v2513
    %v2546 = vpop.f32.mrf.mxu0
    %v2547 = vadd.f32 0.0, %v2546
    %2548 = vmatmul.f32.gmra.mxu0 %v2515
    %v2549 = vpop.f32.mrf.mxu0
    %v2550 = vadd.f32 0.0, %v2549
    %2551 = vdwg.mxu0
    %2552 = vmatpush.msra.mxu0 0.0
    %2553 = vmatpush.msra.mxu0 0.0
    %2554 = vmatpush.msra.mxu0 0.0
    %2555 = vmatpush.msra.mxu0 0.0
    %2556 = vmatpush.msra.mxu0 0.0
    %2557 = vmatpush.msra.mxu0 0.0
    %2558 = vmatpush.msra.mxu0 0.0
    %2559 = vmatpush.msra.mxu0 0.0
    %2560 = vmatpush.msra.mxu0 0.0
    %2561 = vmatpush.msra.mxu0 0.0
    %2562 = vmatpush.msra.mxu0 0.0
    %2563 = vmatpush.msra.mxu0 0.0
    %2564 = vmatpush.msra.mxu0 %v160
    %2565 = vmatpush.msra.mxu0 %v158
    %2566 = vmatpush.msra.mxu0 %v156
    %2567 = vmatpush.msra.mxu0 %v154
    %2568 = vmatmul.f32.gmra.mxu0 %v2505
    %v2569 = vpop.f32.mrf.mxu0
    %v2570 = vadd.f32 0.0, %v2569
    %2571 = vmatmul.f32.gmra.mxu0 %v2507
    %v2572 = vpop.f32.mrf.mxu0
    %v2573 = vadd.f32 0.0, %v2572
    %2574 = vmatmul.f32.gmra.mxu0 %v2509
    %v2575 = vpop.f32.mrf.mxu0
    %v2576 = vadd.f32 0.0, %v2575
    %2577 = vmatmul.f32.gmra.mxu0 %v2511
    %v2578 = vpop.f32.mrf.mxu0
    %v2579 = vadd.f32 0.0, %v2578
    %2580 = vmatmul.f32.gmra.mxu0 %v2513
    %v2581 = vpop.f32.mrf.mxu0
    %v2582 = vadd.f32 0.0, %v2581
    %2583 = vmatmul.f32.gmra.mxu0 %v2515
    %v2584 = vpop.f32.mrf.mxu0
    %v2585 = vadd.f32 0.0, %v2584
    %2586 = vdwg.mxu0
    %2587 = vst [vmem:[#allocation1] ss:$4 sm:$0xff] %v67
    %s2588 = scalar_lea.vmem [#allocation1], 1
    %2589 = vst [vmem:[%s2588] ss:$4 sm:$0xff] %v572
    %s2590 = scalar_lea.vmem [#allocation1], 2
    %2591 = vst [vmem:[%s2590] ss:$4 sm:$0xff] %v573
    %s2592 = scalar_lea.vmem [#allocation1], 3
    %2593 = vst [vmem:[%s2592] ss:$4 sm:$0xff] %v71
    %s2594 = scalar_lea.vmem [#allocation1], 32
    %2595 = vst [vmem:[%s2594] ss:$4 sm:$0xff] %v574
    %s2596 = scalar_lea.vmem [#allocation1], 33
    %2597 = vst [vmem:[%s2596] ss:$4 sm:$0xff] %v575
    %s2598 = scalar_lea.vmem [#allocation1], 34
    %2599 = vst [vmem:[%s2598] ss:$4 sm:$0xff] %v75
    %s2600 = scalar_lea.vmem [#allocation1], 35
    %2601 = vst [vmem:[%s2600] ss:$4 sm:$0xff] %v576
    %v2602 = vld.sshfl [vmem:[#allocation1] sm:$0xff pattern:$0x73625140]
    %v2603 = vld.sshfl [vmem:[#allocation1 + $0x20] sm:$0xff pattern:$0x73625140]
    %2604 = vst [vmem:[#allocation1] ss:$4 sm:$0xff] %v577
    %2605 = vst [vmem:[%s2588] ss:$4 sm:$0xff] %v79
    %2606 = vst [vmem:[%s2590] ss:$4 sm:$0xff] %v578
    %2607 = vst [vmem:[%s2592] ss:$4 sm:$0xff] %v579
    %2608 = vst [vmem:[%s2594] ss:$4 sm:$0xff] %v83
    %2609 = vst [vmem:[%s2596] ss:$4 sm:$0xff] %v580
    %2610 = vst [vmem:[%s2598] ss:$4 sm:$0xff] %v581
    %2611 = vst [vmem:[%s2600] ss:$4 sm:$0xff] %v87
    %v2612 = vld.sshfl [vmem:[#allocation1] sm:$0xff pattern:$0x73625140]
    %v2613 = vld.sshfl [vmem:[#allocation1 + $0x20] sm:$0xff pattern:$0x73625140]
    %2614 = vst [vmem:[#allocation1] ss:$4 sm:$0xff] %v582
    %2615 = vst [vmem:[%s2588] ss:$4 sm:$0xff] %v583
    %2616 = vst [vmem:[%s2590] ss:$4 sm:$0xff] %v91
    %2617 = vst [vmem:[%s2592] ss:$4 sm:$0xff] %v584
    %2618 = vst [vmem:[%s2594] ss:$4 sm:$0xff] %v585
    %2619 = vst [vmem:[%s2596] ss:$4 sm:$0xff] %v95
    %2620 = vst [vmem:[%s2598] ss:$4 sm:$0xff] %v586
    %2621 = vst [vmem:[%s2600] ss:$4 sm:$0xff] %v587
    %v2622 = vld.sshfl [vmem:[#allocation1] sm:$0xff pattern:$0x73625140]
    %v2623 = vld.sshfl [vmem:[#allocation1 + $0x20] sm:$0xff pattern:$0x73625140]
    %v2624 = vsel %vm198, %v2602, 0
    %v2626 = vsel %vm198, %v2603, 0
    %v2628 = vsel %vm198, %v2612, 0
    %v2630 = vsel %vm198, %v2613, 0
    %v2632 = vsel %vm198, %v2622, 0
    %v2634 = vsel %vm198, %v2623, 0
    %2636 = vmatpush.msra.mxu0 0.0
    %2637 = vmatpush.msra.mxu0 0.0
    %2638 = vmatpush.msra.mxu0 0.0
    %2639 = vmatpush.msra.mxu0 0.0
    %2640 = vmatpush.msra.mxu0 0.0
    %2641 = vmatpush.msra.mxu0 0.0
    %2642 = vmatpush.msra.mxu0 0.0
    %2643 = vmatpush.msra.mxu0 0.0
    %2644 = vmatpush.msra.mxu0 0.0
    %2645 = vmatpush.msra.mxu0 0.0
    %2646 = vmatpush.msra.mxu0 0.0
    %2647 = vmatpush.msra.mxu0 0.0
    %2648 = vmatpush.msra.mxu0 %v126
    %2649 = vmatpush.msra.mxu0 %v124
    %2650 = vmatpush.msra.mxu0 %v122
    %2651 = vmatpush.msra.mxu0 %v120
    %2652 = vmatmul.f32.gmra.mxu0 %v2624
    %v2653 = vpop.f32.mrf.mxu0
    %v2654 = vadd.f32 %v2535, %v2653
    %2655 = vmatmul.f32.gmra.mxu0 %v2626
    %v2656 = vpop.f32.mrf.mxu0
    %v2657 = vadd.f32 %v2538, %v2656
    %2658 = vmatmul.f32.gmra.mxu0 %v2628
    %v2659 = vpop.f32.mrf.mxu0
    %v2660 = vadd.f32 %v2541, %v2659
    %2661 = vmatmul.f32.gmra.mxu0 %v2630
    %v2662 = vpop.f32.mrf.mxu0
    %v2663 = vadd.f32 %v2544, %v2662
    %2664 = vmatmul.f32.gmra.mxu0 %v2632
    %v2665 = vpop.f32.mrf.mxu0
    %v2666 = vadd.f32 %v2547, %v2665
    %2667 = vmatmul.f32.gmra.mxu0 %v2634
    %v2668 = vpop.f32.mrf.mxu0
    %v2669 = vadd.f32 %v2550, %v2668
    %2670 = vdwg.mxu0
    %2671 = vmatpush.msra.mxu0 0.0
    %2672 = vmatpush.msra.mxu0 0.0
    %2673 = vmatpush.msra.mxu0 0.0
    %2674 = vmatpush.msra.mxu0 0.0
    %2675 = vmatpush.msra.mxu0 0.0
    %2676 = vmatpush.msra.mxu0 0.0
    %2677 = vmatpush.msra.mxu0 0.0
    %2678 = vmatpush.msra.mxu0 0.0
    %2679 = vmatpush.msra.mxu0 0.0
    %2680 = vmatpush.msra.mxu0 0.0
    %2681 = vmatpush.msra.mxu0 0.0
    %2682 = vmatpush.msra.mxu0 0.0
    %2683 = vmatpush.msra.mxu0 %v127
    %2684 = vmatpush.msra.mxu0 %v125
    %2685 = vmatpush.msra.mxu0 %v123
    %2686 = vmatpush.msra.mxu0 %v121
    %2687 = vmatmul.f32.gmra.mxu0 %v2624
    %v2688 = vpop.f32.mrf.mxu0
    %v2689 = vadd.f32 %v2570, %v2688
    %2690 = vmatmul.f32.gmra.mxu0 %v2626
    %v2691 = vpop.f32.mrf.mxu0
    %v2692 = vadd.f32 %v2573, %v2691
    %2693 = vmatmul.f32.gmra.mxu0 %v2628
    %v2694 = vpop.f32.mrf.mxu0
    %v2695 = vadd.f32 %v2576, %v2694
    %2696 = vmatmul.f32.gmra.mxu0 %v2630
    %v2697 = vpop.f32.mrf.mxu0
    %v2698 = vadd.f32 %v2579, %v2697
    %2699 = vmatmul.f32.gmra.mxu0 %v2632
    %v2700 = vpop.f32.mrf.mxu0
    %v2701 = vadd.f32 %v2582, %v2700
    %2702 = vmatmul.f32.gmra.mxu0 %v2634
    %v2703 = vpop.f32.mrf.mxu0
    %v2704 = vadd.f32 %v2585, %v2703
    %2705 = vdwg.mxu0
    %2706 = vst [vmem:[#allocation1] ss:$4 sm:$0xff] %v1474
    %s2707 = scalar_lea.vmem [#allocation1], 1
    %2708 = vst [vmem:[%s2707] ss:$4 sm:$0xff] %v1477
    %s2709 = scalar_lea.vmem [#allocation1], 2
    %2710 = vst [vmem:[%s2709] ss:$4 sm:$0xff] %v1480
    %s2711 = scalar_lea.vmem [#allocation1], 3
    %2712 = vst [vmem:[%s2711] ss:$4 sm:$0xff] %v1484
    %s2713 = scalar_lea.vmem [#allocation1], 32
    %2714 = vst [vmem:[%s2713] ss:$4 sm:$0xff] %v1487
    %s2715 = scalar_lea.vmem [#allocation1], 33
    %2716 = vst [vmem:[%s2715] ss:$4 sm:$0xff] %v1490
    %s2717 = scalar_lea.vmem [#allocation1], 34
    %2718 = vst [vmem:[%s2717] ss:$4 sm:$0xff] %v1494
    %s2719 = scalar_lea.vmem [#allocation1], 35
    %2720 = vst [vmem:[%s2719] ss:$4 sm:$0xff] %v1497
    %v2721 = vld.sshfl [vmem:[#allocation1] sm:$0xff pattern:$0x73625140]
    %v2722 = vld.sshfl [vmem:[#allocation1 + $0x20] sm:$0xff pattern:$0x73625140]
    %2723 = vst [vmem:[#allocation1] ss:$4 sm:$0xff] %v1500
    %2724 = vst [vmem:[%s2707] ss:$4 sm:$0xff] %v1504
    %2725 = vst [vmem:[%s2709] ss:$4 sm:$0xff] %v1507
    %2726 = vst [vmem:[%s2711] ss:$4 sm:$0xff] %v1510
    %2727 = vst [vmem:[%s2713] ss:$4 sm:$0xff] %v1514
    %2728 = vst [vmem:[%s2715] ss:$4 sm:$0xff] %v1517
    %2729 = vst [vmem:[%s2717] ss:$4 sm:$0xff] %v1520
    %2730 = vst [vmem:[%s2719] ss:$4 sm:$0xff] %v1524
    %v2731 = vld.sshfl [vmem:[#allocation1] sm:$0xff pattern:$0x73625140]
    %v2732 = vld.sshfl [vmem:[#allocation1 + $0x20] sm:$0xff pattern:$0x73625140]
    %2733 = vst [vmem:[#allocation1] ss:$4 sm:$0xff] %v1527
    %2734 = vst [vmem:[%s2707] ss:$4 sm:$0xff] %v1530
    %2735 = vst [vmem:[%s2709] ss:$4 sm:$0xff] %v1534
    %2736 = vst [vmem:[%s2711] ss:$4 sm:$0xff] %v1537
    %2737 = vst [vmem:[%s2713] ss:$4 sm:$0xff] %v1540
    %2738 = vst [vmem:[%s2715] ss:$4 sm:$0xff] %v1544
    %2739 = vst [vmem:[%s2717] ss:$4 sm:$0xff] %v1547
    %2740 = vst [vmem:[%s2719] ss:$4 sm:$0xff] %v1550
    %v2741 = vld.sshfl [vmem:[#allocation1] sm:$0xff pattern:$0x73625140]
    %v2742 = vld.sshfl [vmem:[#allocation1 + $0x20] sm:$0xff pattern:$0x73625140]
    %v2743 = vsel %vm198, %v2721, 0
    %v2745 = vsel %vm198, %v2722, 0
    %v2747 = vsel %vm198, %v2731, 0
    %v2749 = vsel %vm198, %v2732, 0
    %v2751 = vsel %vm198, %v2741, 0
    %v2753 = vsel %vm198, %v2742, 0
    %2755 = vmatpush.msra.mxu0 0.0
    %2756 = vmatpush.msra.mxu0 0.0
    %2757 = vmatpush.msra.mxu0 0.0
    %2758 = vmatpush.msra.mxu0 0.0
    %2759 = vmatpush.msra.mxu0 0.0
    %2760 = vmatpush.msra.mxu0 0.0
    %2761 = vmatpush.msra.mxu0 0.0
    %2762 = vmatpush.msra.mxu0 0.0
    %2763 = vmatpush.msra.mxu0 0.0
    %2764 = vmatpush.msra.mxu0 0.0
    %2765 = vmatpush.msra.mxu0 0.0
    %2766 = vmatpush.msra.mxu0 0.0
    %2767 = vmatpush.msra.mxu0 %v431
    %2768 = vmatpush.msra.mxu0 %v429
    %2769 = vmatpush.msra.mxu0 %v427
    %2770 = vmatpush.msra.mxu0 %v425
    %2771 = vmatmul.f32.gmra.mxu0 %v2743
    %v2772 = vpop.f32.mrf.mxu0
    %v2773 = vadd.f32 0.0, %v2772
    %2774 = vmatmul.f32.gmra.mxu0 %v2745
    %v2775 = vpop.f32.mrf.mxu0
    %v2776 = vadd.f32 0.0, %v2775
    %2777 = vmatmul.f32.gmra.mxu0 %v2747
    %v2778 = vpop.f32.mrf.mxu0
    %v2779 = vadd.f32 0.0, %v2778
    %2780 = vmatmul.f32.gmra.mxu0 %v2749
    %v2781 = vpop.f32.mrf.mxu0
    %v2782 = vadd.f32 0.0, %v2781
    %2783 = vmatmul.f32.gmra.mxu0 %v2751
    %v2784 = vpop.f32.mrf.mxu0
    %v2785 = vadd.f32 0.0, %v2784
    %2786 = vmatmul.f32.gmra.mxu0 %v2753
    %v2787 = vpop.f32.mrf.mxu0
    %v2788 = vadd.f32 0.0, %v2787
    %2789 = vdwg.mxu0
    %2790 = vmatpush.msra.mxu0 0.0
    %2791 = vmatpush.msra.mxu0 0.0
    %2792 = vmatpush.msra.mxu0 0.0
    %2793 = vmatpush.msra.mxu0 0.0
    %2794 = vmatpush.msra.mxu0 0.0
    %2795 = vmatpush.msra.mxu0 0.0
    %2796 = vmatpush.msra.mxu0 0.0
    %2797 = vmatpush.msra.mxu0 0.0
    %2798 = vmatpush.msra.mxu0 0.0
    %2799 = vmatpush.msra.mxu0 0.0
    %2800 = vmatpush.msra.mxu0 0.0
    %2801 = vmatpush.msra.mxu0 0.0
    %2802 = vmatpush.msra.mxu0 %v432
    %2803 = vmatpush.msra.mxu0 %v430
    %2804 = vmatpush.msra.mxu0 %v428
    %2805 = vmatpush.msra.mxu0 %v426
    %2806 = vmatmul.f32.gmra.mxu0 %v2743
    %v2807 = vpop.f32.mrf.mxu0
    %v2808 = vadd.f32 0.0, %v2807
    %2809 = vmatmul.f32.gmra.mxu0 %v2745
    %v2810 = vpop.f32.mrf.mxu0
    %v2811 = vadd.f32 0.0, %v2810
    %2812 = vmatmul.f32.gmra.mxu0 %v2747
    %v2813 = vpop.f32.mrf.mxu0
    %v2814 = vadd.f32 0.0, %v2813
    %2815 = vmatmul.f32.gmra.mxu0 %v2749
    %v2816 = vpop.f32.mrf.mxu0
    %v2817 = vadd.f32 0.0, %v2816
    %2818 = vmatmul.f32.gmra.mxu0 %v2751
    %v2819 = vpop.f32.mrf.mxu0
    %v2820 = vadd.f32 0.0, %v2819
    %2821 = vmatmul.f32.gmra.mxu0 %v2753
    %v2822 = vpop.f32.mrf.mxu0
    %v2823 = vadd.f32 0.0, %v2822
    %2824 = vdwg.mxu0
    %v2825 = vadd.f32 %v2654, %v2773
    %v2826 = vadd.f32 %v2689, %v2808
    %v2827 = vadd.f32 %v2657, %v2776
    %v2828 = vadd.f32 %v2692, %v2811
    %v2829 = vadd.f32 %v2660, %v2779
    %v2830 = vadd.f32 %v2695, %v2814
    %v2831 = vadd.f32 %v2663, %v2782
    %v2832 = vadd.f32 %v2698, %v2817
    %v2833 = vadd.f32 %v2666, %v2785
    %v2834 = vadd.f32 %v2701, %v2820
    %v2835 = vadd.f32 %v2669, %v2788
    %v2836 = vadd.f32 %v2704, %v2823
    %2837 = vst [vmem:[#allocation1] ss:$4 sm:$0xff] %v2260
    %s2838 = scalar_lea.vmem [#allocation1], 1
    %2839 = vst [vmem:[%s2838] ss:$4 sm:$0xff] %v2263
    %s2840 = scalar_lea.vmem [#allocation1], 2
    %2841 = vst [vmem:[%s2840] ss:$4 sm:$0xff] %v2266
    %s2842 = scalar_lea.vmem [#allocation1], 3
    %2843 = vst [vmem:[%s2842] ss:$4 sm:$0xff] %v2270
    %s2844 = scalar_lea.vmem [#allocation1], 32
    %2845 = vst [vmem:[%s2844] ss:$4 sm:$0xff] %v2273
    %s2846 = scalar_lea.vmem [#allocation1], 33
    %2847 = vst [vmem:[%s2846] ss:$4 sm:$0xff] %v2276
    %s2848 = scalar_lea.vmem [#allocation1], 34
    %2849 = vst [vmem:[%s2848] ss:$4 sm:$0xff] %v2280
    %s2850 = scalar_lea.vmem [#allocation1], 35
    %2851 = vst [vmem:[%s2850] ss:$4 sm:$0xff] %v2283
    %v2852 = vld.sshfl [vmem:[#allocation1] sm:$0xff pattern:$0x73625140]
    %v2853 = vld.sshfl [vmem:[#allocation1 + $0x20] sm:$0xff pattern:$0x73625140]
    %2854 = vst [vmem:[#allocation1] ss:$4 sm:$0xff] %v2286
    %2855 = vst [vmem:[%s2838] ss:$4 sm:$0xff] %v2290
    %2856 = vst [vmem:[%s2840] ss:$4 sm:$0xff] %v2293
    %2857 = vst [vmem:[%s2842] ss:$4 sm:$0xff] %v2296
    %2858 = vst [vmem:[%s2844] ss:$4 sm:$0xff] %v2300
    %2859 = vst [vmem:[%s2846] ss:$4 sm:$0xff] %v2303
    %2860 = vst [vmem:[%s2848] ss:$4 sm:$0xff] %v2306
    %2861 = vst [vmem:[%s2850] ss:$4 sm:$0xff] %v2310
    %v2862 = vld.sshfl [vmem:[#allocation1] sm:$0xff pattern:$0x73625140]
    %v2863 = vld.sshfl [vmem:[#allocation1 + $0x20] sm:$0xff pattern:$0x73625140]
    %2864 = vst [vmem:[#allocation1] ss:$4 sm:$0xff] %v2313
    %2865 = vst [vmem:[%s2838] ss:$4 sm:$0xff] %v2316
    %2866 = vst [vmem:[%s2840] ss:$4 sm:$0xff] %v2320
    %2867 = vst [vmem:[%s2842] ss:$4 sm:$0xff] %v2323
    %2868 = vst [vmem:[%s2844] ss:$4 sm:$0xff] %v2326
    %2869 = vst [vmem:[%s2846] ss:$4 sm:$0xff] %v2330
    %2870 = vst [vmem:[%s2848] ss:$4 sm:$0xff] %v2333
    %2871 = vst [vmem:[%s2850] ss:$4 sm:$0xff] %v2336
    %v2872 = vld.sshfl [vmem:[#allocation1] sm:$0xff pattern:$0x73625140]
    %v2873 = vld.sshfl [vmem:[#allocation1 + $0x20] sm:$0xff pattern:$0x73625140]
    %v2874 = vsel %vm198, %v2852, 0
    %v2876 = vsel %vm198, %v2853, 0
    %v2878 = vsel %vm198, %v2862, 0
    %v2880 = vsel %vm198, %v2863, 0
    %v2882 = vsel %vm198, %v2872, 0
    %v2884 = vsel %vm198, %v2873, 0
    %2886 = vmatpush.msra.mxu0 0.0
    %2887 = vmatpush.msra.mxu0 0.0
    %2888 = vmatpush.msra.mxu0 0.0
    %2889 = vmatpush.msra.mxu0 0.0
    %2890 = vmatpush.msra.mxu0 0.0
    %2891 = vmatpush.msra.mxu0 0.0
    %2892 = vmatpush.msra.mxu0 0.0
    %2893 = vmatpush.msra.mxu0 0.0
    %2894 = vmatpush.msra.mxu0 0.0
    %2895 = vmatpush.msra.mxu0 0.0
    %2896 = vmatpush.msra.mxu0 0.0
    %2897 = vmatpush.msra.mxu0 0.0
    %2898 = vmatpush.msra.mxu0 %v595
    %2899 = vmatpush.msra.mxu0 %v593
    %2900 = vmatpush.msra.mxu0 %v591
    %2901 = vmatpush.msra.mxu0 %v589
    %2902 = vmatmul.f32.gmra.mxu0 %v2874
    %v2903 = vpop.f32.mrf.mxu0
    %v2904 = vadd.f32 0.0, %v2903
    %2905 = vmatmul.f32.gmra.mxu0 %v2876
    %v2906 = vpop.f32.mrf.mxu0
    %v2907 = vadd.f32 0.0, %v2906
    %2908 = vmatmul.f32.gmra.mxu0 %v2878
    %v2909 = vpop.f32.mrf.mxu0
    %v2910 = vadd.f32 0.0, %v2909
    %2911 = vmatmul.f32.gmra.mxu0 %v2880
    %v2912 = vpop.f32.mrf.mxu0
    %v2913 = vadd.f32 0.0, %v2912
    %2914 = vmatmul.f32.gmra.mxu0 %v2882
    %v2915 = vpop.f32.mrf.mxu0
    %v2916 = vadd.f32 0.0, %v2915
    %2917 = vmatmul.f32.gmra.mxu0 %v2884
    %v2918 = vpop.f32.mrf.mxu0
    %v2919 = vadd.f32 0.0, %v2918
    %2920 = vdwg.mxu0
    %2921 = vmatpush.msra.mxu0 0.0
    %2922 = vmatpush.msra.mxu0 0.0
    %2923 = vmatpush.msra.mxu0 0.0
    %2924 = vmatpush.msra.mxu0 0.0
    %2925 = vmatpush.msra.mxu0 0.0
    %2926 = vmatpush.msra.mxu0 0.0
    %2927 = vmatpush.msra.mxu0 0.0
    %2928 = vmatpush.msra.mxu0 0.0
    %2929 = vmatpush.msra.mxu0 0.0
    %2930 = vmatpush.msra.mxu0 0.0
    %2931 = vmatpush.msra.mxu0 0.0
    %2932 = vmatpush.msra.mxu0 0.0
    %2933 = vmatpush.msra.mxu0 %v596
    %2934 = vmatpush.msra.mxu0 %v594
    %2935 = vmatpush.msra.mxu0 %v592
    %2936 = vmatpush.msra.mxu0 %v590
    %2937 = vmatmul.f32.gmra.mxu0 %v2874
    %v2938 = vpop.f32.mrf.mxu0
    %v2939 = vadd.f32 0.0, %v2938
    %2940 = vmatmul.f32.gmra.mxu0 %v2876
    %v2941 = vpop.f32.mrf.mxu0
    %v2942 = vadd.f32 0.0, %v2941
    %2943 = vmatmul.f32.gmra.mxu0 %v2878
    %v2944 = vpop.f32.mrf.mxu0
    %v2945 = vadd.f32 0.0, %v2944
    %2946 = vmatmul.f32.gmra.mxu0 %v2880
    %v2947 = vpop.f32.mrf.mxu0
    %v2948 = vadd.f32 0.0, %v2947
    %2949 = vmatmul.f32.gmra.mxu0 %v2882
    %v2950 = vpop.f32.mrf.mxu0
    %v2951 = vadd.f32 0.0, %v2950
    %2952 = vmatmul.f32.gmra.mxu0 %v2884
    %v2953 = vpop.f32.mrf.mxu0
    %v2954 = vadd.f32 0.0, %v2953
    %2955 = vdwg.mxu0
    %v2956 = vadd.f32 %v2825, %v2904
    %v2957 = vadd.f32 %v2826, %v2939
    %v2958 = vadd.f32 %v2827, %v2907
    %v2959 = vadd.f32 %v2828, %v2942
    %v2960 = vadd.f32 %v2829, %v2910
    %v2961 = vadd.f32 %v2830, %v2945
    %v2962 = vadd.f32 %v2831, %v2913
    %v2963 = vadd.f32 %v2832, %v2948
    %v2964 = vadd.f32 %v2833, %v2916
    %v2965 = vadd.f32 %v2834, %v2951
    %v2966 = vadd.f32 %v2835, %v2919
    %v2967 = vadd.f32 %v2836, %v2954
    %v2968 = vrot.slane %v67, 6
    %v2969 = vrot.slane %v71, 6
    %v2970 = vrot.slane %v75, 6
    %v2971 = vrot.slane %v79, 6
    %v2972 = vrot.slane %v83, 6
    %v2973 = vrot.slane %v87, 6
    %v2974 = vrot.slane %v91, 6
    %v2975 = vrot.slane %v95, 6
    %v2976 = vrot.slane %v67, 7
    %v2977 = vrot.slane %v2976, 2
    %v2978 = vrot.slane %v572, 7
    %v2979 = vsel %vm742, %v2977, %v2978
    %v2980 = vrot.slane %v2978, 2
    %v2981 = vrot.slane %v573, 7
    %v2982 = vsel %vm742, %v2980, %v2981
    %v2983 = vrot.slane %v2981, 2
    %v2984 = vrot.slane %v2968, 7
    %v2985 = vsel %vm742, %v2983, %v2984
    %v2986 = vrot.slane %v71, 7
    %v2987 = vrot.slane %v2986, 2
    %v2988 = vrot.slane %v574, 7
    %v2989 = vsel %vm742, %v2987, %v2988
    %v2990 = vrot.slane %v2988, 2
    %v2991 = vrot.slane %v575, 7
    %v2992 = vsel %vm742, %v2990, %v2991
    %v2993 = vrot.slane %v2991, 2
    %v2994 = vrot.slane %v2969, 7
    %v2995 = vsel %vm742, %v2993, %v2994
    %v2996 = vrot.slane %v75, 7
    %v2997 = vrot.slane %v2996, 2
    %v2998 = vrot.slane %v576, 7
    %v2999 = vsel %vm742, %v2997, %v2998
    %v3000 = vrot.slane %v2998, 2
    %v3001 = vrot.slane %v577, 7
    %v3002 = vsel %vm742, %v3000, %v3001
    %v3003 = vrot.slane %v3001, 2
    %v3004 = vrot.slane %v2970, 7
    %v3005 = vsel %vm742, %v3003, %v3004
    %v3006 = vrot.slane %v79, 7
    %v3007 = vrot.slane %v3006, 2
    %v3008 = vrot.slane %v578, 7
    %v3009 = vsel %vm742, %v3007, %v3008
    %v3010 = vrot.slane %v3008, 2
    %v3011 = vrot.slane %v579, 7
    %v3012 = vsel %vm742, %v3010, %v3011
    %v3013 = vrot.slane %v3011, 2
    %v3014 = vrot.slane %v2971, 7
    %v3015 = vsel %vm742, %v3013, %v3014
    %v3016 = vrot.slane %v83, 7
    %v3017 = vrot.slane %v3016, 2
    %v3018 = vrot.slane %v580, 7
    %v3019 = vsel %vm742, %v3017, %v3018
    %v3020 = vrot.slane %v3018, 2
    %v3021 = vrot.slane %v581, 7
    %v3022 = vsel %vm742, %v3020, %v3021
    %v3023 = vrot.slane %v3021, 2
    %v3024 = vrot.slane %v2972, 7
    %v3025 = vsel %vm742, %v3023, %v3024
    %v3026 = vrot.slane %v87, 7
    %v3027 = vrot.slane %v3026, 2
    %v3028 = vrot.slane %v582, 7
    %v3029 = vsel %vm742, %v3027, %v3028
    %v3030 = vrot.slane %v3028, 2
    %v3031 = vrot.slane %v583, 7
    %v3032 = vsel %vm742, %v3030, %v3031
    %v3033 = vrot.slane %v3031, 2
    %v3034 = vrot.slane %v2973, 7
    %v3035 = vsel %vm742, %v3033, %v3034
    %v3036 = vrot.slane %v91, 7
    %v3037 = vrot.slane %v3036, 2
    %v3038 = vrot.slane %v584, 7
    %v3039 = vsel %vm742, %v3037, %v3038
    %v3040 = vrot.slane %v3038, 2
    %v3041 = vrot.slane %v585, 7
    %v3042 = vsel %vm742, %v3040, %v3041
    %v3043 = vrot.slane %v3041, 2
    %v3044 = vrot.slane %v2974, 7
    %v3045 = vsel %vm742, %v3043, %v3044
    %v3046 = vrot.slane %v95, 7
    %v3047 = vrot.slane %v3046, 2
    %v3048 = vrot.slane %v586, 7
    %v3049 = vsel %vm742, %v3047, %v3048
    %v3050 = vrot.slane %v3048, 2
    %v3051 = vrot.slane %v587, 7
    %v3052 = vsel %vm742, %v3050, %v3051
    %v3053 = vrot.slane %v3051, 2
    %v3054 = vrot.slane %v2975, 7
    %v3055 = vsel %vm742, %v3053, %v3054
    %3056 = vst [vmem:[#allocation1] ss:$4 sm:$0xff] %v2979
    %s3057 = scalar_lea.vmem [#allocation1], 1
    %3058 = vst [vmem:[%s3057] ss:$4 sm:$0xff] %v2982
    %s3059 = scalar_lea.vmem [#allocation1], 2
    %3060 = vst [vmem:[%s3059] ss:$4 sm:$0xff] %v2985
    %s3061 = scalar_lea.vmem [#allocation1], 3
    %3062 = vst [vmem:[%s3061] ss:$4 sm:$0xff] %v2989
    %s3063 = scalar_lea.vmem [#allocation1], 32
    %3064 = vst [vmem:[%s3063] ss:$4 sm:$0xff] %v2992
    %s3065 = scalar_lea.vmem [#allocation1], 33
    %3066 = vst [vmem:[%s3065] ss:$4 sm:$0xff] %v2995
    %s3067 = scalar_lea.vmem [#allocation1], 34
    %3068 = vst [vmem:[%s3067] ss:$4 sm:$0xff] %v2999
    %s3069 = scalar_lea.vmem [#allocation1], 35
    %3070 = vst [vmem:[%s3069] ss:$4 sm:$0xff] %v3002
    %v3071 = vld.sshfl [vmem:[#allocation1] sm:$0xff pattern:$0x73625140]
    %v3072 = vld.sshfl [vmem:[#allocation1 + $0x20] sm:$0xff pattern:$0x73625140]
    %3073 = vst [vmem:[#allocation1] ss:$4 sm:$0xff] %v3005
    %3074 = vst [vmem:[%s3057] ss:$4 sm:$0xff] %v3009
    %3075 = vst [vmem:[%s3059] ss:$4 sm:$0xff] %v3012
    %3076 = vst [vmem:[%s3061] ss:$4 sm:$0xff] %v3015
    %3077 = vst [vmem:[%s3063] ss:$4 sm:$0xff] %v3019
    %3078 = vst [vmem:[%s3065] ss:$4 sm:$0xff] %v3022
    %3079 = vst [vmem:[%s3067] ss:$4 sm:$0xff] %v3025
    %3080 = vst [vmem:[%s3069] ss:$4 sm:$0xff] %v3029
    %v3081 = vld.sshfl [vmem:[#allocation1] sm:$0xff pattern:$0x73625140]
    %v3082 = vld.sshfl [vmem:[#allocation1 + $0x20] sm:$0xff pattern:$0x73625140]
    %3083 = vst [vmem:[#allocation1] ss:$4 sm:$0xff] %v3032
    %3084 = vst [vmem:[%s3057] ss:$4 sm:$0xff] %v3035
    %3085 = vst [vmem:[%s3059] ss:$4 sm:$0xff] %v3039
    %3086 = vst [vmem:[%s3061] ss:$4 sm:$0xff] %v3042
    %3087 = vst [vmem:[%s3063] ss:$4 sm:$0xff] %v3045
    %3088 = vst [vmem:[%s3065] ss:$4 sm:$0xff] %v3049
    %3089 = vst [vmem:[%s3067] ss:$4 sm:$0xff] %v3052
    %3090 = vst [vmem:[%s3069] ss:$4 sm:$0xff] %v3055
    %v3091 = vld.sshfl [vmem:[#allocation1] sm:$0xff pattern:$0x73625140]
    %v3092 = vld.sshfl [vmem:[#allocation1 + $0x20] sm:$0xff pattern:$0x73625140]
    %v3093 = vsel %vm198, %v3071, 0
    %v3095 = vsel %vm198, %v3072, 0
    %v3097 = vsel %vm198, %v3081, 0
    %v3099 = vsel %vm198, %v3082, 0
    %v3101 = vsel %vm198, %v3091, 0
    %v3103 = vsel %vm198, %v3092, 0
    %3105 = vmatpush.msra.mxu0 0.0
    %3106 = vmatpush.msra.mxu0 0.0
    %3107 = vmatpush.msra.mxu0 0.0
    %3108 = vmatpush.msra.mxu0 0.0
    %3109 = vmatpush.msra.mxu0 0.0
    %3110 = vmatpush.msra.mxu0 0.0
    %3111 = vmatpush.msra.mxu0 0.0
    %3112 = vmatpush.msra.mxu0 0.0
    %3113 = vmatpush.msra.mxu0 0.0
    %3114 = vmatpush.msra.mxu0 0.0
    %3115 = vmatpush.msra.mxu0 0.0
    %3116 = vmatpush.msra.mxu0 0.0
    %3117 = vmatpush.msra.mxu0 %v830
    %3118 = vmatpush.msra.mxu0 %v828
    %3119 = vmatpush.msra.mxu0 %v826
    %3120 = vmatpush.msra.mxu0 %v824
    %3121 = vmatmul.f32.gmra.mxu0 %v3093
    %v3122 = vpop.f32.mrf.mxu0
    %v3123 = vadd.f32 0.0, %v3122
    %3124 = vmatmul.f32.gmra.mxu0 %v3095
    %v3125 = vpop.f32.mrf.mxu0
    %v3126 = vadd.f32 0.0, %v3125
    %3127 = vmatmul.f32.gmra.mxu0 %v3097
    %v3128 = vpop.f32.mrf.mxu0
    %v3129 = vadd.f32 0.0, %v3128
    %3130 = vmatmul.f32.gmra.mxu0 %v3099
    %v3131 = vpop.f32.mrf.mxu0
    %v3132 = vadd.f32 0.0, %v3131
    %3133 = vmatmul.f32.gmra.mxu0 %v3101
    %v3134 = vpop.f32.mrf.mxu0
    %v3135 = vadd.f32 0.0, %v3134
    %3136 = vmatmul.f32.gmra.mxu0 %v3103
    %v3137 = vpop.f32.mrf.mxu0
    %v3138 = vadd.f32 0.0, %v3137
    %3139 = vdwg.mxu0
    %3140 = vmatpush.msra.mxu0 0.0
    %3141 = vmatpush.msra.mxu0 0.0
    %3142 = vmatpush.msra.mxu0 0.0
    %3143 = vmatpush.msra.mxu0 0.0
    %3144 = vmatpush.msra.mxu0 0.0
    %3145 = vmatpush.msra.mxu0 0.0
    %3146 = vmatpush.msra.mxu0 0.0
    %3147 = vmatpush.msra.mxu0 0.0
    %3148 = vmatpush.msra.mxu0 0.0
    %3149 = vmatpush.msra.mxu0 0.0
    %3150 = vmatpush.msra.mxu0 0.0
    %3151 = vmatpush.msra.mxu0 0.0
    %3152 = vmatpush.msra.mxu0 %v831
    %3153 = vmatpush.msra.mxu0 %v829
    %3154 = vmatpush.msra.mxu0 %v827
    %3155 = vmatpush.msra.mxu0 %v825
    %3156 = vmatmul.f32.gmra.mxu0 %v3093
    %v3157 = vpop.f32.mrf.mxu0
    %v3158 = vadd.f32 0.0, %v3157
    %3159 = vmatmul.f32.gmra.mxu0 %v3095
    %v3160 = vpop.f32.mrf.mxu0
    %v3161 = vadd.f32 0.0, %v3160
    %3162 = vmatmul.f32.gmra.mxu0 %v3097
    %v3163 = vpop.f32.mrf.mxu0
    %v3164 = vadd.f32 0.0, %v3163
    %3165 = vmatmul.f32.gmra.mxu0 %v3099
    %v3166 = vpop.f32.mrf.mxu0
    %v3167 = vadd.f32 0.0, %v3166
    %3168 = vmatmul.f32.gmra.mxu0 %v3101
    %v3169 = vpop.f32.mrf.mxu0
    %v3170 = vadd.f32 0.0, %v3169
    %3171 = vmatmul.f32.gmra.mxu0 %v3103
    %v3172 = vpop.f32.mrf.mxu0
    %v3173 = vadd.f32 0.0, %v3172
    %3174 = vdwg.mxu0
    %v3175 = vadd.f32 %v2956, %v3123
    %v3176 = vadd.f32 %v2957, %v3158
    %v3177 = vadd.f32 %v2958, %v3126
    %v3178 = vadd.f32 %v2959, %v3161
    %v3179 = vadd.f32 %v2960, %v3129
    %v3180 = vadd.f32 %v2961, %v3164
    %v3181 = vadd.f32 %v2962, %v3132
    %v3182 = vadd.f32 %v2963, %v3167
    %v3183 = vadd.f32 %v2964, %v3135
    %v3184 = vadd.f32 %v2965, %v3170
    %v3185 = vadd.f32 %v2966, %v3138
    %v3186 = vadd.f32 %v2967, %v3173
    %v3187 = vmax.f32 %v2456, %v3175
    %v3188 = vmax.f32 %v2457, %v3176
    %v3189 = vmax.f32 %v2458, %v3177
    %v3190 = vmax.f32 %v2459, %v3178
    %v3191 = vmax.f32 %v2460, %v3179
    %v3192 = vmax.f32 %v2461, %v3180
    %v3193 = vmax.f32 %v2462, %v3181
    %v3194 = vmax.f32 %v2463, %v3182
    %v3195 = vmax.f32 %v2464, %v3183
    %v3196 = vmax.f32 %v2465, %v3184
    %v3197 = vmax.f32 %v2466, %v3185
    %v3198 = vmax.f32 %v2467, %v3186
    %v3199 = vmax.f32 %v3187, %v3188
    %v3200 = vmax.f32 %v3189, %v3190
    %v3201 = vmax.f32 %v3191, %v3192
    %v3202 = vmax.f32 %v3193, %v3194
    %v3203 = vmax.f32 %v3195, %v3196
    %v3204 = vmax.f32 %v3197, %v3198
    %v3205 = vadd.f32 %v3199, %v1704
    %v3206 = vadd.f32 %v3200, %v1704
    %v3207 = vadd.f32 %v3201, %v1704
    %v3208 = vadd.f32 %v3202, %v1704
    %v3209 = vadd.f32 %v3203, %v1704
    %v3210 = vadd.f32 %v3204, %v1704
    %v3211 = vmax.f32 %v3205, 0.0
    %v3212 = vmax.f32 %v3206, 0.0
    %v3213 = vmax.f32 %v3207, 0.0
    %v3214 = vmax.f32 %v3208, 0.0
    %v3215 = vmax.f32 %v3209, 0.0
    %v3216 = vmax.f32 %v3210, 0.0
    %v3217 = vsel %vm1718, %v3211, 0.0
    %v3218 = vsel %vm1718, %v3212, 0.0
    %v3219 = vsel %vm1718, %v3213, 0.0
    %v3220 = vsel %vm1718, %v3214, 0.0
    %v3221 = vsel %vm1718, %v3215, 0.0
    %v3222 = vsel %vm1718, %v3216, 0.0
    %v3229 = vrot.slane %v3217, 2
    %v3230 = vrot.slane %v3217, 4
    %v3231 = vrot.slane %v3217, 6
    %v3232 = vrot.slane %v3218, 2
    %v3233 = vrot.slane %v3218, 4
    %v3234 = vrot.slane %v3218, 6
    %v3235 = vrot.slane %v3219, 2
    %v3236 = vrot.slane %v3219, 4
    %v3237 = vrot.slane %v3219, 6
    %v3238 = vrot.slane %v3220, 2
    %v3239 = vrot.slane %v3220, 4
    %v3240 = vrot.slane %v3220, 6
    %v3241 = vrot.slane %v3221, 2
    %v3242 = vrot.slane %v3221, 4
    %v3243 = vrot.slane %v3221, 6
    %v3244 = vrot.slane %v3222, 2
    %v3245 = vrot.slane %v3222, 4
    %v3246 = vrot.slane %v3222, 6
    %v3247 = vld [vmem:[#allocation2] sm:$0xff]
    %v3248 = vld [vmem:[#allocation2 + $0x8] sm:$0xff]
    %v3249 = vld [vmem:[#allocation2 + $0x10] sm:$0xff]
    %v3250 = vld [vmem:[#allocation2 + $0x18] sm:$0xff]
    %v3251 = vld [vmem:[#allocation2 + $0x20] sm:$0xff]
    %v3252 = vld [vmem:[#allocation2 + $0x28] sm:$0xff]
    %v3253 = vld [vmem:[#allocation2 + $0x30] sm:$0xff]
    %v3254 = vld [vmem:[#allocation2 + $0x38] sm:$0xff]
    %v3255 = vld [vmem:[#allocation2 + $0x40] sm:$0xff]
    %v3256 = vld [vmem:[#allocation2 + $0x48] sm:$0xff]
    %v3257 = vld [vmem:[#allocation2 + $0x50] sm:$0xff]
    %v3258 = vld [vmem:[#allocation2 + $0x58] sm:$0xff]
    %v3259 = vld [vmem:[#allocation2 + $0x60] sm:$0xff]
    %v3260 = vld [vmem:[#allocation2 + $0x68] sm:$0xff]
    %v3261 = vld [vmem:[#allocation2 + $0x70] sm:$0xff]
    %v3262 = vld [vmem:[#allocation2 + $0x78] sm:$0xff]
    %v3263 = vld [vmem:[#allocation2 + $0x80] sm:$0xff]
    %v3264 = vld [vmem:[#allocation2 + $0x88] sm:$0xff]
    %v3265 = vld [vmem:[#allocation2 + $0x90] sm:$0xff]
    %v3266 = vld [vmem:[#allocation2 + $0x98] sm:$0xff]
    %v3267 = vld [vmem:[#allocation2 + $0xa0] sm:$0xff]
    %v3268 = vld [vmem:[#allocation2 + $0xa8] sm:$0xff]
    %v3269 = vld [vmem:[#allocation2 + $0xb0] sm:$0xff]
    %v3270 = vld [vmem:[#allocation2 + $0xb8] sm:$0xff]
    %v3271 = vld [vmem:[#allocation2 + $0xc0] sm:$0xff]
    %v3272 = vld [vmem:[#allocation2 + $0xc8] sm:$0xff]
    %v3273 = vld [vmem:[#allocation2 + $0xd0] sm:$0xff]
    %v3274 = vld [vmem:[#allocation2 + $0xd8] sm:$0xff]
    %v3275 = vld [vmem:[#allocation2 + $0xe0] sm:$0xff]
    %v3276 = vld [vmem:[#allocation2 + $0xe8] sm:$0xff]
    %v3277 = vld [vmem:[#allocation2 + $0xf0] sm:$0xff]
    %v3278 = vld [vmem:[#allocation2 + $0xf8] sm:$0xff]
    %s3279 = scalar_lea.vmem [#allocation2], 256
    %v3280 = vld [vmem:[%s3279] sm:$0xff]
    %v3281 = vld [vmem:[%s3279 + $0x8] sm:$0xff]
    %v3282 = vld [vmem:[%s3279 + $0x10] sm:$0xff]
    %v3283 = vld [vmem:[%s3279 + $0x18] sm:$0xff]
    %v3284 = vld [vmem:[%s3279 + $0x20] sm:$0xff]
    %v3285 = vld [vmem:[%s3279 + $0x28] sm:$0xff]
    %v3286 = vld [vmem:[%s3279 + $0x30] sm:$0xff]
    %v3287 = vld [vmem:[%s3279 + $0x38] sm:$0xff]
    %v3288 = vld [vmem:[%s3279 + $0x40] sm:$0xff]
    %v3289 = vld [vmem:[%s3279 + $0x48] sm:$0xff]
    %v3290 = vld [vmem:[%s3279 + $0x50] sm:$0xff]
    %v3291 = vld [vmem:[%s3279 + $0x58] sm:$0xff]
    %v3292 = vld [vmem:[%s3279 + $0x60] sm:$0xff]
    %v3293 = vld [vmem:[%s3279 + $0x68] sm:$0xff]
    %v3294 = vld [vmem:[%s3279 + $0x70] sm:$0xff]
    %v3295 = vld [vmem:[%s3279 + $0x78] sm:$0xff]
    %v3296 = vld [vmem:[%s3279 + $0x80] sm:$0xff]
    %v3297 = vld [vmem:[%s3279 + $0x88] sm:$0xff]
    %v3298 = vld [vmem:[%s3279 + $0x90] sm:$0xff]
    %v3299 = vld [vmem:[%s3279 + $0x98] sm:$0xff]
    %v3300 = vld [vmem:[%s3279 + $0xa0] sm:$0xff]
    %v3301 = vld [vmem:[%s3279 + $0xa8] sm:$0xff]
    %v3302 = vld [vmem:[%s3279 + $0xb0] sm:$0xff]
    %v3303 = vld [vmem:[%s3279 + $0xb8] sm:$0xff]
    %v3304 = vld [vmem:[%s3279 + $0xc0] sm:$0xff]
    %v3305 = vld [vmem:[%s3279 + $0xc8] sm:$0xff]
    %v3306 = vld [vmem:[%s3279 + $0xd0] sm:$0xff]
    %v3307 = vld [vmem:[%s3279 + $0xd8] sm:$0xff]
    %v3308 = vld [vmem:[%s3279 + $0xe0] sm:$0xff]
    %v3309 = vld [vmem:[%s3279 + $0xe8] sm:$0xff]
    %v3310 = vld [vmem:[%s3279 + $0xf0] sm:$0xff]
    %v3311 = vld [vmem:[%s3279 + $0xf8] sm:$0xff]
    %3312 = vst [vmem:[#allocation1] ss:$4 sm:$0xff] %v3217
    %s3313 = scalar_lea.vmem [#allocation1], 1
    %3314 = vst [vmem:[%s3313] ss:$4 sm:$0xff] %v3229
    %s3315 = scalar_lea.vmem [#allocation1], 2
    %3316 = vst [vmem:[%s3315] ss:$4 sm:$0xff] %v3231
    %s3317 = scalar_lea.vmem [#allocation1], 3
    %3318 = vst [vmem:[%s3317] ss:$4 sm:$0xff] %v3218
    %s3319 = scalar_lea.vmem [#allocation1], 32
    %3320 = vst [vmem:[%s3319] ss:$4 sm:$0xff] %v3233
    %s3321 = scalar_lea.vmem [#allocation1], 33
    %3322 = vst [vmem:[%s3321] ss:$4 sm:$0xff] %v3234
    %s3323 = scalar_lea.vmem [#allocation1], 34
    %3324 = vst [vmem:[%s3323] ss:$4 sm:$0xff] %v3235
    %s3325 = scalar_lea.vmem [#allocation1], 35
    %3326 = vst [vmem:[%s3325] ss:$4 sm:$0xff] %v3236
    %v3327 = vld.sshfl [vmem:[#allocation1] sm:$0xff pattern:$0x73625140]
    %v3328 = vld.sshfl [vmem:[#allocation1 + $0x20] sm:$0xff pattern:$0x73625140]
    %3329 = vst [vmem:[#allocation1] ss:$4 sm:$0xff] %v3220
    %3330 = vst [vmem:[%s3313] ss:$4 sm:$0xff] %v3238
    %3331 = vst [vmem:[%s3315] ss:$4 sm:$0xff] %v3240
    %3332 = vst [vmem:[%s3317] ss:$4 sm:$0xff] %v3221
    %3333 = vst [vmem:[%s3319] ss:$4 sm:$0xff] %v3242
    %3334 = vst [vmem:[%s3321] ss:$4 sm:$0xff] %v3243
    %3335 = vst [vmem:[%s3323] ss:$4 sm:$0xff] %v3244
    %3336 = vst [vmem:[%s3325] ss:$4 sm:$0xff] %v3245
    %v3337 = vld.sshfl [vmem:[#allocation1] sm:$0xff pattern:$0x73625140]
    %v3338 = vld.sshfl [vmem:[#allocation1 + $0x20] sm:$0xff pattern:$0x73625140]
    %3343 = vmatpush.msra.mxu0 %v3310
    %3344 = vmatpush.msra.mxu0 %v3308
    %3345 = vmatpush.msra.mxu0 %v3306
    %3346 = vmatpush.msra.mxu0 %v3304
    %3347 = vmatpush.msra.mxu0 %v3302
    %3348 = vmatpush.msra.mxu0 %v3300
    %3349 = vmatpush.msra.mxu0 %v3298
    %3350 = vmatpush.msra.mxu0 %v3296
    %3351 = vmatpush.msra.mxu0 %v3294
    %3352 = vmatpush.msra.mxu0 %v3292
    %3353 = vmatpush.msra.mxu0 %v3290
    %3354 = vmatpush.msra.mxu0 %v3288
    %3355 = vmatpush.msra.mxu0 %v3286
    %3356 = vmatpush.msra.mxu0 %v3284
    %3357 = vmatpush.msra.mxu0 %v3282
    %3358 = vmatpush.msra.mxu0 %v3280
    %3359 = vmatmul.f32.gmra.mxu0 %v3327
    %v3360 = vpop.f32.mrf.mxu0
    %v3361 = vadd.f32 0.0, %v3360
    %3362 = vmatmul.f32.gmra.mxu0 %v3328
    %v3363 = vpop.f32.mrf.mxu0
    %v3364 = vadd.f32 0.0, %v3363
    %3365 = vmatmul.f32.gmra.mxu0 %v3337
    %v3366 = vpop.f32.mrf.mxu0
    %v3367 = vadd.f32 0.0, %v3366
    %3368 = vmatmul.f32.gmra.mxu0 %v3338
    %v3369 = vpop.f32.mrf.mxu0
    %v3370 = vadd.f32 0.0, %v3369
    %3371 = vdwg.mxu0
    %3372 = vmatpush.msra.mxu0 %v3311
    %3373 = vmatpush.msra.mxu0 %v3309
    %3374 = vmatpush.msra.mxu0 %v3307
    %3375 = vmatpush.msra.mxu0 %v3305
    %3376 = vmatpush.msra.mxu0 %v3303
    %3377 = vmatpush.msra.mxu0 %v3301
    %3378 = vmatpush.msra.mxu0 %v3299
    %3379 = vmatpush.msra.mxu0 %v3297
    %3380 = vmatpush.msra.mxu0 %v3295
    %3381 = vmatpush.msra.mxu0 %v3293
    %3382 = vmatpush.msra.mxu0 %v3291
    %3383 = vmatpush.msra.mxu0 %v3289
    %3384 = vmatpush.msra.mxu0 %v3287
    %3385 = vmatpush.msra.mxu0 %v3285
    %3386 = vmatpush.msra.mxu0 %v3283
    %3387 = vmatpush.msra.mxu0 %v3281
    %3388 = vmatmul.f32.gmra.mxu0 %v3327
    %v3389 = vpop.f32.mrf.mxu0
    %v3390 = vadd.f32 0.0, %v3389
    %3391 = vmatmul.f32.gmra.mxu0 %v3328
    %v3392 = vpop.f32.mrf.mxu0
    %v3393 = vadd.f32 0.0, %v3392
    %3394 = vmatmul.f32.gmra.mxu0 %v3337
    %v3395 = vpop.f32.mrf.mxu0
    %v3396 = vadd.f32 0.0, %v3395
    %3397 = vmatmul.f32.gmra.mxu0 %v3338
    %v3398 = vpop.f32.mrf.mxu0
    %v3399 = vadd.f32 0.0, %v3398
    %3400 = vdwg.mxu0
    %3401 = vst [vmem:[#allocation1] ss:$4 sm:$0xff] %v1719
    %s3402 = scalar_lea.vmem [#allocation1], 1
    %3403 = vst [vmem:[%s3402] ss:$4 sm:$0xff] %v1731
    %s3404 = scalar_lea.vmem [#allocation1], 2
    %3405 = vst [vmem:[%s3404] ss:$4 sm:$0xff] %v1733
    %s3406 = scalar_lea.vmem [#allocation1], 3
    %3407 = vst [vmem:[%s3406] ss:$4 sm:$0xff] %v1720
    %s3408 = scalar_lea.vmem [#allocation1], 32
    %3409 = vst [vmem:[%s3408] ss:$4 sm:$0xff] %v1735
    %s3410 = scalar_lea.vmem [#allocation1], 33
    %3411 = vst [vmem:[%s3410] ss:$4 sm:$0xff] %v1736
    %s3412 = scalar_lea.vmem [#allocation1], 34
    %3413 = vst [vmem:[%s3412] ss:$4 sm:$0xff] %v1737
    %s3414 = scalar_lea.vmem [#allocation1], 35
    %3415 = vst [vmem:[%s3414] ss:$4 sm:$0xff] %v1738
    %v3416 = vld.sshfl [vmem:[#allocation1] sm:$0xff pattern:$0x73625140]
    %v3417 = vld.sshfl [vmem:[#allocation1 + $0x20] sm:$0xff pattern:$0x73625140]
    %3418 = vst [vmem:[#allocation1] ss:$4 sm:$0xff] %v1722
    %3419 = vst [vmem:[%s3402] ss:$4 sm:$0xff] %v1740
    %3420 = vst [vmem:[%s3404] ss:$4 sm:$0xff] %v1742
    %3421 = vst [vmem:[%s3406] ss:$4 sm:$0xff] %v1723
    %3422 = vst [vmem:[%s3408] ss:$4 sm:$0xff] %v1744
    %3423 = vst [vmem:[%s3410] ss:$4 sm:$0xff] %v1745
    %3424 = vst [vmem:[%s3412] ss:$4 sm:$0xff] %v1746
    %3425 = vst [vmem:[%s3414] ss:$4 sm:$0xff] %v1747
    %v3426 = vld.sshfl [vmem:[#allocation1] sm:$0xff pattern:$0x73625140]
    %v3427 = vld.sshfl [vmem:[#allocation1 + $0x20] sm:$0xff pattern:$0x73625140]
    %3432 = vmatpush.msra.mxu0 %v3277
    %3433 = vmatpush.msra.mxu0 %v3275
    %3434 = vmatpush.msra.mxu0 %v3273
    %3435 = vmatpush.msra.mxu0 %v3271
    %3436 = vmatpush.msra.mxu0 %v3269
    %3437 = vmatpush.msra.mxu0 %v3267
    %3438 = vmatpush.msra.mxu0 %v3265
    %3439 = vmatpush.msra.mxu0 %v3263
    %3440 = vmatpush.msra.mxu0 %v3261
    %3441 = vmatpush.msra.mxu0 %v3259
    %3442 = vmatpush.msra.mxu0 %v3257
    %3443 = vmatpush.msra.mxu0 %v3255
    %3444 = vmatpush.msra.mxu0 %v3253
    %3445 = vmatpush.msra.mxu0 %v3251
    %3446 = vmatpush.msra.mxu0 %v3249
    %3447 = vmatpush.msra.mxu0 %v3247
    %3448 = vmatmul.f32.gmra.mxu0 %v3416
    %v3449 = vpop.f32.mrf.mxu0
    %v3450 = vadd.f32 %v3361, %v3449
    %3451 = vmatmul.f32.gmra.mxu0 %v3417
    %v3452 = vpop.f32.mrf.mxu0
    %v3453 = vadd.f32 %v3364, %v3452
    %3454 = vmatmul.f32.gmra.mxu0 %v3426
    %v3455 = vpop.f32.mrf.mxu0
    %v3456 = vadd.f32 %v3367, %v3455
    %3457 = vmatmul.f32.gmra.mxu0 %v3427
    %v3458 = vpop.f32.mrf.mxu0
    %v3459 = vadd.f32 %v3370, %v3458
    %3460 = vdwg.mxu0
    %3461 = vmatpush.msra.mxu0 %v3278
    %3462 = vmatpush.msra.mxu0 %v3276
    %3463 = vmatpush.msra.mxu0 %v3274
    %3464 = vmatpush.msra.mxu0 %v3272
    %3465 = vmatpush.msra.mxu0 %v3270
    %3466 = vmatpush.msra.mxu0 %v3268
    %3467 = vmatpush.msra.mxu0 %v3266
    %3468 = vmatpush.msra.mxu0 %v3264
    %3469 = vmatpush.msra.mxu0 %v3262
    %3470 = vmatpush.msra.mxu0 %v3260
    %3471 = vmatpush.msra.mxu0 %v3258
    %3472 = vmatpush.msra.mxu0 %v3256
    %3473 = vmatpush.msra.mxu0 %v3254
    %3474 = vmatpush.msra.mxu0 %v3252
    %3475 = vmatpush.msra.mxu0 %v3250
    %3476 = vmatpush.msra.mxu0 %v3248
    %3477 = vmatmul.f32.gmra.mxu0 %v3416
    %v3478 = vpop.f32.mrf.mxu0
    %v3479 = vadd.f32 %v3390, %v3478
    %3480 = vmatmul.f32.gmra.mxu0 %v3417
    %v3481 = vpop.f32.mrf.mxu0
    %v3482 = vadd.f32 %v3393, %v3481
    %3483 = vmatmul.f32.gmra.mxu0 %v3426
    %v3484 = vpop.f32.mrf.mxu0
    %v3485 = vadd.f32 %v3396, %v3484
    %3486 = vmatmul.f32.gmra.mxu0 %v3427
    %v3487 = vpop.f32.mrf.mxu0
    %v3488 = vadd.f32 %v3399, %v3487
    %3489 = vdwg.mxu0
    %v3490 = vrot.slane %v1719, 7
    %v3491 = vrot.slane %v3490, 2
    %v3492 = vrot.slane %v1731, 7
    %v3493 = vsel %vm742, %v3491, %v3492
    %v3494 = vrot.slane %v3492, 2
    %v3495 = vrot.slane %v1732, 7
    %v3496 = vsel %vm742, %v3494, %v3495
    %v3497 = vrot.slane %v1733, 7
    %v3498 = vrot.slane %v3497, 2
    %v3499 = vrot.slane %v1720, 7
    %v3500 = vsel %vm742, %v3498, %v3499
    %v3501 = vrot.slane %v3499, 2
    %v3502 = vrot.slane %v1734, 7
    %v3503 = vsel %vm742, %v3501, %v3502
    %v3504 = vrot.slane %v1735, 7
    %v3505 = vrot.slane %v3504, 2
    %v3506 = vrot.slane %v1736, 7
    %v3507 = vsel %vm742, %v3505, %v3506
    %v3508 = vrot.slane %v3506, 2
    %v3509 = vrot.slane %v1721, 7
    %v3510 = vsel %vm742, %v3508, %v3509
    %v3511 = vrot.slane %v1737, 7
    %v3512 = vrot.slane %v3511, 2
    %v3513 = vrot.slane %v1738, 7
    %v3514 = vsel %vm742, %v3512, %v3513
    %v3515 = vrot.slane %v3513, 2
    %v3516 = vrot.slane %v1739, 7
    %v3517 = vsel %vm742, %v3515, %v3516
    %v3518 = vrot.slane %v1722, 7
    %v3519 = vrot.slane %v3518, 2
    %v3520 = vrot.slane %v1740, 7
    %v3521 = vsel %vm742, %v3519, %v3520
    %v3522 = vrot.slane %v3520, 2
    %v3523 = vrot.slane %v1741, 7
    %v3524 = vsel %vm742, %v3522, %v3523
    %v3525 = vrot.slane %v1742, 7
    %v3526 = vrot.slane %v3525, 2
    %v3527 = vrot.slane %v1723, 7
    %v3528 = vsel %vm742, %v3526, %v3527
    %v3529 = vrot.slane %v3527, 2
    %v3530 = vrot.slane %v1743, 7
    %v3531 = vsel %vm742, %v3529, %v3530
    %v3532 = vrot.slane %v1744, 7
    %v3533 = vrot.slane %v3532, 2
    %v3534 = vrot.slane %v1745, 7
    %v3535 = vsel %vm742, %v3533, %v3534
    %v3536 = vrot.slane %v3534, 2
    %v3537 = vrot.slane %v1724, 7
    %v3538 = vsel %vm742, %v3536, %v3537
    %v3539 = vrot.slane %v1746, 7
    %v3540 = vrot.slane %v3539, 2
    %v3541 = vrot.slane %v1747, 7
    %v3542 = vsel %vm742, %v3540, %v3541
    %v3543 = vrot.slane %v3541, 2
    %v3544 = vrot.slane %v1748, 7
    %v3545 = vsel %vm742, %v3543, %v3544
    %s3546 = scalar_lea.vmem [#allocation2], 512
    %v3547 = vld [vmem:[%s3546] sm:$0xff]
    %v3548 = vld [vmem:[%s3546 + $0x8] sm:$0xff]
    %v3549 = vld [vmem:[%s3546 + $0x10] sm:$0xff]
    %v3550 = vld [vmem:[%s3546 + $0x18] sm:$0xff]
    %v3551 = vld [vmem:[%s3546 + $0x20] sm:$0xff]
    %v3552 = vld [vmem:[%s3546 + $0x28] sm:$0xff]
    %v3553 = vld [vmem:[%s3546 + $0x30] sm:$0xff]
    %v3554 = vld [vmem:[%s3546 + $0x38] sm:$0xff]
    %v3555 = vld [vmem:[%s3546 + $0x40] sm:$0xff]
    %v3556 = vld [vmem:[%s3546 + $0x48] sm:$0xff]
    %v3557 = vld [vmem:[%s3546 + $0x50] sm:$0xff]
    %v3558 = vld [vmem:[%s3546 + $0x58] sm:$0xff]
    %v3559 = vld [vmem:[%s3546 + $0x60] sm:$0xff]
    %v3560 = vld [vmem:[%s3546 + $0x68] sm:$0xff]
    %v3561 = vld [vmem:[%s3546 + $0x70] sm:$0xff]
    %v3562 = vld [vmem:[%s3546 + $0x78] sm:$0xff]
    %v3563 = vld [vmem:[%s3546 + $0x80] sm:$0xff]
    %v3564 = vld [vmem:[%s3546 + $0x88] sm:$0xff]
    %v3565 = vld [vmem:[%s3546 + $0x90] sm:$0xff]
    %v3566 = vld [vmem:[%s3546 + $0x98] sm:$0xff]
    %v3567 = vld [vmem:[%s3546 + $0xa0] sm:$0xff]
    %v3568 = vld [vmem:[%s3546 + $0xa8] sm:$0xff]
    %v3569 = vld [vmem:[%s3546 + $0xb0] sm:$0xff]
    %v3570 = vld [vmem:[%s3546 + $0xb8] sm:$0xff]
    %v3571 = vld [vmem:[%s3546 + $0xc0] sm:$0xff]
    %v3572 = vld [vmem:[%s3546 + $0xc8] sm:$0xff]
    %v3573 = vld [vmem:[%s3546 + $0xd0] sm:$0xff]
    %v3574 = vld [vmem:[%s3546 + $0xd8] sm:$0xff]
    %v3575 = vld [vmem:[%s3546 + $0xe0] sm:$0xff]
    %v3576 = vld [vmem:[%s3546 + $0xe8] sm:$0xff]
    %v3577 = vld [vmem:[%s3546 + $0xf0] sm:$0xff]
    %v3578 = vld [vmem:[%s3546 + $0xf8] sm:$0xff]
    %3579 = vst [vmem:[#allocation1] ss:$4 sm:$0xff] %v3493
    %s3580 = scalar_lea.vmem [#allocation1], 1
    %3581 = vst [vmem:[%s3580] ss:$4 sm:$0xff] %v3496
    %s3582 = scalar_lea.vmem [#allocation1], 2
    %3583 = vst [vmem:[%s3582] ss:$4 sm:$0xff] %v3500
    %s3584 = scalar_lea.vmem [#allocation1], 3
    %3585 = vst [vmem:[%s3584] ss:$4 sm:$0xff] %v3503
    %s3586 = scalar_lea.vmem [#allocation1], 32
    %3587 = vst [vmem:[%s3586] ss:$4 sm:$0xff] %v3507
    %s3588 = scalar_lea.vmem [#allocation1], 33
    %3589 = vst [vmem:[%s3588] ss:$4 sm:$0xff] %v3510
    %s3590 = scalar_lea.vmem [#allocation1], 34
    %3591 = vst [vmem:[%s3590] ss:$4 sm:$0xff] %v3514
    %s3592 = scalar_lea.vmem [#allocation1], 35
    %3593 = vst [vmem:[%s3592] ss:$4 sm:$0xff] %v3517
    %v3594 = vld.sshfl [vmem:[#allocation1] sm:$0xff pattern:$0x73625140]
    %v3595 = vld.sshfl [vmem:[#allocation1 + $0x20] sm:$0xff pattern:$0x73625140]
    %3596 = vst [vmem:[#allocation1] ss:$4 sm:$0xff] %v3521
    %3597 = vst [vmem:[%s3580] ss:$4 sm:$0xff] %v3524
    %3598 = vst [vmem:[%s3582] ss:$4 sm:$0xff] %v3528
    %3599 = vst [vmem:[%s3584] ss:$4 sm:$0xff] %v3531
    %3600 = vst [vmem:[%s3586] ss:$4 sm:$0xff] %v3535
    %3601 = vst [vmem:[%s3588] ss:$4 sm:$0xff] %v3538
    %3602 = vst [vmem:[%s3590] ss:$4 sm:$0xff] %v3542
    %3603 = vst [vmem:[%s3592] ss:$4 sm:$0xff] %v3545
    %v3604 = vld.sshfl [vmem:[#allocation1] sm:$0xff pattern:$0x73625140]
    %v3605 = vld.sshfl [vmem:[#allocation1 + $0x20] sm:$0xff pattern:$0x73625140]
    %3610 = vmatpush.msra.mxu0 %v3577
    %3611 = vmatpush.msra.mxu0 %v3575
    %3612 = vmatpush.msra.mxu0 %v3573
    %3613 = vmatpush.msra.mxu0 %v3571
    %3614 = vmatpush.msra.mxu0 %v3569
    %3615 = vmatpush.msra.mxu0 %v3567
    %3616 = vmatpush.msra.mxu0 %v3565
    %3617 = vmatpush.msra.mxu0 %v3563
    %3618 = vmatpush.msra.mxu0 %v3561
    %3619 = vmatpush.msra.mxu0 %v3559
    %3620 = vmatpush.msra.mxu0 %v3557
    %3621 = vmatpush.msra.mxu0 %v3555
    %3622 = vmatpush.msra.mxu0 %v3553
    %3623 = vmatpush.msra.mxu0 %v3551
    %3624 = vmatpush.msra.mxu0 %v3549
    %3625 = vmatpush.msra.mxu0 %v3547
    %3626 = vmatmul.f32.gmra.mxu0 %v3594
    %v3627 = vpop.f32.mrf.mxu0
    %v3628 = vadd.f32 0.0, %v3627
    %3629 = vmatmul.f32.gmra.mxu0 %v3595
    %v3630 = vpop.f32.mrf.mxu0
    %v3631 = vadd.f32 0.0, %v3630
    %3632 = vmatmul.f32.gmra.mxu0 %v3604
    %v3633 = vpop.f32.mrf.mxu0
    %v3634 = vadd.f32 0.0, %v3633
    %3635 = vmatmul.f32.gmra.mxu0 %v3605
    %v3636 = vpop.f32.mrf.mxu0
    %v3637 = vadd.f32 0.0, %v3636
    %3638 = vdwg.mxu0
    %3639 = vmatpush.msra.mxu0 %v3578
    %3640 = vmatpush.msra.mxu0 %v3576
    %3641 = vmatpush.msra.mxu0 %v3574
    %3642 = vmatpush.msra.mxu0 %v3572
    %3643 = vmatpush.msra.mxu0 %v3570
    %3644 = vmatpush.msra.mxu0 %v3568
    %3645 = vmatpush.msra.mxu0 %v3566
    %3646 = vmatpush.msra.mxu0 %v3564
    %3647 = vmatpush.msra.mxu0 %v3562
    %3648 = vmatpush.msra.mxu0 %v3560
    %3649 = vmatpush.msra.mxu0 %v3558
    %3650 = vmatpush.msra.mxu0 %v3556
    %3651 = vmatpush.msra.mxu0 %v3554
    %3652 = vmatpush.msra.mxu0 %v3552
    %3653 = vmatpush.msra.mxu0 %v3550
    %3654 = vmatpush.msra.mxu0 %v3548
    %3655 = vmatmul.f32.gmra.mxu0 %v3594
    %v3656 = vpop.f32.mrf.mxu0
    %v3657 = vadd.f32 0.0, %v3656
    %3658 = vmatmul.f32.gmra.mxu0 %v3595
    %v3659 = vpop.f32.mrf.mxu0
    %v3660 = vadd.f32 0.0, %v3659
    %3661 = vmatmul.f32.gmra.mxu0 %v3604
    %v3662 = vpop.f32.mrf.mxu0
    %v3663 = vadd.f32 0.0, %v3662
    %3664 = vmatmul.f32.gmra.mxu0 %v3605
    %v3665 = vpop.f32.mrf.mxu0
    %v3666 = vadd.f32 0.0, %v3665
    %3667 = vdwg.mxu0
    %v3668 = vadd.f32 %v3450, %v3628
    %v3669 = vadd.f32 %v3479, %v3657
    %v3670 = vadd.f32 %v3453, %v3631
    %v3671 = vadd.f32 %v3482, %v3660
    %v3672 = vadd.f32 %v3456, %v3634
    %v3673 = vadd.f32 %v3485, %v3663
    %v3674 = vadd.f32 %v3459, %v3637
    %v3675 = vadd.f32 %v3488, %v3666
    %v3676 = vrot.slane %v3217, 7
    %v3677 = vrot.slane %v3676, 2
    %v3678 = vrot.slane %v3229, 7
    %v3679 = vsel %vm742, %v3677, %v3678
    %v3680 = vrot.slane %v3678, 2
    %v3681 = vrot.slane %v3230, 7
    %v3682 = vsel %vm742, %v3680, %v3681
    %v3683 = vrot.slane %v3231, 7
    %v3684 = vrot.slane %v3683, 2
    %v3685 = vrot.slane %v3218, 7
    %v3686 = vsel %vm742, %v3684, %v3685
    %v3687 = vrot.slane %v3685, 2
    %v3688 = vrot.slane %v3232, 7
    %v3689 = vsel %vm742, %v3687, %v3688
    %v3690 = vrot.slane %v3233, 7
    %v3691 = vrot.slane %v3690, 2
    %v3692 = vrot.slane %v3234, 7
    %v3693 = vsel %vm742, %v3691, %v3692
    %v3694 = vrot.slane %v3692, 2
    %v3695 = vrot.slane %v3219, 7
    %v3696 = vsel %vm742, %v3694, %v3695
    %v3697 = vrot.slane %v3235, 7
    %v3698 = vrot.slane %v3697, 2
    %v3699 = vrot.slane %v3236, 7
    %v3700 = vsel %vm742, %v3698, %v3699
    %v3701 = vrot.slane %v3699, 2
    %v3702 = vrot.slane %v3237, 7
    %v3703 = vsel %vm742, %v3701, %v3702
    %v3704 = vrot.slane %v3220, 7
    %v3705 = vrot.slane %v3704, 2
    %v3706 = vrot.slane %v3238, 7
    %v3707 = vsel %vm742, %v3705, %v3706
    %v3708 = vrot.slane %v3706, 2
    %v3709 = vrot.slane %v3239, 7
    %v3710 = vsel %vm742, %v3708, %v3709
    %v3711 = vrot.slane %v3240, 7
    %v3712 = vrot.slane %v3711, 2
    %v3713 = vrot.slane %v3221, 7
    %v3714 = vsel %vm742, %v3712, %v3713
    %v3715 = vrot.slane %v3713, 2
    %v3716 = vrot.slane %v3241, 7
    %v3717 = vsel %vm742, %v3715, %v3716
    %v3718 = vrot.slane %v3242, 7
    %v3719 = vrot.slane %v3718, 2
    %v3720 = vrot.slane %v3243, 7
    %v3721 = vsel %vm742, %v3719, %v3720
    %v3722 = vrot.slane %v3720, 2
    %v3723 = vrot.slane %v3222, 7
    %v3724 = vsel %vm742, %v3722, %v3723
    %v3725 = vrot.slane %v3244, 7
    %v3726 = vrot.slane %v3725, 2
    %v3727 = vrot.slane %v3245, 7
    %v3728 = vsel %vm742, %v3726, %v3727
    %v3729 = vrot.slane %v3727, 2
    %v3730 = vrot.slane %v3246, 7
    %v3731 = vsel %vm742, %v3729, %v3730
    %s3732 = scalar_lea.vmem [#allocation2], 768
    %v3733 = vld [vmem:[%s3732] sm:$0xff]
    %v3734 = vld [vmem:[%s3732 + $0x8] sm:$0xff]
    %v3735 = vld [vmem:[%s3732 + $0x10] sm:$0xff]
    %v3736 = vld [vmem:[%s3732 + $0x18] sm:$0xff]
    %v3737 = vld [vmem:[%s3732 + $0x20] sm:$0xff]
    %v3738 = vld [vmem:[%s3732 + $0x28] sm:$0xff]
    %v3739 = vld [vmem:[%s3732 + $0x30] sm:$0xff]
    %v3740 = vld [vmem:[%s3732 + $0x38] sm:$0xff]
    %v3741 = vld [vmem:[%s3732 + $0x40] sm:$0xff]
    %v3742 = vld [vmem:[%s3732 + $0x48] sm:$0xff]
    %v3743 = vld [vmem:[%s3732 + $0x50] sm:$0xff]
    %v3744 = vld [vmem:[%s3732 + $0x58] sm:$0xff]
    %v3745 = vld [vmem:[%s3732 + $0x60] sm:$0xff]
    %v3746 = vld [vmem:[%s3732 + $0x68] sm:$0xff]
    %v3747 = vld [vmem:[%s3732 + $0x70] sm:$0xff]
    %v3748 = vld [vmem:[%s3732 + $0x78] sm:$0xff]
    %v3749 = vld [vmem:[%s3732 + $0x80] sm:$0xff]
    %v3750 = vld [vmem:[%s3732 + $0x88] sm:$0xff]
    %v3751 = vld [vmem:[%s3732 + $0x90] sm:$0xff]
    %v3752 = vld [vmem:[%s3732 + $0x98] sm:$0xff]
    %v3753 = vld [vmem:[%s3732 + $0xa0] sm:$0xff]
    %v3754 = vld [vmem:[%s3732 + $0xa8] sm:$0xff]
    %v3755 = vld [vmem:[%s3732 + $0xb0] sm:$0xff]
    %v3756 = vld [vmem:[%s3732 + $0xb8] sm:$0xff]
    %v3757 = vld [vmem:[%s3732 + $0xc0] sm:$0xff]
    %v3758 = vld [vmem:[%s3732 + $0xc8] sm:$0xff]
    %v3759 = vld [vmem:[%s3732 + $0xd0] sm:$0xff]
    %v3760 = vld [vmem:[%s3732 + $0xd8] sm:$0xff]
    %v3761 = vld [vmem:[%s3732 + $0xe0] sm:$0xff]
    %v3762 = vld [vmem:[%s3732 + $0xe8] sm:$0xff]
    %v3763 = vld [vmem:[%s3732 + $0xf0] sm:$0xff]
    %v3764 = vld [vmem:[%s3732 + $0xf8] sm:$0xff]
    %3765 = vst [vmem:[#allocation1] ss:$4 sm:$0xff] %v3679
    %s3766 = scalar_lea.vmem [#allocation1], 1
    %3767 = vst [vmem:[%s3766] ss:$4 sm:$0xff] %v3682
    %s3768 = scalar_lea.vmem [#allocation1], 2
    %3769 = vst [vmem:[%s3768] ss:$4 sm:$0xff] %v3686
    %s3770 = scalar_lea.vmem [#allocation1], 3
    %3771 = vst [vmem:[%s3770] ss:$4 sm:$0xff] %v3689
    %s3772 = scalar_lea.vmem [#allocation1], 32
    %3773 = vst [vmem:[%s3772] ss:$4 sm:$0xff] %v3693
    %s3774 = scalar_lea.vmem [#allocation1], 33
    %3775 = vst [vmem:[%s3774] ss:$4 sm:$0xff] %v3696
    %s3776 = scalar_lea.vmem [#allocation1], 34
    %3777 = vst [vmem:[%s3776] ss:$4 sm:$0xff] %v3700
    %s3778 = scalar_lea.vmem [#allocation1], 35
    %3779 = vst [vmem:[%s3778] ss:$4 sm:$0xff] %v3703
    %v3780 = vld.sshfl [vmem:[#allocation1] sm:$0xff pattern:$0x73625140]
    %v3781 = vld.sshfl [vmem:[#allocation1 + $0x20] sm:$0xff pattern:$0x73625140]
    %3782 = vst [vmem:[#allocation1] ss:$4 sm:$0xff] %v3707
    %3783 = vst [vmem:[%s3766] ss:$4 sm:$0xff] %v3710
    %3784 = vst [vmem:[%s3768] ss:$4 sm:$0xff] %v3714
    %3785 = vst [vmem:[%s3770] ss:$4 sm:$0xff] %v3717
    %3786 = vst [vmem:[%s3772] ss:$4 sm:$0xff] %v3721
    %3787 = vst [vmem:[%s3774] ss:$4 sm:$0xff] %v3724
    %3788 = vst [vmem:[%s3776] ss:$4 sm:$0xff] %v3728
    %3789 = vst [vmem:[%s3778] ss:$4 sm:$0xff] %v3731
    %v3790 = vld.sshfl [vmem:[#allocation1] sm:$0xff pattern:$0x73625140]
    %v3791 = vld.sshfl [vmem:[#allocation1 + $0x20] sm:$0xff pattern:$0x73625140]
    %3796 = vmatpush.msra.mxu0 %v3763
    %3797 = vmatpush.msra.mxu0 %v3761
    %3798 = vmatpush.msra.mxu0 %v3759
    %3799 = vmatpush.msra.mxu0 %v3757
    %3800 = vmatpush.msra.mxu0 %v3755
    %3801 = vmatpush.msra.mxu0 %v3753
    %3802 = vmatpush.msra.mxu0 %v3751
    %3803 = vmatpush.msra.mxu0 %v3749
    %3804 = vmatpush.msra.mxu0 %v3747
    %3805 = vmatpush.msra.mxu0 %v3745
    %3806 = vmatpush.msra.mxu0 %v3743
    %3807 = vmatpush.msra.mxu0 %v3741
    %3808 = vmatpush.msra.mxu0 %v3739
    %3809 = vmatpush.msra.mxu0 %v3737
    %3810 = vmatpush.msra.mxu0 %v3735
    %3811 = vmatpush.msra.mxu0 %v3733
    %3812 = vmatmul.f32.gmra.mxu0 %v3780
    %v3813 = vpop.f32.mrf.mxu0
    %v3814 = vadd.f32 0.0, %v3813
    %3815 = vmatmul.f32.gmra.mxu0 %v3781
    %v3816 = vpop.f32.mrf.mxu0
    %v3817 = vadd.f32 0.0, %v3816
    %3818 = vmatmul.f32.gmra.mxu0 %v3790
    %v3819 = vpop.f32.mrf.mxu0
    %v3820 = vadd.f32 0.0, %v3819
    %3821 = vmatmul.f32.gmra.mxu0 %v3791
    %v3822 = vpop.f32.mrf.mxu0
    %v3823 = vadd.f32 0.0, %v3822
    %3824 = vdwg.mxu0
    %3825 = vmatpush.msra.mxu0 %v3764
    %3826 = vmatpush.msra.mxu0 %v3762
    %3827 = vmatpush.msra.mxu0 %v3760
    %3828 = vmatpush.msra.mxu0 %v3758
    %3829 = vmatpush.msra.mxu0 %v3756
    %3830 = vmatpush.msra.mxu0 %v3754
    %3831 = vmatpush.msra.mxu0 %v3752
    %3832 = vmatpush.msra.mxu0 %v3750
    %3833 = vmatpush.msra.mxu0 %v3748
    %3834 = vmatpush.msra.mxu0 %v3746
    %3835 = vmatpush.msra.mxu0 %v3744
    %3836 = vmatpush.msra.mxu0 %v3742
    %3837 = vmatpush.msra.mxu0 %v3740
    %3838 = vmatpush.msra.mxu0 %v3738
    %3839 = vmatpush.msra.mxu0 %v3736
    %3840 = vmatpush.msra.mxu0 %v3734
    %3841 = vmatmul.f32.gmra.mxu0 %v3780
    %v3842 = vpop.f32.mrf.mxu0
    %v3843 = vadd.f32 0.0, %v3842
    %3844 = vmatmul.f32.gmra.mxu0 %v3781
    %v3845 = vpop.f32.mrf.mxu0
    %v3846 = vadd.f32 0.0, %v3845
    %3847 = vmatmul.f32.gmra.mxu0 %v3790
    %v3848 = vpop.f32.mrf.mxu0
    %v3849 = vadd.f32 0.0, %v3848
    %3850 = vmatmul.f32.gmra.mxu0 %v3791
    %v3851 = vpop.f32.mrf.mxu0
    %v3852 = vadd.f32 0.0, %v3851
    %3853 = vdwg.mxu0
    %v3854 = vadd.f32 %v3668, %v3814
    %v3855 = vadd.f32 %v3669, %v3843
    %v3856 = vadd.f32 %v3670, %v3817
    %v3857 = vadd.f32 %v3671, %v3846
    %v3858 = vadd.f32 %v3672, %v3820
    %v3859 = vadd.f32 %v3673, %v3849
    %v3860 = vadd.f32 %v3674, %v3823
    %v3861 = vadd.f32 %v3675, %v3852
    %s3862 = scalar_lea.vmem [#allocation2], 1024
    %v3863 = vld [vmem:[%s3862] sm:$0xff]
    %v3864 = vld [vmem:[%s3862 + $0x8] sm:$0xff]
    %v3865 = vld [vmem:[%s3862 + $0x10] sm:$0xff]
    %v3866 = vld [vmem:[%s3862 + $0x18] sm:$0xff]
    %v3867 = vld [vmem:[%s3862 + $0x20] sm:$0xff]
    %v3868 = vld [vmem:[%s3862 + $0x28] sm:$0xff]
    %v3869 = vld [vmem:[%s3862 + $0x30] sm:$0xff]
    %v3870 = vld [vmem:[%s3862 + $0x38] sm:$0xff]
    %v3871 = vld [vmem:[%s3862 + $0x40] sm:$0xff]
    %v3872 = vld [vmem:[%s3862 + $0x48] sm:$0xff]
    %v3873 = vld [vmem:[%s3862 + $0x50] sm:$0xff]
    %v3874 = vld [vmem:[%s3862 + $0x58] sm:$0xff]
    %v3875 = vld [vmem:[%s3862 + $0x60] sm:$0xff]
    %v3876 = vld [vmem:[%s3862 + $0x68] sm:$0xff]
    %v3877 = vld [vmem:[%s3862 + $0x70] sm:$0xff]
    %v3878 = vld [vmem:[%s3862 + $0x78] sm:$0xff]
    %v3879 = vld [vmem:[%s3862 + $0x80] sm:$0xff]
    %v3880 = vld [vmem:[%s3862 + $0x88] sm:$0xff]
    %v3881 = vld [vmem:[%s3862 + $0x90] sm:$0xff]
    %v3882 = vld [vmem:[%s3862 + $0x98] sm:$0xff]
    %v3883 = vld [vmem:[%s3862 + $0xa0] sm:$0xff]
    %v3884 = vld [vmem:[%s3862 + $0xa8] sm:$0xff]
    %v3885 = vld [vmem:[%s3862 + $0xb0] sm:$0xff]
    %v3886 = vld [vmem:[%s3862 + $0xb8] sm:$0xff]
    %v3887 = vld [vmem:[%s3862 + $0xc0] sm:$0xff]
    %v3888 = vld [vmem:[%s3862 + $0xc8] sm:$0xff]
    %v3889 = vld [vmem:[%s3862 + $0xd0] sm:$0xff]
    %v3890 = vld [vmem:[%s3862 + $0xd8] sm:$0xff]
    %v3891 = vld [vmem:[%s3862 + $0xe0] sm:$0xff]
    %v3892 = vld [vmem:[%s3862 + $0xe8] sm:$0xff]
    %v3893 = vld [vmem:[%s3862 + $0xf0] sm:$0xff]
    %v3894 = vld [vmem:[%s3862 + $0xf8] sm:$0xff]
    %3895 = vst [vmem:[#allocation1] ss:$4 sm:$0xff] %v1731
    %s3896 = scalar_lea.vmem [#allocation1], 1
    %3897 = vst [vmem:[%s3896] ss:$4 sm:$0xff] %v1732
    %s3898 = scalar_lea.vmem [#allocation1], 2
    %3899 = vst [vmem:[%s3898] ss:$4 sm:$0xff] %v1720
    %s3900 = scalar_lea.vmem [#allocation1], 3
    %3901 = vst [vmem:[%s3900] ss:$4 sm:$0xff] %v1734
    %s3902 = scalar_lea.vmem [#allocation1], 32
    %3903 = vst [vmem:[%s3902] ss:$4 sm:$0xff] %v1736
    %s3904 = scalar_lea.vmem [#allocation1], 33
    %3905 = vst [vmem:[%s3904] ss:$4 sm:$0xff] %v1721
    %s3906 = scalar_lea.vmem [#allocation1], 34
    %3907 = vst [vmem:[%s3906] ss:$4 sm:$0xff] %v1738
    %s3908 = scalar_lea.vmem [#allocation1], 35
    %3909 = vst [vmem:[%s3908] ss:$4 sm:$0xff] %v1739
    %v3910 = vld.sshfl [vmem:[#allocation1] sm:$0xff pattern:$0x73625140]
    %v3911 = vld.sshfl [vmem:[#allocation1 + $0x20] sm:$0xff pattern:$0x73625140]
    %3912 = vst [vmem:[#allocation1] ss:$4 sm:$0xff] %v1740
    %3913 = vst [vmem:[%s3896] ss:$4 sm:$0xff] %v1741
    %3914 = vst [vmem:[%s3898] ss:$4 sm:$0xff] %v1723
    %3915 = vst [vmem:[%s3900] ss:$4 sm:$0xff] %v1743
    %3916 = vst [vmem:[%s3902] ss:$4 sm:$0xff] %v1745
    %3917 = vst [vmem:[%s3904] ss:$4 sm:$0xff] %v1724
    %3918 = vst [vmem:[%s3906] ss:$4 sm:$0xff] %v1747
    %3919 = vst [vmem:[%s3908] ss:$4 sm:$0xff] %v1748
    %v3920 = vld.sshfl [vmem:[#allocation1] sm:$0xff pattern:$0x73625140]
    %v3921 = vld.sshfl [vmem:[#allocation1 + $0x20] sm:$0xff pattern:$0x73625140]
    %3926 = vmatpush.msra.mxu0 %v3893
    %3927 = vmatpush.msra.mxu0 %v3891
    %3928 = vmatpush.msra.mxu0 %v3889
    %3929 = vmatpush.msra.mxu0 %v3887
    %3930 = vmatpush.msra.mxu0 %v3885
    %3931 = vmatpush.msra.mxu0 %v3883
    %3932 = vmatpush.msra.mxu0 %v3881
    %3933 = vmatpush.msra.mxu0 %v3879
    %3934 = vmatpush.msra.mxu0 %v3877
    %3935 = vmatpush.msra.mxu0 %v3875
    %3936 = vmatpush.msra.mxu0 %v3873
    %3937 = vmatpush.msra.mxu0 %v3871
    %3938 = vmatpush.msra.mxu0 %v3869
    %3939 = vmatpush.msra.mxu0 %v3867
    %3940 = vmatpush.msra.mxu0 %v3865
    %3941 = vmatpush.msra.mxu0 %v3863
    %3942 = vmatmul.f32.gmra.mxu0 %v3910
    %v3943 = vpop.f32.mrf.mxu0
    %v3944 = vadd.f32 0.0, %v3943
    %3945 = vmatmul.f32.gmra.mxu0 %v3911
    %v3946 = vpop.f32.mrf.mxu0
    %v3947 = vadd.f32 0.0, %v3946
    %3948 = vmatmul.f32.gmra.mxu0 %v3920
    %v3949 = vpop.f32.mrf.mxu0
    %v3950 = vadd.f32 0.0, %v3949
    %3951 = vmatmul.f32.gmra.mxu0 %v3921
    %v3952 = vpop.f32.mrf.mxu0
    %v3953 = vadd.f32 0.0, %v3952
    %3954 = vdwg.mxu0
    %3955 = vmatpush.msra.mxu0 %v3894
    %3956 = vmatpush.msra.mxu0 %v3892
    %3957 = vmatpush.msra.mxu0 %v3890
    %3958 = vmatpush.msra.mxu0 %v3888
    %3959 = vmatpush.msra.mxu0 %v3886
    %3960 = vmatpush.msra.mxu0 %v3884
    %3961 = vmatpush.msra.mxu0 %v3882
    %3962 = vmatpush.msra.mxu0 %v3880
    %3963 = vmatpush.msra.mxu0 %v3878
    %3964 = vmatpush.msra.mxu0 %v3876
    %3965 = vmatpush.msra.mxu0 %v3874
    %3966 = vmatpush.msra.mxu0 %v3872
    %3967 = vmatpush.msra.mxu0 %v3870
    %3968 = vmatpush.msra.mxu0 %v3868
    %3969 = vmatpush.msra.mxu0 %v3866
    %3970 = vmatpush.msra.mxu0 %v3864
    %3971 = vmatmul.f32.gmra.mxu0 %v3910
    %v3972 = vpop.f32.mrf.mxu0
    %v3973 = vadd.f32 0.0, %v3972
    %3974 = vmatmul.f32.gmra.mxu0 %v3911
    %v3975 = vpop.f32.mrf.mxu0
    %v3976 = vadd.f32 0.0, %v3975
    %3977 = vmatmul.f32.gmra.mxu0 %v3920
    %v3978 = vpop.f32.mrf.mxu0
    %v3979 = vadd.f32 0.0, %v3978
    %3980 = vmatmul.f32.gmra.mxu0 %v3921
    %v3981 = vpop.f32.mrf.mxu0
    %v3982 = vadd.f32 0.0, %v3981
    %3983 = vdwg.mxu0
    %v3984 = vadd.f32 %v3854, %v3944
    %v3985 = vadd.f32 %v3855, %v3973
    %v3986 = vadd.f32 %v3856, %v3947
    %v3987 = vadd.f32 %v3857, %v3976
    %v3988 = vadd.f32 %v3858, %v3950
    %v3989 = vadd.f32 %v3859, %v3979
    %v3990 = vadd.f32 %v3860, %v3953
    %v3991 = vadd.f32 %v3861, %v3982
    %3992 = vst [vmem:[#allocation1] ss:$4 sm:$0xff] %v3493
    %s3993 = scalar_lea.vmem [#allocation1], 1
    %3994 = vst [vmem:[%s3993] ss:$4 sm:$0xff] %v3496
    %s3995 = scalar_lea.vmem [#allocation1], 2
    %3996 = vst [vmem:[%s3995] ss:$4 sm:$0xff] %v3500
    %s3997 = scalar_lea.vmem [#allocation1], 3
    %3998 = vst [vmem:[%s3997] ss:$4 sm:$0xff] %v3503
    %s3999 = scalar_lea.vmem [#allocation1], 32
    %4000 = vst [vmem:[%s3999] ss:$4 sm:$0xff] %v3507
    %s4001 = scalar_lea.vmem [#allocation1], 33
    %4002 = vst [vmem:[%s4001] ss:$4 sm:$0xff] %v3510
    %s4003 = scalar_lea.vmem [#allocation1], 34
    %4004 = vst [vmem:[%s4003] ss:$4 sm:$0xff] %v3514
    %s4005 = scalar_lea.vmem [#allocation1], 35
    %4006 = vst [vmem:[%s4005] ss:$4 sm:$0xff] %v3517
    %v4007 = vld.sshfl [vmem:[#allocation1] sm:$0xff pattern:$0x73625140]
    %v4008 = vld.sshfl [vmem:[#allocation1 + $0x20] sm:$0xff pattern:$0x73625140]
    %4009 = vst [vmem:[#allocation1] ss:$4 sm:$0xff] %v3521
    %4010 = vst [vmem:[%s3993] ss:$4 sm:$0xff] %v3524
    %4011 = vst [vmem:[%s3995] ss:$4 sm:$0xff] %v3528
    %4012 = vst [vmem:[%s3997] ss:$4 sm:$0xff] %v3531
    %4013 = vst [vmem:[%s3999] ss:$4 sm:$0xff] %v3535
    %4014 = vst [vmem:[%s4001] ss:$4 sm:$0xff] %v3538
    %4015 = vst [vmem:[%s4003] ss:$4 sm:$0xff] %v3542
    %4016 = vst [vmem:[%s4005] ss:$4 sm:$0xff] %v3545
    %v4017 = vld.sshfl [vmem:[#allocation1] sm:$0xff pattern:$0x73625140]
    %v4018 = vld.sshfl [vmem:[#allocation1 + $0x20] sm:$0xff pattern:$0x73625140]
    %4023 = vmatpush.msra.mxu0 %v3310
    %4024 = vmatpush.msra.mxu0 %v3308
    %4025 = vmatpush.msra.mxu0 %v3306
    %4026 = vmatpush.msra.mxu0 %v3304
    %4027 = vmatpush.msra.mxu0 %v3302
    %4028 = vmatpush.msra.mxu0 %v3300
    %4029 = vmatpush.msra.mxu0 %v3298
    %4030 = vmatpush.msra.mxu0 %v3296
    %4031 = vmatpush.msra.mxu0 %v3294
    %4032 = vmatpush.msra.mxu0 %v3292
    %4033 = vmatpush.msra.mxu0 %v3290
    %4034 = vmatpush.msra.mxu0 %v3288
    %4035 = vmatpush.msra.mxu0 %v3286
    %4036 = vmatpush.msra.mxu0 %v3284
    %4037 = vmatpush.msra.mxu0 %v3282
    %4038 = vmatpush.msra.mxu0 %v3280
    %4039 = vmatmul.f32.gmra.mxu0 %v4007
    %v4040 = vpop.f32.mrf.mxu0
    %v4041 = vadd.f32 0.0, %v4040
    %4042 = vmatmul.f32.gmra.mxu0 %v4008
    %v4043 = vpop.f32.mrf.mxu0
    %v4044 = vadd.f32 0.0, %v4043
    %4045 = vmatmul.f32.gmra.mxu0 %v4017
    %v4046 = vpop.f32.mrf.mxu0
    %v4047 = vadd.f32 0.0, %v4046
    %4048 = vmatmul.f32.gmra.mxu0 %v4018
    %v4049 = vpop.f32.mrf.mxu0
    %v4050 = vadd.f32 0.0, %v4049
    %4051 = vdwg.mxu0
    %4052 = vmatpush.msra.mxu0 %v3311
    %4053 = vmatpush.msra.mxu0 %v3309
    %4054 = vmatpush.msra.mxu0 %v3307
    %4055 = vmatpush.msra.mxu0 %v3305
    %4056 = vmatpush.msra.mxu0 %v3303
    %4057 = vmatpush.msra.mxu0 %v3301
    %4058 = vmatpush.msra.mxu0 %v3299
    %4059 = vmatpush.msra.mxu0 %v3297
    %4060 = vmatpush.msra.mxu0 %v3295
    %4061 = vmatpush.msra.mxu0 %v3293
    %4062 = vmatpush.msra.mxu0 %v3291
    %4063 = vmatpush.msra.mxu0 %v3289
    %4064 = vmatpush.msra.mxu0 %v3287
    %4065 = vmatpush.msra.mxu0 %v3285
    %4066 = vmatpush.msra.mxu0 %v3283
    %4067 = vmatpush.msra.mxu0 %v3281
    %4068 = vmatmul.f32.gmra.mxu0 %v4007
    %v4069 = vpop.f32.mrf.mxu0
    %v4070 = vadd.f32 0.0, %v4069
    %4071 = vmatmul.f32.gmra.mxu0 %v4008
    %v4072 = vpop.f32.mrf.mxu0
    %v4073 = vadd.f32 0.0, %v4072
    %4074 = vmatmul.f32.gmra.mxu0 %v4017
    %v4075 = vpop.f32.mrf.mxu0
    %v4076 = vadd.f32 0.0, %v4075
    %4077 = vmatmul.f32.gmra.mxu0 %v4018
    %v4078 = vpop.f32.mrf.mxu0
    %v4079 = vadd.f32 0.0, %v4078
    %4080 = vdwg.mxu0
    %4081 = vst [vmem:[#allocation1] ss:$4 sm:$0xff] %v3217
    %s4082 = scalar_lea.vmem [#allocation1], 1
    %4083 = vst [vmem:[%s4082] ss:$4 sm:$0xff] %v3229
    %s4084 = scalar_lea.vmem [#allocation1], 2
    %4085 = vst [vmem:[%s4084] ss:$4 sm:$0xff] %v3231
    %s4086 = scalar_lea.vmem [#allocation1], 3
    %4087 = vst [vmem:[%s4086] ss:$4 sm:$0xff] %v3218
    %s4088 = scalar_lea.vmem [#allocation1], 32
    %4089 = vst [vmem:[%s4088] ss:$4 sm:$0xff] %v3233
    %s4090 = scalar_lea.vmem [#allocation1], 33
    %4091 = vst [vmem:[%s4090] ss:$4 sm:$0xff] %v3234
    %s4092 = scalar_lea.vmem [#allocation1], 34
    %4093 = vst [vmem:[%s4092] ss:$4 sm:$0xff] %v3235
    %s4094 = scalar_lea.vmem [#allocation1], 35
    %4095 = vst [vmem:[%s4094] ss:$4 sm:$0xff] %v3236
    %v4096 = vld.sshfl [vmem:[#allocation1] sm:$0xff pattern:$0x73625140]
    %v4097 = vld.sshfl [vmem:[#allocation1 + $0x20] sm:$0xff pattern:$0x73625140]
    %4098 = vst [vmem:[#allocation1] ss:$4 sm:$0xff] %v3220
    %4099 = vst [vmem:[%s4082] ss:$4 sm:$0xff] %v3238
    %4100 = vst [vmem:[%s4084] ss:$4 sm:$0xff] %v3240
    %4101 = vst [vmem:[%s4086] ss:$4 sm:$0xff] %v3221
    %4102 = vst [vmem:[%s4088] ss:$4 sm:$0xff] %v3242
    %4103 = vst [vmem:[%s4090] ss:$4 sm:$0xff] %v3243
    %4104 = vst [vmem:[%s4092] ss:$4 sm:$0xff] %v3244
    %4105 = vst [vmem:[%s4094] ss:$4 sm:$0xff] %v3245
    %v4106 = vld.sshfl [vmem:[#allocation1] sm:$0xff pattern:$0x73625140]
    %v4107 = vld.sshfl [vmem:[#allocation1 + $0x20] sm:$0xff pattern:$0x73625140]
    %4112 = vmatpush.msra.mxu0 %v3277
    %4113 = vmatpush.msra.mxu0 %v3275
    %4114 = vmatpush.msra.mxu0 %v3273
    %4115 = vmatpush.msra.mxu0 %v3271
    %4116 = vmatpush.msra.mxu0 %v3269
    %4117 = vmatpush.msra.mxu0 %v3267
    %4118 = vmatpush.msra.mxu0 %v3265
    %4119 = vmatpush.msra.mxu0 %v3263
    %4120 = vmatpush.msra.mxu0 %v3261
    %4121 = vmatpush.msra.mxu0 %v3259
    %4122 = vmatpush.msra.mxu0 %v3257
    %4123 = vmatpush.msra.mxu0 %v3255
    %4124 = vmatpush.msra.mxu0 %v3253
    %4125 = vmatpush.msra.mxu0 %v3251
    %4126 = vmatpush.msra.mxu0 %v3249
    %4127 = vmatpush.msra.mxu0 %v3247
    %4128 = vmatmul.f32.gmra.mxu0 %v4096
    %v4129 = vpop.f32.mrf.mxu0
    %v4130 = vadd.f32 %v4041, %v4129
    %4131 = vmatmul.f32.gmra.mxu0 %v4097
    %v4132 = vpop.f32.mrf.mxu0
    %v4133 = vadd.f32 %v4044, %v4132
    %4134 = vmatmul.f32.gmra.mxu0 %v4106
    %v4135 = vpop.f32.mrf.mxu0
    %v4136 = vadd.f32 %v4047, %v4135
    %4137 = vmatmul.f32.gmra.mxu0 %v4107
    %v4138 = vpop.f32.mrf.mxu0
    %v4139 = vadd.f32 %v4050, %v4138
    %4140 = vdwg.mxu0
    %4141 = vmatpush.msra.mxu0 %v3278
    %4142 = vmatpush.msra.mxu0 %v3276
    %4143 = vmatpush.msra.mxu0 %v3274
    %4144 = vmatpush.msra.mxu0 %v3272
    %4145 = vmatpush.msra.mxu0 %v3270
    %4146 = vmatpush.msra.mxu0 %v3268
    %4147 = vmatpush.msra.mxu0 %v3266
    %4148 = vmatpush.msra.mxu0 %v3264
    %4149 = vmatpush.msra.mxu0 %v3262
    %4150 = vmatpush.msra.mxu0 %v3260
    %4151 = vmatpush.msra.mxu0 %v3258
    %4152 = vmatpush.msra.mxu0 %v3256
    %4153 = vmatpush.msra.mxu0 %v3254
    %4154 = vmatpush.msra.mxu0 %v3252
    %4155 = vmatpush.msra.mxu0 %v3250
    %4156 = vmatpush.msra.mxu0 %v3248
    %4157 = vmatmul.f32.gmra.mxu0 %v4096
    %v4158 = vpop.f32.mrf.mxu0
    %v4159 = vadd.f32 %v4070, %v4158
    %4160 = vmatmul.f32.gmra.mxu0 %v4097
    %v4161 = vpop.f32.mrf.mxu0
    %v4162 = vadd.f32 %v4073, %v4161
    %4163 = vmatmul.f32.gmra.mxu0 %v4106
    %v4164 = vpop.f32.mrf.mxu0
    %v4165 = vadd.f32 %v4076, %v4164
    %4166 = vmatmul.f32.gmra.mxu0 %v4107
    %v4167 = vpop.f32.mrf.mxu0
    %v4168 = vadd.f32 %v4079, %v4167
    %4169 = vdwg.mxu0
    %4170 = vst [vmem:[#allocation1] ss:$4 sm:$0xff] %v3679
    %s4171 = scalar_lea.vmem [#allocation1], 1
    %4172 = vst [vmem:[%s4171] ss:$4 sm:$0xff] %v3682
    %s4173 = scalar_lea.vmem [#allocation1], 2
    %4174 = vst [vmem:[%s4173] ss:$4 sm:$0xff] %v3686
    %s4175 = scalar_lea.vmem [#allocation1], 3
    %4176 = vst [vmem:[%s4175] ss:$4 sm:$0xff] %v3689
    %s4177 = scalar_lea.vmem [#allocation1], 32
    %4178 = vst [vmem:[%s4177] ss:$4 sm:$0xff] %v3693
    %s4179 = scalar_lea.vmem [#allocation1], 33
    %4180 = vst [vmem:[%s4179] ss:$4 sm:$0xff] %v3696
    %s4181 = scalar_lea.vmem [#allocation1], 34
    %4182 = vst [vmem:[%s4181] ss:$4 sm:$0xff] %v3700
    %s4183 = scalar_lea.vmem [#allocation1], 35
    %4184 = vst [vmem:[%s4183] ss:$4 sm:$0xff] %v3703
    %v4185 = vld.sshfl [vmem:[#allocation1] sm:$0xff pattern:$0x73625140]
    %v4186 = vld.sshfl [vmem:[#allocation1 + $0x20] sm:$0xff pattern:$0x73625140]
    %4187 = vst [vmem:[#allocation1] ss:$4 sm:$0xff] %v3707
    %4188 = vst [vmem:[%s4171] ss:$4 sm:$0xff] %v3710
    %4189 = vst [vmem:[%s4173] ss:$4 sm:$0xff] %v3714
    %4190 = vst [vmem:[%s4175] ss:$4 sm:$0xff] %v3717
    %4191 = vst [vmem:[%s4177] ss:$4 sm:$0xff] %v3721
    %4192 = vst [vmem:[%s4179] ss:$4 sm:$0xff] %v3724
    %4193 = vst [vmem:[%s4181] ss:$4 sm:$0xff] %v3728
    %4194 = vst [vmem:[%s4183] ss:$4 sm:$0xff] %v3731
    %v4195 = vld.sshfl [vmem:[#allocation1] sm:$0xff pattern:$0x73625140]
    %v4196 = vld.sshfl [vmem:[#allocation1 + $0x20] sm:$0xff pattern:$0x73625140]
    %4201 = vmatpush.msra.mxu0 %v3577
    %4202 = vmatpush.msra.mxu0 %v3575
    %4203 = vmatpush.msra.mxu0 %v3573
    %4204 = vmatpush.msra.mxu0 %v3571
    %4205 = vmatpush.msra.mxu0 %v3569
    %4206 = vmatpush.msra.mxu0 %v3567
    %4207 = vmatpush.msra.mxu0 %v3565
    %4208 = vmatpush.msra.mxu0 %v3563
    %4209 = vmatpush.msra.mxu0 %v3561
    %4210 = vmatpush.msra.mxu0 %v3559
    %4211 = vmatpush.msra.mxu0 %v3557
    %4212 = vmatpush.msra.mxu0 %v3555
    %4213 = vmatpush.msra.mxu0 %v3553
    %4214 = vmatpush.msra.mxu0 %v3551
    %4215 = vmatpush.msra.mxu0 %v3549
    %4216 = vmatpush.msra.mxu0 %v3547
    %4217 = vmatmul.f32.gmra.mxu0 %v4185
    %v4218 = vpop.f32.mrf.mxu0
    %v4219 = vadd.f32 0.0, %v4218
    %4220 = vmatmul.f32.gmra.mxu0 %v4186
    %v4221 = vpop.f32.mrf.mxu0
    %v4222 = vadd.f32 0.0, %v4221
    %4223 = vmatmul.f32.gmra.mxu0 %v4195
    %v4224 = vpop.f32.mrf.mxu0
    %v4225 = vadd.f32 0.0, %v4224
    %4226 = vmatmul.f32.gmra.mxu0 %v4196
    %v4227 = vpop.f32.mrf.mxu0
    %v4228 = vadd.f32 0.0, %v4227
    %4229 = vdwg.mxu0
    %4230 = vmatpush.msra.mxu0 %v3578
    %4231 = vmatpush.msra.mxu0 %v3576
    %4232 = vmatpush.msra.mxu0 %v3574
    %4233 = vmatpush.msra.mxu0 %v3572
    %4234 = vmatpush.msra.mxu0 %v3570
    %4235 = vmatpush.msra.mxu0 %v3568
    %4236 = vmatpush.msra.mxu0 %v3566
    %4237 = vmatpush.msra.mxu0 %v3564
    %4238 = vmatpush.msra.mxu0 %v3562
    %4239 = vmatpush.msra.mxu0 %v3560
    %4240 = vmatpush.msra.mxu0 %v3558
    %4241 = vmatpush.msra.mxu0 %v3556
    %4242 = vmatpush.msra.mxu0 %v3554
    %4243 = vmatpush.msra.mxu0 %v3552
    %4244 = vmatpush.msra.mxu0 %v3550
    %4245 = vmatpush.msra.mxu0 %v3548
    %4246 = vmatmul.f32.gmra.mxu0 %v4185
    %v4247 = vpop.f32.mrf.mxu0
    %v4248 = vadd.f32 0.0, %v4247
    %4249 = vmatmul.f32.gmra.mxu0 %v4186
    %v4250 = vpop.f32.mrf.mxu0
    %v4251 = vadd.f32 0.0, %v4250
    %4252 = vmatmul.f32.gmra.mxu0 %v4195
    %v4253 = vpop.f32.mrf.mxu0
    %v4254 = vadd.f32 0.0, %v4253
    %4255 = vmatmul.f32.gmra.mxu0 %v4196
    %v4256 = vpop.f32.mrf.mxu0
    %v4257 = vadd.f32 0.0, %v4256
    %4258 = vdwg.mxu0
    %v4259 = vadd.f32 %v4130, %v4219
    %v4260 = vadd.f32 %v4159, %v4248
    %v4261 = vadd.f32 %v4133, %v4222
    %v4262 = vadd.f32 %v4162, %v4251
    %v4263 = vadd.f32 %v4136, %v4225
    %v4264 = vadd.f32 %v4165, %v4254
    %v4265 = vadd.f32 %v4139, %v4228
    %v4266 = vadd.f32 %v4168, %v4257
    %4267 = vst [vmem:[#allocation1] ss:$4 sm:$0xff] %v1731
    %s4268 = scalar_lea.vmem [#allocation1], 1
    %4269 = vst [vmem:[%s4268] ss:$4 sm:$0xff] %v1732
    %s4270 = scalar_lea.vmem [#allocation1], 2
    %4271 = vst [vmem:[%s4270] ss:$4 sm:$0xff] %v1720
    %s4272 = scalar_lea.vmem [#allocation1], 3
    %4273 = vst [vmem:[%s4272] ss:$4 sm:$0xff] %v1734
    %s4274 = scalar_lea.vmem [#allocation1], 32
    %4275 = vst [vmem:[%s4274] ss:$4 sm:$0xff] %v1736
    %s4276 = scalar_lea.vmem [#allocation1], 33
    %4277 = vst [vmem:[%s4276] ss:$4 sm:$0xff] %v1721
    %s4278 = scalar_lea.vmem [#allocation1], 34
    %4279 = vst [vmem:[%s4278] ss:$4 sm:$0xff] %v1738
    %s4280 = scalar_lea.vmem [#allocation1], 35
    %4281 = vst [vmem:[%s4280] ss:$4 sm:$0xff] %v1739
    %v4282 = vld.sshfl [vmem:[#allocation1] sm:$0xff pattern:$0x73625140]
    %v4283 = vld.sshfl [vmem:[#allocation1 + $0x20] sm:$0xff pattern:$0x73625140]
    %4284 = vst [vmem:[#allocation1] ss:$4 sm:$0xff] %v1740
    %4285 = vst [vmem:[%s4268] ss:$4 sm:$0xff] %v1741
    %4286 = vst [vmem:[%s4270] ss:$4 sm:$0xff] %v1723
    %4287 = vst [vmem:[%s4272] ss:$4 sm:$0xff] %v1743
    %4288 = vst [vmem:[%s4274] ss:$4 sm:$0xff] %v1745
    %4289 = vst [vmem:[%s4276] ss:$4 sm:$0xff] %v1724
    %4290 = vst [vmem:[%s4278] ss:$4 sm:$0xff] %v1747
    %4291 = vst [vmem:[%s4280] ss:$4 sm:$0xff] %v1748
    %v4292 = vld.sshfl [vmem:[#allocation1] sm:$0xff pattern:$0x73625140]
    %v4293 = vld.sshfl [vmem:[#allocation1 + $0x20] sm:$0xff pattern:$0x73625140]
    %4298 = vmatpush.msra.mxu0 %v3763
    %4299 = vmatpush.msra.mxu0 %v3761
    %4300 = vmatpush.msra.mxu0 %v3759
    %4301 = vmatpush.msra.mxu0 %v3757
    %4302 = vmatpush.msra.mxu0 %v3755
    %4303 = vmatpush.msra.mxu0 %v3753
    %4304 = vmatpush.msra.mxu0 %v3751
    %4305 = vmatpush.msra.mxu0 %v3749
    %4306 = vmatpush.msra.mxu0 %v3747
    %4307 = vmatpush.msra.mxu0 %v3745
    %4308 = vmatpush.msra.mxu0 %v3743
    %4309 = vmatpush.msra.mxu0 %v3741
    %4310 = vmatpush.msra.mxu0 %v3739
    %4311 = vmatpush.msra.mxu0 %v3737
    %4312 = vmatpush.msra.mxu0 %v3735
    %4313 = vmatpush.msra.mxu0 %v3733
    %4314 = vmatmul.f32.gmra.mxu0 %v4282
    %v4315 = vpop.f32.mrf.mxu0
    %v4316 = vadd.f32 0.0, %v4315
    %4317 = vmatmul.f32.gmra.mxu0 %v4283
    %v4318 = vpop.f32.mrf.mxu0
    %v4319 = vadd.f32 0.0, %v4318
    %4320 = vmatmul.f32.gmra.mxu0 %v4292
    %v4321 = vpop.f32.mrf.mxu0
    %v4322 = vadd.f32 0.0, %v4321
    %4323 = vmatmul.f32.gmra.mxu0 %v4293
    %v4324 = vpop.f32.mrf.mxu0
    %v4325 = vadd.f32 0.0, %v4324
    %4326 = vdwg.mxu0
    %4327 = vmatpush.msra.mxu0 %v3764
    %4328 = vmatpush.msra.mxu0 %v3762
    %4329 = vmatpush.msra.mxu0 %v3760
    %4330 = vmatpush.msra.mxu0 %v3758
    %4331 = vmatpush.msra.mxu0 %v3756
    %4332 = vmatpush.msra.mxu0 %v3754
    %4333 = vmatpush.msra.mxu0 %v3752
    %4334 = vmatpush.msra.mxu0 %v3750
    %4335 = vmatpush.msra.mxu0 %v3748
    %4336 = vmatpush.msra.mxu0 %v3746
    %4337 = vmatpush.msra.mxu0 %v3744
    %4338 = vmatpush.msra.mxu0 %v3742
    %4339 = vmatpush.msra.mxu0 %v3740
    %4340 = vmatpush.msra.mxu0 %v3738
    %4341 = vmatpush.msra.mxu0 %v3736
    %4342 = vmatpush.msra.mxu0 %v3734
    %4343 = vmatmul.f32.gmra.mxu0 %v4282
    %v4344 = vpop.f32.mrf.mxu0
    %v4345 = vadd.f32 0.0, %v4344
    %4346 = vmatmul.f32.gmra.mxu0 %v4283
    %v4347 = vpop.f32.mrf.mxu0
    %v4348 = vadd.f32 0.0, %v4347
    %4349 = vmatmul.f32.gmra.mxu0 %v4292
    %v4350 = vpop.f32.mrf.mxu0
    %v4351 = vadd.f32 0.0, %v4350
    %4352 = vmatmul.f32.gmra.mxu0 %v4293
    %v4353 = vpop.f32.mrf.mxu0
    %v4354 = vadd.f32 0.0, %v4353
    %4355 = vdwg.mxu0
    %v4356 = vadd.f32 %v4259, %v4316
    %v4357 = vadd.f32 %v4260, %v4345
    %v4358 = vadd.f32 %v4261, %v4319
    %v4359 = vadd.f32 %v4262, %v4348
    %v4360 = vadd.f32 %v4263, %v4322
    %v4361 = vadd.f32 %v4264, %v4351
    %v4362 = vadd.f32 %v4265, %v4325
    %v4363 = vadd.f32 %v4266, %v4354
    %4364 = vst [vmem:[#allocation1] ss:$4 sm:$0xff] %v3229
    %s4365 = scalar_lea.vmem [#allocation1], 1
    %4366 = vst [vmem:[%s4365] ss:$4 sm:$0xff] %v3230
    %s4367 = scalar_lea.vmem [#allocation1], 2
    %4368 = vst [vmem:[%s4367] ss:$4 sm:$0xff] %v3218
    %s4369 = scalar_lea.vmem [#allocation1], 3
    %4370 = vst [vmem:[%s4369] ss:$4 sm:$0xff] %v3232
    %s4371 = scalar_lea.vmem [#allocation1], 32
    %4372 = vst [vmem:[%s4371] ss:$4 sm:$0xff] %v3234
    %s4373 = scalar_lea.vmem [#allocation1], 33
    %4374 = vst [vmem:[%s4373] ss:$4 sm:$0xff] %v3219
    %s4375 = scalar_lea.vmem [#allocation1], 34
    %4376 = vst [vmem:[%s4375] ss:$4 sm:$0xff] %v3236
    %s4377 = scalar_lea.vmem [#allocation1], 35
    %4378 = vst [vmem:[%s4377] ss:$4 sm:$0xff] %v3237
    %v4379 = vld.sshfl [vmem:[#allocation1] sm:$0xff pattern:$0x73625140]
    %v4380 = vld.sshfl [vmem:[#allocation1 + $0x20] sm:$0xff pattern:$0x73625140]
    %4381 = vst [vmem:[#allocation1] ss:$4 sm:$0xff] %v3238
    %4382 = vst [vmem:[%s4365] ss:$4 sm:$0xff] %v3239
    %4383 = vst [vmem:[%s4367] ss:$4 sm:$0xff] %v3221
    %4384 = vst [vmem:[%s4369] ss:$4 sm:$0xff] %v3241
    %4385 = vst [vmem:[%s4371] ss:$4 sm:$0xff] %v3243
    %4386 = vst [vmem:[%s4373] ss:$4 sm:$0xff] %v3222
    %4387 = vst [vmem:[%s4375] ss:$4 sm:$0xff] %v3245
    %4388 = vst [vmem:[%s4377] ss:$4 sm:$0xff] %v3246
    %v4389 = vld.sshfl [vmem:[#allocation1] sm:$0xff pattern:$0x73625140]
    %v4390 = vld.sshfl [vmem:[#allocation1 + $0x20] sm:$0xff pattern:$0x73625140]
    %4395 = vmatpush.msra.mxu0 %v3893
    %4396 = vmatpush.msra.mxu0 %v3891
    %4397 = vmatpush.msra.mxu0 %v3889
    %4398 = vmatpush.msra.mxu0 %v3887
    %4399 = vmatpush.msra.mxu0 %v3885
    %4400 = vmatpush.msra.mxu0 %v3883
    %4401 = vmatpush.msra.mxu0 %v3881
    %4402 = vmatpush.msra.mxu0 %v3879
    %4403 = vmatpush.msra.mxu0 %v3877
    %4404 = vmatpush.msra.mxu0 %v3875
    %4405 = vmatpush.msra.mxu0 %v3873
    %4406 = vmatpush.msra.mxu0 %v3871
    %4407 = vmatpush.msra.mxu0 %v3869
    %4408 = vmatpush.msra.mxu0 %v3867
    %4409 = vmatpush.msra.mxu0 %v3865
    %4410 = vmatpush.msra.mxu0 %v3863
    %4411 = vmatmul.f32.gmra.mxu0 %v4379
    %v4412 = vpop.f32.mrf.mxu0
    %v4413 = vadd.f32 0.0, %v4412
    %4414 = vmatmul.f32.gmra.mxu0 %v4380
    %v4415 = vpop.f32.mrf.mxu0
    %v4416 = vadd.f32 0.0, %v4415
    %4417 = vmatmul.f32.gmra.mxu0 %v4389
    %v4418 = vpop.f32.mrf.mxu0
    %v4419 = vadd.f32 0.0, %v4418
    %4420 = vmatmul.f32.gmra.mxu0 %v4390
    %v4421 = vpop.f32.mrf.mxu0
    %v4422 = vadd.f32 0.0, %v4421
    %4423 = vdwg.mxu0
    %4424 = vmatpush.msra.mxu0 %v3894
    %4425 = vmatpush.msra.mxu0 %v3892
    %4426 = vmatpush.msra.mxu0 %v3890
    %4427 = vmatpush.msra.mxu0 %v3888
    %4428 = vmatpush.msra.mxu0 %v3886
    %4429 = vmatpush.msra.mxu0 %v3884
    %4430 = vmatpush.msra.mxu0 %v3882
    %4431 = vmatpush.msra.mxu0 %v3880
    %4432 = vmatpush.msra.mxu0 %v3878
    %4433 = vmatpush.msra.mxu0 %v3876
    %4434 = vmatpush.msra.mxu0 %v3874
    %4435 = vmatpush.msra.mxu0 %v3872
    %4436 = vmatpush.msra.mxu0 %v3870
    %4437 = vmatpush.msra.mxu0 %v3868
    %4438 = vmatpush.msra.mxu0 %v3866
    %4439 = vmatpush.msra.mxu0 %v3864
    %4440 = vmatmul.f32.gmra.mxu0 %v4379
    %v4441 = vpop.f32.mrf.mxu0
    %v4442 = vadd.f32 0.0, %v4441
    %4443 = vmatmul.f32.gmra.mxu0 %v4380
    %v4444 = vpop.f32.mrf.mxu0
    %v4445 = vadd.f32 0.0, %v4444
    %4446 = vmatmul.f32.gmra.mxu0 %v4389
    %v4447 = vpop.f32.mrf.mxu0
    %v4448 = vadd.f32 0.0, %v4447
    %4449 = vmatmul.f32.gmra.mxu0 %v4390
    %v4450 = vpop.f32.mrf.mxu0
    %v4451 = vadd.f32 0.0, %v4450
    %4452 = vdwg.mxu0
    %v4453 = vadd.f32 %v4356, %v4413
    %v4454 = vadd.f32 %v4357, %v4442
    %v4455 = vadd.f32 %v4358, %v4416
    %v4456 = vadd.f32 %v4359, %v4445
    %v4457 = vadd.f32 %v4360, %v4419
    %v4458 = vadd.f32 %v4361, %v4448
    %v4459 = vadd.f32 %v4362, %v4422
    %v4460 = vadd.f32 %v4363, %v4451
    %v4461 = vmax.f32 %v3984, %v4453
    %v4462 = vmax.f32 %v3985, %v4454
    %v4463 = vmax.f32 %v3986, %v4455
    %v4464 = vmax.f32 %v3987, %v4456
    %v4465 = vmax.f32 %v3988, %v4457
    %v4466 = vmax.f32 %v3989, %v4458
    %v4467 = vmax.f32 %v3990, %v4459
    %v4468 = vmax.f32 %v3991, %v4460
    %v4469 = vmax.f32 %v4461, %v4462
    %v4470 = vmax.f32 %v4463, %v4464
    %v4471 = vmax.f32 %v4465, %v4466
    %v4472 = vmax.f32 %v4467, %v4468
    %v4473 = vld [vmem:[%s4] sm:$0x1]
    %v4475 = vperm.slane %v4473, 0
    %v4477 = vadd.f32 %v4469, %v4475
    %v4478 = vadd.f32 %v4470, %v4475
    %v4479 = vadd.f32 %v4471, %v4475
    %v4480 = vadd.f32 %v4472, %v4475
    %v4481 = vmax.f32 %v4477, 0.0
    %v4482 = vmax.f32 %v4478, 0.0
    %v4483 = vmax.f32 %v4479, 0.0
    %v4484 = vmax.f32 %v4480, 0.0
    %vm4485 = vcmp.lt.s32.totalorder %v1701, 80
    %v4486 = vsel %vm4485, %v4481, 0.0
    %v4487 = vsel %vm4485, %v4482, 0.0
    %v4488 = vsel %vm4485, %v4483, 0.0
    %v4489 = vsel %vm4485, %v4484, 0.0
    %v4494 = vrot.slane %v4486, 4
    %v4495 = vrot.slane %v4487, 4
    %v4496 = vrot.slane %v4488, 4
    %v4497 = vrot.slane %v4489, 4
    %v4498 = vld [vmem:[%s5] sm:$0xff]
    %v4499 = vld [vmem:[%s5 + $0x8] sm:$0xff]
    %v4500 = vld [vmem:[%s5 + $0x10] sm:$0xff]
    %v4501 = vld [vmem:[%s5 + $0x18] sm:$0xff]
    %v4502 = vld [vmem:[%s5 + $0x20] sm:$0xff]
    %v4503 = vld [vmem:[%s5 + $0x28] sm:$0xff]
    %v4504 = vld [vmem:[%s5 + $0x30] sm:$0xff]
    %v4505 = vld [vmem:[%s5 + $0x38] sm:$0xff]
    %v4506 = vld [vmem:[%s5 + $0x40] sm:$0xff]
    %v4507 = vld [vmem:[%s5 + $0x48] sm:$0xff]
    %v4508 = vld [vmem:[%s5 + $0x50] sm:$0xff]
    %v4509 = vld [vmem:[%s5 + $0x58] sm:$0xff]
    %v4510 = vld [vmem:[%s5 + $0x60] sm:$0xff]
    %v4511 = vld [vmem:[%s5 + $0x68] sm:$0xff]
    %v4512 = vld [vmem:[%s5 + $0x70] sm:$0xff]
    %v4513 = vld [vmem:[%s5 + $0x78] sm:$0xff]
    %s4514 = scalar_lea.vmem %s5, 128
    %v4515 = vld [vmem:[%s4514] sm:$0xff]
    %v4516 = vld [vmem:[%s4514 + $0x8] sm:$0xff]
    %v4517 = vld [vmem:[%s4514 + $0x10] sm:$0xff]
    %v4518 = vld [vmem:[%s4514 + $0x18] sm:$0xff]
    %v4519 = vld [vmem:[%s4514 + $0x20] sm:$0xff]
    %v4520 = vld [vmem:[%s4514 + $0x28] sm:$0xff]
    %v4521 = vld [vmem:[%s4514 + $0x30] sm:$0xff]
    %v4522 = vld [vmem:[%s4514 + $0x38] sm:$0xff]
    %v4523 = vld [vmem:[%s4514 + $0x40] sm:$0xff]
    %v4524 = vld [vmem:[%s4514 + $0x48] sm:$0xff]
    %v4525 = vld [vmem:[%s4514 + $0x50] sm:$0xff]
    %v4526 = vld [vmem:[%s4514 + $0x58] sm:$0xff]
    %v4527 = vld [vmem:[%s4514 + $0x60] sm:$0xff]
    %v4528 = vld [vmem:[%s4514 + $0x68] sm:$0xff]
    %v4529 = vld [vmem:[%s4514 + $0x70] sm:$0xff]
    %v4530 = vld [vmem:[%s4514 + $0x78] sm:$0xff]
    %v4531 = vperm.slane %v4486, 1
    %v4532 = vperm.slane %v4494, 1
    %v4533 = vperm.slane %v4487, 1
    %v4534 = vperm.slane %v4495, 1
    %v4535 = vperm.slane %v4488, 1
    %v4536 = vperm.slane %v4496, 1
    %v4537 = vperm.slane %v4489, 1
    %v4538 = vperm.slane %v4497, 1
    %vm4539 = vcmask 1041409
    %v4540 = vsel %vm4539, %v4532, %v4531
    %v4541 = vsel %vm737, %v4533, %v4540
    %vm4542 = vcmask 1043459
    %v4543 = vsel %vm4542, %v4534, %v4541
    %v4544 = vsel %vm739, %v4535, %v4543
    %vm4545 = vcmask 1045509
    %v4546 = vsel %vm4545, %v4536, %v4544
    %v4547 = vsel %vm741, %v4537, %v4546
    %vm4548 = vcmask 1047559
    %v4549 = vsel %vm4548, %v4538, %v4547
    %4551 = vmatpush.msra.mxu0 %v4530
    %4552 = vmatpush.msra.mxu0 %v4529
    %4553 = vmatpush.msra.mxu0 %v4528
    %4554 = vmatpush.msra.mxu0 %v4527
    %4555 = vmatpush.msra.mxu0 %v4526
    %4556 = vmatpush.msra.mxu0 %v4525
    %4557 = vmatpush.msra.mxu0 %v4524
    %4558 = vmatpush.msra.mxu0 %v4523
    %4559 = vmatpush.msra.mxu0 %v4522
    %4560 = vmatpush.msra.mxu0 %v4521
    %4561 = vmatpush.msra.mxu0 %v4520
    %4562 = vmatpush.msra.mxu0 %v4519
    %4563 = vmatpush.msra.mxu0 %v4518
    %4564 = vmatpush.msra.mxu0 %v4517
    %4565 = vmatpush.msra.mxu0 %v4516
    %4566 = vmatpush.msra.mxu0 %v4515
    %4567 = vmatmul.f32.gmra.mxu0 %v4549
    %v4568 = vpop.f32.mrf.mxu0
    %v4569 = vadd.f32 0.0, %v4568
    %4570 = vdwg.mxu0
    %v4571 = vperm.slane %v4486, 0
    %v4572 = vperm.slane %v4494, 0
    %v4573 = vperm.slane %v4487, 0
    %v4574 = vperm.slane %v4495, 0
    %v4575 = vperm.slane %v4488, 0
    %v4576 = vperm.slane %v4496, 0
    %v4577 = vperm.slane %v4489, 0
    %v4578 = vperm.slane %v4497, 0
    %v4579 = vsel %vm4539, %v4572, %v4571
    %v4580 = vsel %vm737, %v4573, %v4579
    %v4581 = vsel %vm4542, %v4574, %v4580
    %v4582 = vsel %vm739, %v4575, %v4581
    %v4583 = vsel %vm4545, %v4576, %v4582
    %v4584 = vsel %vm741, %v4577, %v4583
    %v4585 = vsel %vm4548, %v4578, %v4584
    %4587 = vmatpush.msra.mxu0 %v4513
    %4588 = vmatpush.msra.mxu0 %v4512
    %4589 = vmatpush.msra.mxu0 %v4511
    %4590 = vmatpush.msra.mxu0 %v4510
    %4591 = vmatpush.msra.mxu0 %v4509
    %4592 = vmatpush.msra.mxu0 %v4508
    %4593 = vmatpush.msra.mxu0 %v4507
    %4594 = vmatpush.msra.mxu0 %v4506
    %4595 = vmatpush.msra.mxu0 %v4505
    %4596 = vmatpush.msra.mxu0 %v4504
    %4597 = vmatpush.msra.mxu0 %v4503
    %4598 = vmatpush.msra.mxu0 %v4502
    %4599 = vmatpush.msra.mxu0 %v4501
    %4600 = vmatpush.msra.mxu0 %v4500
    %4601 = vmatpush.msra.mxu0 %v4499
    %4602 = vmatpush.msra.mxu0 %v4498
    %4603 = vmatmul.f32.gmra.mxu0 %v4585
    %v4604 = vpop.f32.mrf.mxu0
    %v4605 = vadd.f32 %v4569, %v4604
    %4606 = vdwg.mxu0
    %s4607 = scalar_lea.vmem %s5, 256
    %v4608 = vld [vmem:[%s4607] sm:$0xff]
    %v4609 = vld [vmem:[%s4607 + $0x8] sm:$0xff]
    %v4610 = vld [vmem:[%s4607 + $0x10] sm:$0xff]
    %v4611 = vld [vmem:[%s4607 + $0x18] sm:$0xff]
    %v4612 = vld [vmem:[%s4607 + $0x20] sm:$0xff]
    %v4613 = vld [vmem:[%s4607 + $0x28] sm:$0xff]
    %v4614 = vld [vmem:[%s4607 + $0x30] sm:$0xff]
    %v4615 = vld [vmem:[%s4607 + $0x38] sm:$0xff]
    %v4616 = vld [vmem:[%s4607 + $0x40] sm:$0xff]
    %v4617 = vld [vmem:[%s4607 + $0x48] sm:$0xff]
    %v4618 = vld [vmem:[%s4607 + $0x50] sm:$0xff]
    %v4619 = vld [vmem:[%s4607 + $0x58] sm:$0xff]
    %v4620 = vld [vmem:[%s4607 + $0x60] sm:$0xff]
    %v4621 = vld [vmem:[%s4607 + $0x68] sm:$0xff]
    %v4622 = vld [vmem:[%s4607 + $0x70] sm:$0xff]
    %v4623 = vld [vmem:[%s4607 + $0x78] sm:$0xff]
    %v4624 = vperm.slane %v4486, 2
    %v4625 = vperm.slane %v4494, 2
    %v4626 = vperm.slane %v4487, 2
    %v4627 = vperm.slane %v4495, 2
    %v4628 = vperm.slane %v4488, 2
    %v4629 = vperm.slane %v4496, 2
    %v4630 = vperm.slane %v4489, 2
    %v4631 = vperm.slane %v4497, 2
    %v4632 = vsel %vm4539, %v4625, %v4624
    %v4633 = vsel %vm737, %v4626, %v4632
    %v4634 = vsel %vm4542, %v4627, %v4633
    %v4635 = vsel %vm739, %v4628, %v4634
    %v4636 = vsel %vm4545, %v4629, %v4635
    %v4637 = vsel %vm741, %v4630, %v4636
    %v4638 = vsel %vm4548, %v4631, %v4637
    %4640 = vmatpush.msra.mxu0 %v4623
    %4641 = vmatpush.msra.mxu0 %v4622
    %4642 = vmatpush.msra.mxu0 %v4621
    %4643 = vmatpush.msra.mxu0 %v4620
    %4644 = vmatpush.msra.mxu0 %v4619
    %4645 = vmatpush.msra.mxu0 %v4618
    %4646 = vmatpush.msra.mxu0 %v4617
    %4647 = vmatpush.msra.mxu0 %v4616
    %4648 = vmatpush.msra.mxu0 %v4615
    %4649 = vmatpush.msra.mxu0 %v4614
    %4650 = vmatpush.msra.mxu0 %v4613
    %4651 = vmatpush.msra.mxu0 %v4612
    %4652 = vmatpush.msra.mxu0 %v4611
    %4653 = vmatpush.msra.mxu0 %v4610
    %4654 = vmatpush.msra.mxu0 %v4609
    %4655 = vmatpush.msra.mxu0 %v4608
    %4656 = vmatmul.f32.gmra.mxu0 %v4638
    %v4657 = vpop.f32.mrf.mxu0
    %v4658 = vadd.f32 0.0, %v4657
    %4659 = vdwg.mxu0
    %v4660 = vadd.f32 %v4605, %v4658
    %s4661 = scalar_lea.vmem %s5, 384
    %v4662 = vld [vmem:[%s4661] sm:$0xff]
    %v4663 = vld [vmem:[%s4661 + $0x8] sm:$0xff]
    %v4664 = vld [vmem:[%s4661 + $0x10] sm:$0xff]
    %v4665 = vld [vmem:[%s4661 + $0x18] sm:$0xff]
    %v4666 = vld [vmem:[%s4661 + $0x20] sm:$0xff]
    %v4667 = vld [vmem:[%s4661 + $0x28] sm:$0xff]
    %v4668 = vld [vmem:[%s4661 + $0x30] sm:$0xff]
    %v4669 = vld [vmem:[%s4661 + $0x38] sm:$0xff]
    %v4670 = vld [vmem:[%s4661 + $0x40] sm:$0xff]
    %v4671 = vld [vmem:[%s4661 + $0x48] sm:$0xff]
    %v4672 = vld [vmem:[%s4661 + $0x50] sm:$0xff]
    %v4673 = vld [vmem:[%s4661 + $0x58] sm:$0xff]
    %v4674 = vld [vmem:[%s4661 + $0x60] sm:$0xff]
    %v4675 = vld [vmem:[%s4661 + $0x68] sm:$0xff]
    %v4676 = vld [vmem:[%s4661 + $0x70] sm:$0xff]
    %v4677 = vld [vmem:[%s4661 + $0x78] sm:$0xff]
    %v4678 = vperm.slane %v4486, 3
    %v4679 = vperm.slane %v4494, 3
    %v4680 = vperm.slane %v4487, 3
    %v4681 = vperm.slane %v4495, 3
    %v4682 = vperm.slane %v4488, 3
    %v4683 = vperm.slane %v4496, 3
    %v4684 = vperm.slane %v4489, 3
    %v4685 = vperm.slane %v4497, 3
    %v4686 = vsel %vm4539, %v4679, %v4678
    %v4687 = vsel %vm737, %v4680, %v4686
    %v4688 = vsel %vm4542, %v4681, %v4687
    %v4689 = vsel %vm739, %v4682, %v4688
    %v4690 = vsel %vm4545, %v4683, %v4689
    %v4691 = vsel %vm741, %v4684, %v4690
    %v4692 = vsel %vm4548, %v4685, %v4691
    %4694 = vmatpush.msra.mxu0 %v4677
    %4695 = vmatpush.msra.mxu0 %v4676
    %4696 = vmatpush.msra.mxu0 %v4675
    %4697 = vmatpush.msra.mxu0 %v4674
    %4698 = vmatpush.msra.mxu0 %v4673
    %4699 = vmatpush.msra.mxu0 %v4672
    %4700 = vmatpush.msra.mxu0 %v4671
    %4701 = vmatpush.msra.mxu0 %v4670
    %4702 = vmatpush.msra.mxu0 %v4669
    %4703 = vmatpush.msra.mxu0 %v4668
    %4704 = vmatpush.msra.mxu0 %v4667
    %4705 = vmatpush.msra.mxu0 %v4666
    %4706 = vmatpush.msra.mxu0 %v4665
    %4707 = vmatpush.msra.mxu0 %v4664
    %4708 = vmatpush.msra.mxu0 %v4663
    %4709 = vmatpush.msra.mxu0 %v4662
    %4710 = vmatmul.f32.gmra.mxu0 %v4692
    %v4711 = vpop.f32.mrf.mxu0
    %v4712 = vadd.f32 0.0, %v4711
    %4713 = vdwg.mxu0
    %v4714 = vadd.f32 %v4660, %v4712
    %v4715 = vld [vmem:[%s6] sm:$0x1]
    %v4717 = vperm.slane %v4715, 0
    %v4719 = vadd.f32 %v4714, %v4717
    %v4720 = vmax.f32 %v4719, 0.0
    %v4721 = vld [vmem:[#allocation4] sm:$0xff]
    %v4722 = vld [vmem:[#allocation4 + $0x8] sm:$0xff]
    %v4723 = vld [vmem:[#allocation4 + $0x10] sm:$0xff]
    %v4724 = vld [vmem:[#allocation4 + $0x18] sm:$0xff]
    %v4725 = vld [vmem:[#allocation4 + $0x20] sm:$0xff]
    %v4726 = vld [vmem:[#allocation4 + $0x28] sm:$0xff]
    %v4727 = vld [vmem:[#allocation4 + $0x30] sm:$0xff]
    %v4728 = vld [vmem:[#allocation4 + $0x38] sm:$0xff]
    %v4729 = vld [vmem:[#allocation4 + $0x40] sm:$0xff]
    %v4730 = vld [vmem:[#allocation4 + $0x48] sm:$0xff]
    %v4731 = vld [vmem:[#allocation4 + $0x50] sm:$0xff]
    %v4732 = vld [vmem:[#allocation4 + $0x58] sm:$0xff]
    %v4733 = vld [vmem:[#allocation4 + $0x60] sm:$0xff]
    %v4734 = vld [vmem:[#allocation4 + $0x68] sm:$0xff]
    %v4735 = vld [vmem:[#allocation4 + $0x70] sm:$0xff]
    %v4736 = vld [vmem:[#allocation4 + $0x78] sm:$0xff]
    %v4737 = vld [vmem:[%s8] sm:$0x1]
    %v4739 = vperm.slane %v4737, 0
    %4741 = vmatpush.msra.mxu0 %v4736
    %4742 = vmatpush.msra.mxu0 %v4735
    %4743 = vmatpush.msra.mxu0 %v4734
    %4744 = vmatpush.msra.mxu0 %v4733
    %4745 = vmatpush.msra.mxu0 %v4732
    %4746 = vmatpush.msra.mxu0 %v4731
    %4747 = vmatpush.msra.mxu0 %v4730
    %4748 = vmatpush.msra.mxu0 %v4729
    %4749 = vmatpush.msra.mxu0 %v4728
    %4750 = vmatpush.msra.mxu0 %v4727
    %4751 = vmatpush.msra.mxu0 %v4726
    %4752 = vmatpush.msra.mxu0 %v4725
    %4753 = vmatpush.msra.mxu0 %v4724
    %4754 = vmatpush.msra.mxu0 %v4723
    %4755 = vmatpush.msra.mxu0 %v4722
    %4756 = vmatpush.msra.mxu0 %v4721
    %4757 = vmatmul.f32.gmra.mxu0 %v4720
    %v4758 = vpop.f32.mrf.mxu0
    %v4759 = vadd.f32 %v4739, %v4758
    %4760 = vdwg.mxu0
    %vm4761 = vcmp.lt.s32.totalorder %v1701, 10
    %v4762 = vsel %vm4761, %v4759, -1e+30
    %4763 = vmax.xlane.f32.xlu0 %v4762
    %v4764 = vpop.xlane.xlu0 %4763
    %v4765 = vsub.f32 %v4762, %v4764
    %v4766 = vmul.f32 %v4765, 1.442695
    %v4767 = vpow.pop %v4766
    %4768 = vadd.xlane.f32.xlu0 %v4767
    %v4769 = vpop.xlane.xlu0 %4768
    %v4770 = vlog2.pop %v4769
    %v4771 = vmul.f32 %v4770, 0.6931472
    %v4772 = vsub.f32 %v4765, %v4771
    %4773 = vst [vmem:[%s9] sm:$0xff] %v4772
    // Predicated region
    $region46: #{cnn_forward.1} parent=1 // pred_check
      _
    $region47: #{cnn_forward.1} parent=1 // pred_check_branch
      %4775 = sbr.rel (0) target = $region49
    $region48: #{cnn_forward.1} parent=1 // pred_region
      _
    $region49: #{cnn_forward.1} parent=1 // pred_fallthru
      _
    // Predicated region
    $region50: #{cnn_forward.1} parent=1 // pred_check
      _
    $region51: #{cnn_forward.1} parent=1 // pred_check_branch
      %4777 = sbr.rel (0) target = $region53
    $region52: #{cnn_forward.1} parent=1 // pred_region
      _
    $region53: #{cnn_forward.1} parent=1 // pred_fallthru
      _
    %4778 = vsyncpa [#allocation3], 1
    %4779 = vsyncpa [#allocation5], 1

</llo_original>
